<compile_context>
chip_gen: v5e
topology: v5e:2x2
jax: 0.10.0
libtpu: 0.0.40
codegen_flags: <defaults>
</compile_context>

<pallas_src>
import functools

import jax
import jax.numpy as jnp
from jax.experimental import pallas as pl
from jax.experimental.pallas import tpu as pltpu


def motion_disc_kernel(x_ref, h0_ref, lengths_ref,
                       w_ih_ref, w_hh_ref, b_ih_ref, b_hhn_ref,
                       w1_ref, b1_ref, w2_ref, b2_ref,
                       out_ref, seq_scratch):
    TB, Din = x_ref.shape                     # (T*B, input_size)
    L, _, Dmax, H = w_ih_ref.shape
    B = h0_ref.shape[1]
    T = TB // B

    lengths = lengths_ref[...]                # (B, 1) int32

    out_sel = jnp.zeros((B, H), jnp.float32)  # last-layer selected frame

    for l in range(L):                        # static layer loop (unrolled)
        in_dim = Din if l == 0 else H
        inp = x_ref[...] if l == 0 else seq_scratch[...]   # (T*B, in_dim)

        # ---- hoisted input projection: 3 matmuls per layer, outside the
        #      serialized recurrence.  b_hh(r), b_hh(z) already folded in.
        gi = []
        for g in range(3):                    # gate order: r, z, n
            w_g = w_ih_ref[l, g]              # (Dmax, H), pre-transposed
            if in_dim != Dmax:
                w_g = w_g[:in_dim, :]         # static sublane slice
            gi.append(jnp.dot(inp, w_g, preferred_element_type=jnp.float32)
                      + b_ih_ref[l, g])       # (T*B, H)

        w_r = w_hh_ref[l, 0]                  # (H, H), pre-transposed
        w_z = w_hh_ref[l, 1]
        w_n = w_hh_ref[l, 2]
        b_hn = b_hhn_ref[l]                   # (1, H)
        h = h0_ref[l]                         # (B, H)
        last = (l == L - 1)

        for t in range(T):                    # static time loop (unrolled)
            lo, hi = t * B, (t + 1) * B
            gh_r = jnp.dot(h, w_r, preferred_element_type=jnp.float32)
            gh_z = jnp.dot(h, w_z, preferred_element_type=jnp.float32)
            gh_n = jnp.dot(h, w_n, preferred_element_type=jnp.float32) + b_hn
            r = jax.nn.sigmoid(gi[0][lo:hi] + gh_r)
            z = jax.nn.sigmoid(gi[1][lo:hi] + gh_z)
            n = jnp.tanh(gi[2][lo:hi] + r * gh_n)
            h = (1.0 - z) * n + z * h         # (B, H)
            if last:
                # out = gru_o[lengths - 1, arange(B)]  (torch semantics)
                out_sel = jnp.where(lengths == (t + 1), h, out_sel)
            else:
                seq_scratch[lo:hi, :] = h     # next layer's input row block

    # MLP head (weights pre-transposed, hidden padded 30 -> 32 with zeros).
    lin1 = jnp.tanh(jnp.dot(out_sel, w1_ref[...],
                            preferred_element_type=jnp.float32) + b1_ref[...])
    out_ref[...] = (jnp.dot(lin1, w2_ref[...],
                            preferred_element_type=jnp.float32) + b2_ref[...])


def motion_discriminator_forward(motion, lengths, h0, kparams, output_size):
    """motion: (bs, njoints, nfeats, num_frames) f32; lengths: (bs,) int32."""
    bs, njoints, nfeats, num_frames = motion.shape
    input_size = njoints * nfeats
    H = kparams["w_hh"].shape[2]

    # (bs, J, F, T) -> (bs, J*F, T) -> (T, bs, J*F) -> (T*bs, J*F); row index
    # is t*bs + b, which is the layout the kernel's static slices assume.
    x = (motion.reshape(bs, input_size, num_frames)
               .transpose(2, 0, 1)
               .astype(jnp.float32)
               .reshape(num_frames * bs, input_size))
    lengths2d = lengths.astype(jnp.int32).reshape(bs, 1)

    vmem = functools.partial(pl.BlockSpec, memory_space=pltpu.MemorySpace.VMEM)
    return pl.pallas_call(
        motion_disc_kernel,
        out_shape=jax.ShapeDtypeStruct((bs, output_size), jnp.float32),
        in_specs=[vmem()] * 11,
        out_specs=vmem(),
        scratch_shapes=[pltpu.VMEM((num_frames * bs, H), jnp.float32)],
    )(x, h0, lengths2d,
      kparams["w_ih"], kparams["w_hh"], kparams["b_ih"], kparams["b_hhn"],
      kparams["w1"], kparams["b1"], kparams["w2"], kparams["b2"])


def make_params(key, input_size, hidden_size, hidden_layer, output_size):
    """Deterministic synthetic parameters in torch-native layout."""
    H = hidden_size
    bound = 1.0 / jnp.sqrt(jnp.float32(H))
    keys = jax.random.split(key, 4 * hidden_layer + 4)

    w_ih_list, w_hh_list, b_ih_list, b_hh_list = [], [], [], []
    for l in range(hidden_layer):
        in_dim = input_size if l == 0 else H
        k0, k1, k2, k3 = keys[4 * l:4 * l + 4]
        w_ih_list.append(jax.random.uniform(k0, (3 * H, in_dim), jnp.float32,
                                            -bound, bound))
        w_hh_list.append(jax.random.uniform(k1, (3 * H, H), jnp.float32,
                                            -bound, bound))
        b_ih_list.append(jax.random.uniform(k2, (3 * H,), jnp.float32,
                                            -bound, bound))
        b_hh_list.append(jax.random.uniform(k3, (3 * H,), jnp.float32,
                                            -bound, bound))

    bnd2 = 1.0 / jnp.sqrt(jnp.float32(30))
    w1 = jax.random.uniform(keys[-4], (30, H), jnp.float32, -bound, bound)
    b1 = jax.random.uniform(keys[-3], (30,), jnp.float32, -bound, bound)
    w2 = jax.random.uniform(keys[-2], (output_size, 30), jnp.float32, -bnd2, bnd2)
    b2 = jax.random.uniform(keys[-1], (output_size,), jnp.float32, -bnd2, bnd2)
    return (w_ih_list, w_hh_list, b_ih_list, b_hh_list), (w1, b1, w2, b2)


def pack_params(raw_gru, w1, b1, w2, b2, input_size, hidden_size, head_pad=32):
    """Kernel layout: pre-transposed, gate-split, zero-padded weights.

    Invariant relied on by the kernel: rows >= layer-input-dim of w_ih and the
    padded head rows/cols are exactly zero.
    """
    w_ih_list, w_hh_list, b_ih_list, b_hh_list = raw_gru
    H = hidden_size
    L = len(w_ih_list)
    Dmax = max(input_size, H)

    w_ih_g = jnp.zeros((L, 3, Dmax, H), jnp.float32)
    w_hh_g = jnp.zeros((L, 3, H, H), jnp.float32)
    b_ih_g = jnp.zeros((L, 3, 1, H), jnp.float32)
    b_hhn = jnp.zeros((L, 1, H), jnp.float32)
    for l in range(L):
        in_dim = input_size if l == 0 else H
        for g in range(3):                                   # r, z, n
            w_ih_g = w_ih_g.at[l, g, :in_dim, :].set(
                w_ih_list[l][g * H:(g + 1) * H, :].T)
            w_hh_g = w_hh_g.at[l, g].set(w_hh_list[l][g * H:(g + 1) * H, :].T)
        b_ih = b_ih_list[l]
        b_hh = b_hh_list[l]
        # Fold the r/z hidden biases into the hoisted input bias; the n-gate
        # hidden bias must stay inside the recurrence (multiplied by r).
        b_ih_g = b_ih_g.at[l, 0, 0].set(b_ih[0:H] + b_hh[0:H])
        b_ih_g = b_ih_g.at[l, 1, 0].set(b_ih[H:2 * H] + b_hh[H:2 * H])
        b_ih_g = b_ih_g.at[l, 2, 0].set(b_ih[2 * H:3 * H])
        b_hhn = b_hhn.at[l, 0].set(b_hh[2 * H:3 * H])

    out_size = w2.shape[0]
    hid1 = w1.shape[0]                                       # 30
    w1_p = jnp.zeros((H, head_pad), jnp.float32).at[:, :hid1].set(w1.T)
    b1_p = jnp.zeros((1, head_pad), jnp.float32).at[0, :hid1].set(b1)
    w2_p = jnp.zeros((head_pad, out_size), jnp.float32).at[:hid1, :].set(w2.T)
    b2_p = b2.reshape(1, out_size)
    return dict(w_ih=w_ih_g, w_hh=w_hh_g, b_ih=b_ih_g, b_hhn=b_hhn,
                w1=w1_p, b1=b1_p, w2=w2_p, b2=b2_p)


def reference_forward(motion, lengths, h0, raw_gru, head):
    """Pure-JAX reference mirroring torch semantics exactly (f32 GRU)."""
    w_ih_list, w_hh_list, b_ih_list, b_hh_list = raw_gru
    w1, b1, w2, b2 = head
    bs, nj, nf, T = motion.shape
    H = w_hh_list[0].shape[1]
    seq = motion.reshape(bs, nj * nf, T).transpose(2, 0, 1).astype(jnp.float32)
    for l in range(len(w_ih_list)):
        h = h0[l]
        outs = []
        for t in range(T):
            gi = seq[t] @ w_ih_list[l].T + b_ih_list[l]
            gh = h @ w_hh_list[l].T + b_hh_list[l]
            r = jax.nn.sigmoid(gi[:, :H] + gh[:, :H])
            z = jax.nn.sigmoid(gi[:, H:2 * H] + gh[:, H:2 * H])
            n = jnp.tanh(gi[:, 2 * H:] + r * gh[:, 2 * H:])
            h = (1 - z) * n + z * h
            outs.append(h)
        seq = jnp.stack(outs)
    out = seq[lengths - 1, jnp.arange(bs)]
    lin1 = jnp.tanh(out @ w1.T + b1)
    return lin1 @ w2.T + b2


if __name__ == "__main__":
    # Small shapes consistent with the module's forward.
    bs, njoints, nfeats, num_frames = 2, 4, 4, 8
    input_size = njoints * nfeats          # 16
    hidden_size = 32
    hidden_layer = 2
    output_size = 12                        # module default

    root = jax.random.PRNGKey(0)
    k_m, k_h, k_p = jax.random.split(root, 3)

    motion = jax.random.normal(
        k_m, (bs, njoints, nfeats, num_frames), jnp.float32)
    lengths = jnp.array([num_frames, 5], dtype=jnp.int32)
    # initHidden(): randn(layer, bs, hidden) -> deterministic here.
    h0 = jax.random.normal(k_h, (hidden_layer, bs, hidden_size), jnp.float32)

    raw_gru, head = make_params(
        k_p, input_size, hidden_size, hidden_layer, output_size)
    kparams = pack_params(raw_gru, *head, input_size, hidden_size)

    out = motion_discriminator_forward(motion, lengths, h0, kparams, output_size)
    out = jax.block_until_ready(out)

    ref = reference_forward(motion, lengths, h0, raw_gru, head)
    assert out.shape == (bs, output_size)
    assert jnp.allclose(out, ref, atol=1e-4, rtol=1e-4), (out, ref)

    print("KERNEL_OK")
</pallas_src>

<mosaic_0001>
module attributes {stable_mosaic.version = 11 : i64} {
  func.func @motion_disc_kernel(%arg0: memref<16x16xf32, #tpu.memory_space<vmem>>, %arg1: memref<2x2x32xf32, #tpu.memory_space<vmem>>, %arg2: memref<2x1xi32, #tpu.memory_space<vmem>>, %arg3: memref<2x3x32x32xf32, #tpu.memory_space<vmem>>, %arg4: memref<2x3x32x32xf32, #tpu.memory_space<vmem>>, %arg5: memref<2x3x1x32xf32, #tpu.memory_space<vmem>>, %arg6: memref<2x1x32xf32, #tpu.memory_space<vmem>>, %arg7: memref<32x32xf32, #tpu.memory_space<vmem>>, %arg8: memref<1x32xf32, #tpu.memory_space<vmem>>, %arg9: memref<32x12xf32, #tpu.memory_space<vmem>>, %arg10: memref<1x12xf32, #tpu.memory_space<vmem>>, %arg11: memref<2x12xf32, #tpu.memory_space<vmem>>, %arg12: memref<16x32xf32, #tpu.memory_space<vmem>>) attributes {dimension_semantics = [], scalar_prefetch = 0 : i64, scratch_operands = 1 : i64, tpu.core_type = #tpu.core_type<tc>} {
    %c0 = arith.constant 0 : index
    %c0_0 = arith.constant 0 : index
    %0 = vector.load %arg2[%c0, %c0_0] : memref<2x1xi32, #tpu.memory_space<vmem>>, vector<2x1xi32>
    %cst = arith.constant 0.000000e+00 : f32
    %1 = vector.broadcast %cst : f32 to vector<2x32xf32>
    %c0_1 = arith.constant 0 : index
    %c0_2 = arith.constant 0 : index
    %2 = vector.load %arg0[%c0_1, %c0_2] : memref<16x16xf32, #tpu.memory_space<vmem>>, vector<16x16xf32>
    %c0_3 = arith.constant 0 : index
    %c0_4 = arith.constant 0 : index
    %c0_5 = arith.constant 0 : index
    %c0_6 = arith.constant 0 : index
    %3 = vector.load %arg3[%c0_3, %c0_4, %c0_5, %c0_6] : memref<2x3x32x32xf32, #tpu.memory_space<vmem>>, vector<1x1x32x32xf32>
    %4 = vector.shape_cast %3 : vector<1x1x32x32xf32> to vector<32x32xf32>
    %5 = vector.extract_strided_slice %4 {offsets = [0, 0], sizes = [16, 32], strides = [1, 1]} : vector<32x32xf32> to vector<16x32xf32>
    %cst_7 = arith.constant dense<0.000000e+00> : vector<16x32xf32>
    %6 = tpu.matmul %2, %5, %cst_7 {dimension_numbers = #tpu.dot_dimension_numbers<[1], [0], [0], [1], [0, 0, 1, 1], [], []>} : vector<16x16xf32>, vector<16x32xf32>, vector<16x32xf32> -> vector<16x32xf32>
    %c0_8 = arith.constant 0 : index
    %c0_9 = arith.constant 0 : index
    %c0_10 = arith.constant 0 : index
    %c0_11 = arith.constant 0 : index
    %7 = vector.load %arg5[%c0_8, %c0_9, %c0_10, %c0_11] : memref<2x3x1x32xf32, #tpu.memory_space<vmem>>, vector<1x1x1x32xf32>
    %8 = vector.shape_cast %7 : vector<1x1x1x32xf32> to vector<1x32xf32>
    %9 = vector.broadcast %8 : vector<1x32xf32> to vector<16x32xf32>
    %10 = arith.addf %6, %9 : vector<16x32xf32>
    %c0_12 = arith.constant 0 : index
    %c1 = arith.constant 1 : index
    %c0_13 = arith.constant 0 : index
    %c0_14 = arith.constant 0 : index
    %11 = vector.load %arg3[%c0_12, %c1, %c0_13, %c0_14] : memref<2x3x32x32xf32, #tpu.memory_space<vmem>>, vector<1x1x32x32xf32>
    %12 = vector.shape_cast %11 : vector<1x1x32x32xf32> to vector<32x32xf32>
    %13 = vector.extract_strided_slice %12 {offsets = [0, 0], sizes = [16, 32], strides = [1, 1]} : vector<32x32xf32> to vector<16x32xf32>
    %cst_15 = arith.constant dense<0.000000e+00> : vector<16x32xf32>
    %14 = tpu.matmul %2, %13, %cst_15 {dimension_numbers = #tpu.dot_dimension_numbers<[1], [0], [0], [1], [0, 0, 1, 1], [], []>} : vector<16x16xf32>, vector<16x32xf32>, vector<16x32xf32> -> vector<16x32xf32>
    %c0_16 = arith.constant 0 : index
    %c1_17 = arith.constant 1 : index
    %c0_18 = arith.constant 0 : index
    %c0_19 = arith.constant 0 : index
    %15 = vector.load %arg5[%c0_16, %c1_17, %c0_18, %c0_19] : memref<2x3x1x32xf32, #tpu.memory_space<vmem>>, vector<1x1x1x32xf32>
    %16 = vector.shape_cast %15 : vector<1x1x1x32xf32> to vector<1x32xf32>
    %17 = vector.broadcast %16 : vector<1x32xf32> to vector<16x32xf32>
    %18 = arith.addf %14, %17 : vector<16x32xf32>
    %c0_20 = arith.constant 0 : index
    %c2 = arith.constant 2 : index
    %c0_21 = arith.constant 0 : index
    %c0_22 = arith.constant 0 : index
    %19 = vector.load %arg3[%c0_20, %c2, %c0_21, %c0_22] : memref<2x3x32x32xf32, #tpu.memory_space<vmem>>, vector<1x1x32x32xf32>
    %20 = vector.shape_cast %19 : vector<1x1x32x32xf32> to vector<32x32xf32>
    %21 = vector.extract_strided_slice %20 {offsets = [0, 0], sizes = [16, 32], strides = [1, 1]} : vector<32x32xf32> to vector<16x32xf32>
    %cst_23 = arith.constant dense<0.000000e+00> : vector<16x32xf32>
    %22 = tpu.matmul %2, %21, %cst_23 {dimension_numbers = #tpu.dot_dimension_numbers<[1], [0], [0], [1], [0, 0, 1, 1], [], []>} : vector<16x16xf32>, vector<16x32xf32>, vector<16x32xf32> -> vector<16x32xf32>
    %c0_24 = arith.constant 0 : index
    %c2_25 = arith.constant 2 : index
    %c0_26 = arith.constant 0 : index
    %c0_27 = arith.constant 0 : index
    %23 = vector.load %arg5[%c0_24, %c2_25, %c0_26, %c0_27] : memref<2x3x1x32xf32, #tpu.memory_space<vmem>>, vector<1x1x1x32xf32>
    %24 = vector.shape_cast %23 : vector<1x1x1x32xf32> to vector<1x32xf32>
    %25 = vector.broadcast %24 : vector<1x32xf32> to vector<16x32xf32>
    %26 = arith.addf %22, %25 : vector<16x32xf32>
    %c0_28 = arith.constant 0 : index
    %c0_29 = arith.constant 0 : index
    %c0_30 = arith.constant 0 : index
    %c0_31 = arith.constant 0 : index
    %27 = vector.load %arg4[%c0_28, %c0_29, %c0_30, %c0_31] : memref<2x3x32x32xf32, #tpu.memory_space<vmem>>, vector<1x1x32x32xf32>
    %28 = vector.shape_cast %27 : vector<1x1x32x32xf32> to vector<32x32xf32>
    %c0_32 = arith.constant 0 : index
    %c1_33 = arith.constant 1 : index
    %c0_34 = arith.constant 0 : index
    %c0_35 = arith.constant 0 : index
    %29 = vector.load %arg4[%c0_32, %c1_33, %c0_34, %c0_35] : memref<2x3x32x32xf32, #tpu.memory_space<vmem>>, vector<1x1x32x32xf32>
    %30 = vector.shape_cast %29 : vector<1x1x32x32xf32> to vector<32x32xf32>
    %c0_36 = arith.constant 0 : index
    %c2_37 = arith.constant 2 : index
    %c0_38 = arith.constant 0 : index
    %c0_39 = arith.constant 0 : index
    %31 = vector.load %arg4[%c0_36, %c2_37, %c0_38, %c0_39] : memref<2x3x32x32xf32, #tpu.memory_space<vmem>>, vector<1x1x32x32xf32>
    %32 = vector.shape_cast %31 : vector<1x1x32x32xf32> to vector<32x32xf32>
    %c0_40 = arith.constant 0 : index
    %c0_41 = arith.constant 0 : index
    %c0_42 = arith.constant 0 : index
    %33 = vector.load %arg6[%c0_40, %c0_41, %c0_42] : memref<2x1x32xf32, #tpu.memory_space<vmem>>, vector<1x1x32xf32>
    %34 = vector.shape_cast %33 : vector<1x1x32xf32> to vector<1x32xf32>
    %c0_43 = arith.constant 0 : index
    %c0_44 = arith.constant 0 : index
    %c0_45 = arith.constant 0 : index
    %35 = vector.load %arg1[%c0_43, %c0_44, %c0_45] : memref<2x2x32xf32, #tpu.memory_space<vmem>>, vector<1x2x32xf32>
    %36 = vector.shape_cast %35 : vector<1x2x32xf32> to vector<2x32xf32>
    %cst_46 = arith.constant dense<0.000000e+00> : vector<2x32xf32>
    %37 = tpu.matmul %36, %28, %cst_46 {dimension_numbers = #tpu.dot_dimension_numbers<[1], [0], [0], [1], [0, 0, 1, 1], [], []>} : vector<2x32xf32>, vector<32x32xf32>, vector<2x32xf32> -> vector<2x32xf32>
    %cst_47 = arith.constant dense<0.000000e+00> : vector<2x32xf32>
    %38 = tpu.matmul %36, %30, %cst_47 {dimension_numbers = #tpu.dot_dimension_numbers<[1], [0], [0], [1], [0, 0, 1, 1], [], []>} : vector<2x32xf32>, vector<32x32xf32>, vector<2x32xf32> -> vector<2x32xf32>
    %cst_48 = arith.constant dense<0.000000e+00> : vector<2x32xf32>
    %39 = tpu.matmul %36, %32, %cst_48 {dimension_numbers = #tpu.dot_dimension_numbers<[1], [0], [0], [1], [0, 0, 1, 1], [], []>} : vector<2x32xf32>, vector<32x32xf32>, vector<2x32xf32> -> vector<2x32xf32>
    %40 = vector.broadcast %34 : vector<1x32xf32> to vector<2x32xf32>
    %41 = arith.addf %39, %40 : vector<2x32xf32>
    %42 = vector.extract_strided_slice %10 {offsets = [0, 0], sizes = [2, 32], strides = [1, 1]} : vector<16x32xf32> to vector<2x32xf32>
    %43 = arith.addf %42, %37 : vector<2x32xf32>
    %44 = arith.negf %43 : vector<2x32xf32>
    %45 = math.exp %44 : vector<2x32xf32>
    %cst_49 = arith.constant 1.000000e+00 : f32
    %46 = vector.broadcast %cst_49 : f32 to vector<2x32xf32>
    %47 = arith.addf %46, %45 : vector<2x32xf32>
    %48 = arith.divf %46, %47 : vector<2x32xf32>
    %49 = vector.extract_strided_slice %18 {offsets = [0, 0], sizes = [2, 32], strides = [1, 1]} : vector<16x32xf32> to vector<2x32xf32>
    %50 = arith.addf %49, %38 : vector<2x32xf32>
    %51 = arith.negf %50 : vector<2x32xf32>
    %52 = math.exp %51 : vector<2x32xf32>
    %cst_50 = arith.constant 1.000000e+00 : f32
    %53 = vector.broadcast %cst_50 : f32 to vector<2x32xf32>
    %54 = arith.addf %53, %52 : vector<2x32xf32>
    %55 = arith.divf %53, %54 : vector<2x32xf32>
    %56 = vector.extract_strided_slice %26 {offsets = [0, 0], sizes = [2, 32], strides = [1, 1]} : vector<16x32xf32> to vector<2x32xf32>
    %57 = arith.mulf %48, %41 : vector<2x32xf32>
    %58 = arith.addf %56, %57 : vector<2x32xf32>
    %59 = math.tanh %58 : vector<2x32xf32>
    %cst_51 = arith.constant 1.000000e+00 : f32
    %60 = vector.broadcast %cst_51 : f32 to vector<2x32xf32>
    %61 = arith.subf %60, %55 : vector<2x32xf32>
    %62 = arith.mulf %61, %59 : vector<2x32xf32>
    %63 = arith.mulf %55, %36 : vector<2x32xf32>
    %64 = arith.addf %62, %63 : vector<2x32xf32>
    %c0_52 = arith.constant 0 : index
    %c0_53 = arith.constant 0 : index
    %65 = vector.load %arg12[%c0_52, %c0_53] : memref<16x32xf32, #tpu.memory_space<vmem>>, vector<2x32xf32>
    tpu.vector_store %arg12[%c0_52, %c0_53], %64 {strides = array<i32>} : memref<16x32xf32, #tpu.memory_space<vmem>>, vector<2x32xf32>,
    %cst_54 = arith.constant dense<0.000000e+00> : vector<2x32xf32>
    %66 = tpu.matmul %64, %28, %cst_54 {dimension_numbers = #tpu.dot_dimension_numbers<[1], [0], [0], [1], [0, 0, 1, 1], [], []>} : vector<2x32xf32>, vector<32x32xf32>, vector<2x32xf32> -> vector<2x32xf32>
    %cst_55 = arith.constant dense<0.000000e+00> : vector<2x32xf32>
    %67 = tpu.matmul %64, %30, %cst_55 {dimension_numbers = #tpu.dot_dimension_numbers<[1], [0], [0], [1], [0, 0, 1, 1], [], []>} : vector<2x32xf32>, vector<32x32xf32>, vector<2x32xf32> -> vector<2x32xf32>
    %cst_56 = arith.constant dense<0.000000e+00> : vector<2x32xf32>
    %68 = tpu.matmul %64, %32, %cst_56 {dimension_numbers = #tpu.dot_dimension_numbers<[1], [0], [0], [1], [0, 0, 1, 1], [], []>} : vector<2x32xf32>, vector<32x32xf32>, vector<2x32xf32> -> vector<2x32xf32>
    %69 = vector.broadcast %34 : vector<1x32xf32> to vector<2x32xf32>
    %70 = arith.addf %68, %69 : vector<2x32xf32>
    %71 = vector.extract_strided_slice %10 {offsets = [2, 0], sizes = [2, 32], strides = [1, 1]} : vector<16x32xf32> to vector<2x32xf32>
    %72 = arith.addf %71, %66 : vector<2x32xf32>
    %73 = arith.negf %72 : vector<2x32xf32>
    %74 = math.exp %73 : vector<2x32xf32>
    %cst_57 = arith.constant 1.000000e+00 : f32
    %75 = vector.broadcast %cst_57 : f32 to vector<2x32xf32>
    %76 = arith.addf %75, %74 : vector<2x32xf32>
    %77 = arith.divf %75, %76 : vector<2x32xf32>
    %78 = vector.extract_strided_slice %18 {offsets = [2, 0], sizes = [2, 32], strides = [1, 1]} : vector<16x32xf32> to vector<2x32xf32>
    %79 = arith.addf %78, %67 : vector<2x32xf32>
    %80 = arith.negf %79 : vector<2x32xf32>
    %81 = math.exp %80 : vector<2x32xf32>
    %cst_58 = arith.constant 1.000000e+00 : f32
    %82 = vector.broadcast %cst_58 : f32 to vector<2x32xf32>
    %83 = arith.addf %82, %81 : vector<2x32xf32>
    %84 = arith.divf %82, %83 : vector<2x32xf32>
    %85 = vector.extract_strided_slice %26 {offsets = [2, 0], sizes = [2, 32], strides = [1, 1]} : vector<16x32xf32> to vector<2x32xf32>
    %86 = arith.mulf %77, %70 : vector<2x32xf32>
    %87 = arith.addf %85, %86 : vector<2x32xf32>
    %88 = math.tanh %87 : vector<2x32xf32>
    %cst_59 = arith.constant 1.000000e+00 : f32
    %89 = vector.broadcast %cst_59 : f32 to vector<2x32xf32>
    %90 = arith.subf %89, %84 : vector<2x32xf32>
    %91 = arith.mulf %90, %88 : vector<2x32xf32>
    %92 = arith.mulf %84, %64 : vector<2x32xf32>
    %93 = arith.addf %91, %92 : vector<2x32xf32>
    %c2_60 = arith.constant 2 : index
    %c0_61 = arith.constant 0 : index
    %94 = vector.load %arg12[%c2_60, %c0_61] : memref<16x32xf32, #tpu.memory_space<vmem>>, vector<2x32xf32>
    tpu.vector_store %arg12[%c2_60, %c0_61], %93 {strides = array<i32>} : memref<16x32xf32, #tpu.memory_space<vmem>>, vector<2x32xf32>,
    %cst_62 = arith.constant dense<0.000000e+00> : vector<2x32xf32>
    %95 = tpu.matmul %93, %28, %cst_62 {dimension_numbers = #tpu.dot_dimension_numbers<[1], [0], [0], [1], [0, 0, 1, 1], [], []>} : vector<2x32xf32>, vector<32x32xf32>, vector<2x32xf32> -> vector<2x32xf32>
    %cst_63 = arith.constant dense<0.000000e+00> : vector<2x32xf32>
    %96 = tpu.matmul %93, %30, %cst_63 {dimension_numbers = #tpu.dot_dimension_numbers<[1], [0], [0], [1], [0, 0, 1, 1], [], []>} : vector<2x32xf32>, vector<32x32xf32>, vector<2x32xf32> -> vector<2x32xf32>
    %cst_64 = arith.constant dense<0.000000e+00> : vector<2x32xf32>
    %97 = tpu.matmul %93, %32, %cst_64 {dimension_numbers = #tpu.dot_dimension_numbers<[1], [0], [0], [1], [0, 0, 1, 1], [], []>} : vector<2x32xf32>, vector<32x32xf32>, vector<2x32xf32> -> vector<2x32xf32>
    %98 = vector.broadcast %34 : vector<1x32xf32> to vector<2x32xf32>
    %99 = arith.addf %97, %98 : vector<2x32xf32>
    %100 = vector.extract_strided_slice %10 {offsets = [4, 0], sizes = [2, 32], strides = [1, 1]} : vector<16x32xf32> to vector<2x32xf32>
    %101 = arith.addf %100, %95 : vector<2x32xf32>
    %102 = arith.negf %101 : vector<2x32xf32>
    %103 = math.exp %102 : vector<2x32xf32>
    %cst_65 = arith.constant 1.000000e+00 : f32
    %104 = vector.broadcast %cst_65 : f32 to vector<2x32xf32>
    %105 = arith.addf %104, %103 : vector<2x32xf32>
    %106 = arith.divf %104, %105 : vector<2x32xf32>
    %107 = vector.extract_strided_slice %18 {offsets = [4, 0], sizes = [2, 32], strides = [1, 1]} : vector<16x32xf32> to vector<2x32xf32>
    %108 = arith.addf %107, %96 : vector<2x32xf32>
    %109 = arith.negf %108 : vector<2x32xf32>
    %110 = math.exp %109 : vector<2x32xf32>
    %cst_66 = arith.constant 1.000000e+00 : f32
    %111 = vector.broadcast %cst_66 : f32 to vector<2x32xf32>
    %112 = arith.addf %111, %110 : vector<2x32xf32>
    %113 = arith.divf %111, %112 : vector<2x32xf32>
    %114 = vector.extract_strided_slice %26 {offsets = [4, 0], sizes = [2, 32], strides = [1, 1]} : vector<16x32xf32> to vector<2x32xf32>
    %115 = arith.mulf %106, %99 : vector<2x32xf32>
    %116 = arith.addf %114, %115 : vector<2x32xf32>
    %117 = math.tanh %116 : vector<2x32xf32>
    %cst_67 = arith.constant 1.000000e+00 : f32
    %118 = vector.broadcast %cst_67 : f32 to vector<2x32xf32>
    %119 = arith.subf %118, %113 : vector<2x32xf32>
    %120 = arith.mulf %119, %117 : vector<2x32xf32>
    %121 = arith.mulf %113, %93 : vector<2x32xf32>
    %122 = arith.addf %120, %121 : vector<2x32xf32>
    %c4 = arith.constant 4 : index
    %c0_68 = arith.constant 0 : index
    %123 = vector.load %arg12[%c4, %c0_68] : memref<16x32xf32, #tpu.memory_space<vmem>>, vector<2x32xf32>
    tpu.vector_store %arg12[%c4, %c0_68], %122 {strides = array<i32>} : memref<16x32xf32, #tpu.memory_space<vmem>>, vector<2x32xf32>,
    %cst_69 = arith.constant dense<0.000000e+00> : vector<2x32xf32>
    %124 = tpu.matmul %122, %28, %cst_69 {dimension_numbers = #tpu.dot_dimension_numbers<[1], [0], [0], [1], [0, 0, 1, 1], [], []>} : vector<2x32xf32>, vector<32x32xf32>, vector<2x32xf32> -> vector<2x32xf32>
    %cst_70 = arith.constant dense<0.000000e+00> : vector<2x32xf32>
    %125 = tpu.matmul %122, %30, %cst_70 {dimension_numbers = #tpu.dot_dimension_numbers<[1], [0], [0], [1], [0, 0, 1, 1], [], []>} : vector<2x32xf32>, vector<32x32xf32>, vector<2x32xf32> -> vector<2x32xf32>
    %cst_71 = arith.constant dense<0.000000e+00> : vector<2x32xf32>
    %126 = tpu.matmul %122, %32, %cst_71 {dimension_numbers = #tpu.dot_dimension_numbers<[1], [0], [0], [1], [0, 0, 1, 1], [], []>} : vector<2x32xf32>, vector<32x32xf32>, vector<2x32xf32> -> vector<2x32xf32>
    %127 = vector.broadcast %34 : vector<1x32xf32> to vector<2x32xf32>
    %128 = arith.addf %126, %127 : vector<2x32xf32>
    %129 = vector.extract_strided_slice %10 {offsets = [6, 0], sizes = [2, 32], strides = [1, 1]} : vector<16x32xf32> to vector<2x32xf32>
    %130 = arith.addf %129, %124 : vector<2x32xf32>
    %131 = arith.negf %130 : vector<2x32xf32>
    %132 = math.exp %131 : vector<2x32xf32>
    %cst_72 = arith.constant 1.000000e+00 : f32
    %133 = vector.broadcast %cst_72 : f32 to vector<2x32xf32>
    %134 = arith.addf %133, %132 : vector<2x32xf32>
    %135 = arith.divf %133, %134 : vector<2x32xf32>
    %136 = vector.extract_strided_slice %18 {offsets = [6, 0], sizes = [2, 32], strides = [1, 1]} : vector<16x32xf32> to vector<2x32xf32>
    %137 = arith.addf %136, %125 : vector<2x32xf32>
    %138 = arith.negf %137 : vector<2x32xf32>
    %139 = math.exp %138 : vector<2x32xf32>
    %cst_73 = arith.constant 1.000000e+00 : f32
    %140 = vector.broadcast %cst_73 : f32 to vector<2x32xf32>
    %141 = arith.addf %140, %139 : vector<2x32xf32>
    %142 = arith.divf %140, %141 : vector<2x32xf32>
    %143 = vector.extract_strided_slice %26 {offsets = [6, 0], sizes = [2, 32], strides = [1, 1]} : vector<16x32xf32> to vector<2x32xf32>
    %144 = arith.mulf %135, %128 : vector<2x32xf32>
    %145 = arith.addf %143, %144 : vector<2x32xf32>
    %146 = math.tanh %145 : vector<2x32xf32>
    %cst_74 = arith.constant 1.000000e+00 : f32
    %147 = vector.broadcast %cst_74 : f32 to vector<2x32xf32>
    %148 = arith.subf %147, %142 : vector<2x32xf32>
    %149 = arith.mulf %148, %146 : vector<2x32xf32>
    %150 = arith.mulf %142, %122 : vector<2x32xf32>
    %151 = arith.addf %149, %150 : vector<2x32xf32>
    %c6 = arith.constant 6 : index
    %c0_75 = arith.constant 0 : index
    %152 = vector.load %arg12[%c6, %c0_75] : memref<16x32xf32, #tpu.memory_space<vmem>>, vector<2x32xf32>
    tpu.vector_store %arg12[%c6, %c0_75], %151 {strides = array<i32>} : memref<16x32xf32, #tpu.memory_space<vmem>>, vector<2x32xf32>,
    %cst_76 = arith.constant dense<0.000000e+00> : vector<2x32xf32>
    %153 = tpu.matmul %151, %28, %cst_76 {dimension_numbers = #tpu.dot_dimension_numbers<[1], [0], [0], [1], [0, 0, 1, 1], [], []>} : vector<2x32xf32>, vector<32x32xf32>, vector<2x32xf32> -> vector<2x32xf32>
    %cst_77 = arith.constant dense<0.000000e+00> : vector<2x32xf32>
    %154 = tpu.matmul %151, %30, %cst_77 {dimension_numbers = #tpu.dot_dimension_numbers<[1], [0], [0], [1], [0, 0, 1, 1], [], []>} : vector<2x32xf32>, vector<32x32xf32>, vector<2x32xf32> -> vector<2x32xf32>
    %cst_78 = arith.constant dense<0.000000e+00> : vector<2x32xf32>
    %155 = tpu.matmul %151, %32, %cst_78 {dimension_numbers = #tpu.dot_dimension_numbers<[1], [0], [0], [1], [0, 0, 1, 1], [], []>} : vector<2x32xf32>, vector<32x32xf32>, vector<2x32xf32> -> vector<2x32xf32>
    %156 = vector.broadcast %34 : vector<1x32xf32> to vector<2x32xf32>
    %157 = arith.addf %155, %156 : vector<2x32xf32>
    %158 = vector.extract_strided_slice %10 {offsets = [8, 0], sizes = [2, 32], strides = [1, 1]} : vector<16x32xf32> to vector<2x32xf32>
    %159 = arith.addf %158, %153 : vector<2x32xf32>
    %160 = arith.negf %159 : vector<2x32xf32>
    %161 = math.exp %160 : vector<2x32xf32>
    %cst_79 = arith.constant 1.000000e+00 : f32
    %162 = vector.broadcast %cst_79 : f32 to vector<2x32xf32>
    %163 = arith.addf %162, %161 : vector<2x32xf32>
    %164 = arith.divf %162, %163 : vector<2x32xf32>
    %165 = vector.extract_strided_slice %18 {offsets = [8, 0], sizes = [2, 32], strides = [1, 1]} : vector<16x32xf32> to vector<2x32xf32>
    %166 = arith.addf %165, %154 : vector<2x32xf32>
    %167 = arith.negf %166 : vector<2x32xf32>
    %168 = math.exp %167 : vector<2x32xf32>
    %cst_80 = arith.constant 1.000000e+00 : f32
    %169 = vector.broadcast %cst_80 : f32 to vector<2x32xf32>
    %170 = arith.addf %169, %168 : vector<2x32xf32>
    %171 = arith.divf %169, %170 : vector<2x32xf32>
    %172 = vector.extract_strided_slice %26 {offsets = [8, 0], sizes = [2, 32], strides = [1, 1]} : vector<16x32xf32> to vector<2x32xf32>
    %173 = arith.mulf %164, %157 : vector<2x32xf32>
    %174 = arith.addf %172, %173 : vector<2x32xf32>
    %175 = math.tanh %174 : vector<2x32xf32>
    %cst_81 = arith.constant 1.000000e+00 : f32
    %176 = vector.broadcast %cst_81 : f32 to vector<2x32xf32>
    %177 = arith.subf %176, %171 : vector<2x32xf32>
    %178 = arith.mulf %177, %175 : vector<2x32xf32>
    %179 = arith.mulf %171, %151 : vector<2x32xf32>
    %180 = arith.addf %178, %179 : vector<2x32xf32>
    %c8 = arith.constant 8 : index
    %c0_82 = arith.constant 0 : index
    %181 = vector.load %arg12[%c8, %c0_82] : memref<16x32xf32, #tpu.memory_space<vmem>>, vector<2x32xf32>
    tpu.vector_store %arg12[%c8, %c0_82], %180 {strides = array<i32>} : memref<16x32xf32, #tpu.memory_space<vmem>>, vector<2x32xf32>,
    %cst_83 = arith.constant dense<0.000000e+00> : vector<2x32xf32>
    %182 = tpu.matmul %180, %28, %cst_83 {dimension_numbers = #tpu.dot_dimension_numbers<[1], [0], [0], [1], [0, 0, 1, 1], [], []>} : vector<2x32xf32>, vector<32x32xf32>, vector<2x32xf32> -> vector<2x32xf32>
    %cst_84 = arith.constant dense<0.000000e+00> : vector<2x32xf32>
    %183 = tpu.matmul %180, %30, %cst_84 {dimension_numbers = #tpu.dot_dimension_numbers<[1], [0], [0], [1], [0, 0, 1, 1], [], []>} : vector<2x32xf32>, vector<32x32xf32>, vector<2x32xf32> -> vector<2x32xf32>
    %cst_85 = arith.constant dense<0.000000e+00> : vector<2x32xf32>
    %184 = tpu.matmul %180, %32, %cst_85 {dimension_numbers = #tpu.dot_dimension_numbers<[1], [0], [0], [1], [0, 0, 1, 1], [], []>} : vector<2x32xf32>, vector<32x32xf32>, vector<2x32xf32> -> vector<2x32xf32>
    %185 = vector.broadcast %34 : vector<1x32xf32> to vector<2x32xf32>
    %186 = arith.addf %184, %185 : vector<2x32xf32>
    %187 = vector.extract_strided_slice %10 {offsets = [10, 0], sizes = [2, 32], strides = [1, 1]} : vector<16x32xf32> to vector<2x32xf32>
    %188 = arith.addf %187, %182 : vector<2x32xf32>
    %189 = arith.negf %188 : vector<2x32xf32>
    %190 = math.exp %189 : vector<2x32xf32>
    %cst_86 = arith.constant 1.000000e+00 : f32
    %191 = vector.broadcast %cst_86 : f32 to vector<2x32xf32>
    %192 = arith.addf %191, %190 : vector<2x32xf32>
    %193 = arith.divf %191, %192 : vector<2x32xf32>
    %194 = vector.extract_strided_slice %18 {offsets = [10, 0], sizes = [2, 32], strides = [1, 1]} : vector<16x32xf32> to vector<2x32xf32>
    %195 = arith.addf %194, %183 : vector<2x32xf32>
    %196 = arith.negf %195 : vector<2x32xf32>
    %197 = math.exp %196 : vector<2x32xf32>
    %cst_87 = arith.constant 1.000000e+00 : f32
    %198 = vector.broadcast %cst_87 : f32 to vector<2x32xf32>
    %199 = arith.addf %198, %197 : vector<2x32xf32>
    %200 = arith.divf %198, %199 : vector<2x32xf32>
    %201 = vector.extract_strided_slice %26 {offsets = [10, 0], sizes = [2, 32], strides = [1, 1]} : vector<16x32xf32> to vector<2x32xf32>
    %202 = arith.mulf %193, %186 : vector<2x32xf32>
    %203 = arith.addf %201, %202 : vector<2x32xf32>
    %204 = math.tanh %203 : vector<2x32xf32>
    %cst_88 = arith.constant 1.000000e+00 : f32
    %205 = vector.broadcast %cst_88 : f32 to vector<2x32xf32>
    %206 = arith.subf %205, %200 : vector<2x32xf32>
    %207 = arith.mulf %206, %204 : vector<2x32xf32>
    %208 = arith.mulf %200, %180 : vector<2x32xf32>
    %209 = arith.addf %207, %208 : vector<2x32xf32>
    %c10 = arith.constant 10 : index
    %c0_89 = arith.constant 0 : index
    %210 = vector.load %arg12[%c10, %c0_89] : memref<16x32xf32, #tpu.memory_space<vmem>>, vector<2x32xf32>
    tpu.vector_store %arg12[%c10, %c0_89], %209 {strides = array<i32>} : memref<16x32xf32, #tpu.memory_space<vmem>>, vector<2x32xf32>,
    %cst_90 = arith.constant dense<0.000000e+00> : vector<2x32xf32>
    %211 = tpu.matmul %209, %28, %cst_90 {dimension_numbers = #tpu.dot_dimension_numbers<[1], [0], [0], [1], [0, 0, 1, 1], [], []>} : vector<2x32xf32>, vector<32x32xf32>, vector<2x32xf32> -> vector<2x32xf32>
    %cst_91 = arith.constant dense<0.000000e+00> : vector<2x32xf32>
    %212 = tpu.matmul %209, %30, %cst_91 {dimension_numbers = #tpu.dot_dimension_numbers<[1], [0], [0], [1], [0, 0, 1, 1], [], []>} : vector<2x32xf32>, vector<32x32xf32>, vector<2x32xf32> -> vector<2x32xf32>
    %cst_92 = arith.constant dense<0.000000e+00> : vector<2x32xf32>
    %213 = tpu.matmul %209, %32, %cst_92 {dimension_numbers = #tpu.dot_dimension_numbers<[1], [0], [0], [1], [0, 0, 1, 1], [], []>} : vector<2x32xf32>, vector<32x32xf32>, vector<2x32xf32> -> vector<2x32xf32>
    %214 = vector.broadcast %34 : vector<1x32xf32> to vector<2x32xf32>
    %215 = arith.addf %213, %214 : vector<2x32xf32>
    %216 = vector.extract_strided_slice %10 {offsets = [12, 0], sizes = [2, 32], strides = [1, 1]} : vector<16x32xf32> to vector<2x32xf32>
    %217 = arith.addf %216, %211 : vector<2x32xf32>
    %218 = arith.negf %217 : vector<2x32xf32>
    %219 = math.exp %218 : vector<2x32xf32>
    %cst_93 = arith.constant 1.000000e+00 : f32
    %220 = vector.broadcast %cst_93 : f32 to vector<2x32xf32>
    %221 = arith.addf %220, %219 : vector<2x32xf32>
    %222 = arith.divf %220, %221 : vector<2x32xf32>
    %223 = vector.extract_strided_slice %18 {offsets = [12, 0], sizes = [2, 32], strides = [1, 1]} : vector<16x32xf32> to vector<2x32xf32>
    %224 = arith.addf %223, %212 : vector<2x32xf32>
    %225 = arith.negf %224 : vector<2x32xf32>
    %226 = math.exp %225 : vector<2x32xf32>
    %cst_94 = arith.constant 1.000000e+00 : f32
    %227 = vector.broadcast %cst_94 : f32 to vector<2x32xf32>
    %228 = arith.addf %227, %226 : vector<2x32xf32>
    %229 = arith.divf %227, %228 : vector<2x32xf32>
    %230 = vector.extract_strided_slice %26 {offsets = [12, 0], sizes = [2, 32], strides = [1, 1]} : vector<16x32xf32> to vector<2x32xf32>
    %231 = arith.mulf %222, %215 : vector<2x32xf32>
    %232 = arith.addf %230, %231 : vector<2x32xf32>
    %233 = math.tanh %232 : vector<2x32xf32>
    %cst_95 = arith.constant 1.000000e+00 : f32
    %234 = vector.broadcast %cst_95 : f32 to vector<2x32xf32>
    %235 = arith.subf %234, %229 : vector<2x32xf32>
    %236 = arith.mulf %235, %233 : vector<2x32xf32>
    %237 = arith.mulf %229, %209 : vector<2x32xf32>
    %238 = arith.addf %236, %237 : vector<2x32xf32>
    %c12 = arith.constant 12 : index
    %c0_96 = arith.constant 0 : index
    %239 = vector.load %arg12[%c12, %c0_96] : memref<16x32xf32, #tpu.memory_space<vmem>>, vector<2x32xf32>
    tpu.vector_store %arg12[%c12, %c0_96], %238 {strides = array<i32>} : memref<16x32xf32, #tpu.memory_space<vmem>>, vector<2x32xf32>,
    %cst_97 = arith.constant dense<0.000000e+00> : vector<2x32xf32>
    %240 = tpu.matmul %238, %28, %cst_97 {dimension_numbers = #tpu.dot_dimension_numbers<[1], [0], [0], [1], [0, 0, 1, 1], [], []>} : vector<2x32xf32>, vector<32x32xf32>, vector<2x32xf32> -> vector<2x32xf32>
    %cst_98 = arith.constant dense<0.000000e+00> : vector<2x32xf32>
    %241 = tpu.matmul %238, %30, %cst_98 {dimension_numbers = #tpu.dot_dimension_numbers<[1], [0], [0], [1], [0, 0, 1, 1], [], []>} : vector<2x32xf32>, vector<32x32xf32>, vector<2x32xf32> -> vector<2x32xf32>
    %cst_99 = arith.constant dense<0.000000e+00> : vector<2x32xf32>
    %242 = tpu.matmul %238, %32, %cst_99 {dimension_numbers = #tpu.dot_dimension_numbers<[1], [0], [0], [1], [0, 0, 1, 1], [], []>} : vector<2x32xf32>, vector<32x32xf32>, vector<2x32xf32> -> vector<2x32xf32>
    %243 = vector.broadcast %34 : vector<1x32xf32> to vector<2x32xf32>
    %244 = arith.addf %242, %243 : vector<2x32xf32>
    %245 = vector.extract_strided_slice %10 {offsets = [14, 0], sizes = [2, 32], strides = [1, 1]} : vector<16x32xf32> to vector<2x32xf32>
    %246 = arith.addf %245, %240 : vector<2x32xf32>
    %247 = arith.negf %246 : vector<2x32xf32>
    %248 = math.exp %247 : vector<2x32xf32>
    %cst_100 = arith.constant 1.000000e+00 : f32
    %249 = vector.broadcast %cst_100 : f32 to vector<2x32xf32>
    %250 = arith.addf %249, %248 : vector<2x32xf32>
    %251 = arith.divf %249, %250 : vector<2x32xf32>
    %252 = vector.extract_strided_slice %18 {offsets = [14, 0], sizes = [2, 32], strides = [1, 1]} : vector<16x32xf32> to vector<2x32xf32>
    %253 = arith.addf %252, %241 : vector<2x32xf32>
    %254 = arith.negf %253 : vector<2x32xf32>
    %255 = math.exp %254 : vector<2x32xf32>
    %cst_101 = arith.constant 1.000000e+00 : f32
    %256 = vector.broadcast %cst_101 : f32 to vector<2x32xf32>
    %257 = arith.addf %256, %255 : vector<2x32xf32>
    %258 = arith.divf %256, %257 : vector<2x32xf32>
    %259 = vector.extract_strided_slice %26 {offsets = [14, 0], sizes = [2, 32], strides = [1, 1]} : vector<16x32xf32> to vector<2x32xf32>
    %260 = arith.mulf %251, %244 : vector<2x32xf32>
    %261 = arith.addf %259, %260 : vector<2x32xf32>
    %262 = math.tanh %261 : vector<2x32xf32>
    %cst_102 = arith.constant 1.000000e+00 : f32
    %263 = vector.broadcast %cst_102 : f32 to vector<2x32xf32>
    %264 = arith.subf %263, %258 : vector<2x32xf32>
    %265 = arith.mulf %264, %262 : vector<2x32xf32>
    %266 = arith.mulf %258, %238 : vector<2x32xf32>
    %267 = arith.addf %265, %266 : vector<2x32xf32>
    %c14 = arith.constant 14 : index
    %c0_103 = arith.constant 0 : index
    %268 = vector.load %arg12[%c14, %c0_103] : memref<16x32xf32, #tpu.memory_space<vmem>>, vector<2x32xf32>
    tpu.vector_store %arg12[%c14, %c0_103], %267 {strides = array<i32>} : memref<16x32xf32, #tpu.memory_space<vmem>>, vector<2x32xf32>,
    %c0_104 = arith.constant 0 : index
    %c0_105 = arith.constant 0 : index
    %269 = vector.load %arg12[%c0_104, %c0_105] : memref<16x32xf32, #tpu.memory_space<vmem>>, vector<16x32xf32>
    %c1_106 = arith.constant 1 : index
    %c0_107 = arith.constant 0 : index
    %c0_108 = arith.constant 0 : index
    %c0_109 = arith.constant 0 : index
    %270 = vector.load %arg3[%c1_106, %c0_107, %c0_108, %c0_109] : memref<2x3x32x32xf32, #tpu.memory_space<vmem>>, vector<1x1x32x32xf32>
    %271 = vector.shape_cast %270 : vector<1x1x32x32xf32> to vector<32x32xf32>
    %cst_110 = arith.constant dense<0.000000e+00> : vector<16x32xf32>
    %272 = tpu.matmul %269, %271, %cst_110 {dimension_numbers = #tpu.dot_dimension_numbers<[1], [0], [0], [1], [0, 0, 1, 1], [], []>} : vector<16x32xf32>, vector<32x32xf32>, vector<16x32xf32> -> vector<16x32xf32>
    %c1_111 = arith.constant 1 : index
    %c0_112 = arith.constant 0 : index
    %c0_113 = arith.constant 0 : index
    %c0_114 = arith.constant 0 : index
    %273 = vector.load %arg5[%c1_111, %c0_112, %c0_113, %c0_114] : memref<2x3x1x32xf32, #tpu.memory_space<vmem>>, vector<1x1x1x32xf32>
    %274 = vector.shape_cast %273 : vector<1x1x1x32xf32> to vector<1x32xf32>
    %275 = vector.broadcast %274 : vector<1x32xf32> to vector<16x32xf32>
    %276 = arith.addf %272, %275 : vector<16x32xf32>
    %c1_115 = arith.constant 1 : index
    %c1_116 = arith.constant 1 : index
    %c0_117 = arith.constant 0 : index
    %c0_118 = arith.constant 0 : index
    %277 = vector.load %arg3[%c1_115, %c1_116, %c0_117, %c0_118] : memref<2x3x32x32xf32, #tpu.memory_space<vmem>>, vector<1x1x32x32xf32>
    %278 = vector.shape_cast %277 : vector<1x1x32x32xf32> to vector<32x32xf32>
    %cst_119 = arith.constant dense<0.000000e+00> : vector<16x32xf32>
    %279 = tpu.matmul %269, %278, %cst_119 {dimension_numbers = #tpu.dot_dimension_numbers<[1], [0], [0], [1], [0, 0, 1, 1], [], []>} : vector<16x32xf32>, vector<32x32xf32>, vector<16x32xf32> -> vector<16x32xf32>
    %c1_120 = arith.constant 1 : index
    %c1_121 = arith.constant 1 : index
    %c0_122 = arith.constant 0 : index
    %c0_123 = arith.constant 0 : index
    %280 = vector.load %arg5[%c1_120, %c1_121, %c0_122, %c0_123] : memref<2x3x1x32xf32, #tpu.memory_space<vmem>>, vector<1x1x1x32xf32>
    %281 = vector.shape_cast %280 : vector<1x1x1x32xf32> to vector<1x32xf32>
    %282 = vector.broadcast %281 : vector<1x32xf32> to vector<16x32xf32>
    %283 = arith.addf %279, %282 : vector<16x32xf32>
    %c1_124 = arith.constant 1 : index
    %c2_125 = arith.constant 2 : index
    %c0_126 = arith.constant 0 : index
    %c0_127 = arith.constant 0 : index
    %284 = vector.load %arg3[%c1_124, %c2_125, %c0_126, %c0_127] : memref<2x3x32x32xf32, #tpu.memory_space<vmem>>, vector<1x1x32x32xf32>
    %285 = vector.shape_cast %284 : vector<1x1x32x32xf32> to vector<32x32xf32>
    %cst_128 = arith.constant dense<0.000000e+00> : vector<16x32xf32>
    %286 = tpu.matmul %269, %285, %cst_128 {dimension_numbers = #tpu.dot_dimension_numbers<[1], [0], [0], [1], [0, 0, 1, 1], [], []>} : vector<16x32xf32>, vector<32x32xf32>, vector<16x32xf32> -> vector<16x32xf32>
    %c1_129 = arith.constant 1 : index
    %c2_130 = arith.constant 2 : index
    %c0_131 = arith.constant 0 : index
    %c0_132 = arith.constant 0 : index
    %287 = vector.load %arg5[%c1_129, %c2_130, %c0_131, %c0_132] : memref<2x3x1x32xf32, #tpu.memory_space<vmem>>, vector<1x1x1x32xf32>
    %288 = vector.shape_cast %287 : vector<1x1x1x32xf32> to vector<1x32xf32>
    %289 = vector.broadcast %288 : vector<1x32xf32> to vector<16x32xf32>
    %290 = arith.addf %286, %289 : vector<16x32xf32>
    %c1_133 = arith.constant 1 : index
    %c0_134 = arith.constant 0 : index
    %c0_135 = arith.constant 0 : index
    %c0_136 = arith.constant 0 : index
    %291 = vector.load %arg4[%c1_133, %c0_134, %c0_135, %c0_136] : memref<2x3x32x32xf32, #tpu.memory_space<vmem>>, vector<1x1x32x32xf32>
    %292 = vector.shape_cast %291 : vector<1x1x32x32xf32> to vector<32x32xf32>
    %c1_137 = arith.constant 1 : index
    %c1_138 = arith.constant 1 : index
    %c0_139 = arith.constant 0 : index
    %c0_140 = arith.constant 0 : index
    %293 = vector.load %arg4[%c1_137, %c1_138, %c0_139, %c0_140] : memref<2x3x32x32xf32, #tpu.memory_space<vmem>>, vector<1x1x32x32xf32>
    %294 = vector.shape_cast %293 : vector<1x1x32x32xf32> to vector<32x32xf32>
    %c1_141 = arith.constant 1 : index
    %c2_142 = arith.constant 2 : index
    %c0_143 = arith.constant 0 : index
    %c0_144 = arith.constant 0 : index
    %295 = vector.load %arg4[%c1_141, %c2_142, %c0_143, %c0_144] : memref<2x3x32x32xf32, #tpu.memory_space<vmem>>, vector<1x1x32x32xf32>
    %296 = vector.shape_cast %295 : vector<1x1x32x32xf32> to vector<32x32xf32>
    %c1_145 = arith.constant 1 : index
    %c0_146 = arith.constant 0 : index
    %c0_147 = arith.constant 0 : index
    %297 = vector.load %arg6[%c1_145, %c0_146, %c0_147] : memref<2x1x32xf32, #tpu.memory_space<vmem>>, vector<1x1x32xf32>
    %298 = vector.shape_cast %297 : vector<1x1x32xf32> to vector<1x32xf32>
    %c1_148 = arith.constant 1 : index
    %c0_149 = arith.constant 0 : index
    %c0_150 = arith.constant 0 : index
    %299 = vector.load %arg1[%c1_148, %c0_149, %c0_150] : memref<2x2x32xf32, #tpu.memory_space<vmem>>, vector<1x2x32xf32>
    %300 = vector.shape_cast %299 : vector<1x2x32xf32> to vector<2x32xf32>
    %cst_151 = arith.constant dense<0.000000e+00> : vector<2x32xf32>
    %301 = tpu.matmul %300, %292, %cst_151 {dimension_numbers = #tpu.dot_dimension_numbers<[1], [0], [0], [1], [0, 0, 1, 1], [], []>} : vector<2x32xf32>, vector<32x32xf32>, vector<2x32xf32> -> vector<2x32xf32>
    %cst_152 = arith.constant dense<0.000000e+00> : vector<2x32xf32>
    %302 = tpu.matmul %300, %294, %cst_152 {dimension_numbers = #tpu.dot_dimension_numbers<[1], [0], [0], [1], [0, 0, 1, 1], [], []>} : vector<2x32xf32>, vector<32x32xf32>, vector<2x32xf32> -> vector<2x32xf32>
    %cst_153 = arith.constant dense<0.000000e+00> : vector<2x32xf32>
    %303 = tpu.matmul %300, %296, %cst_153 {dimension_numbers = #tpu.dot_dimension_numbers<[1], [0], [0], [1], [0, 0, 1, 1], [], []>} : vector<2x32xf32>, vector<32x32xf32>, vector<2x32xf32> -> vector<2x32xf32>
    %304 = vector.broadcast %298 : vector<1x32xf32> to vector<2x32xf32>
    %305 = arith.addf %303, %304 : vector<2x32xf32>
    %306 = vector.extract_strided_slice %276 {offsets = [0, 0], sizes = [2, 32], strides = [1, 1]} : vector<16x32xf32> to vector<2x32xf32>
    %307 = arith.addf %306, %301 : vector<2x32xf32>
    %308 = arith.negf %307 : vector<2x32xf32>
    %309 = math.exp %308 : vector<2x32xf32>
    %cst_154 = arith.constant 1.000000e+00 : f32
    %310 = vector.broadcast %cst_154 : f32 to vector<2x32xf32>
    %311 = arith.addf %310, %309 : vector<2x32xf32>
    %312 = arith.divf %310, %311 : vector<2x32xf32>
    %313 = vector.extract_strided_slice %283 {offsets = [0, 0], sizes = [2, 32], strides = [1, 1]} : vector<16x32xf32> to vector<2x32xf32>
    %314 = arith.addf %313, %302 : vector<2x32xf32>
    %315 = arith.negf %314 : vector<2x32xf32>
    %316 = math.exp %315 : vector<2x32xf32>
    %cst_155 = arith.constant 1.000000e+00 : f32
    %317 = vector.broadcast %cst_155 : f32 to vector<2x32xf32>
    %318 = arith.addf %317, %316 : vector<2x32xf32>
    %319 = arith.divf %317, %318 : vector<2x32xf32>
    %320 = vector.extract_strided_slice %290 {offsets = [0, 0], sizes = [2, 32], strides = [1, 1]} : vector<16x32xf32> to vector<2x32xf32>
    %321 = arith.mulf %312, %305 : vector<2x32xf32>
    %322 = arith.addf %320, %321 : vector<2x32xf32>
    %323 = math.tanh %322 : vector<2x32xf32>
    %cst_156 = arith.constant 1.000000e+00 : f32
    %324 = vector.broadcast %cst_156 : f32 to vector<2x32xf32>
    %325 = arith.subf %324, %319 : vector<2x32xf32>
    %326 = arith.mulf %325, %323 : vector<2x32xf32>
    %327 = arith.mulf %319, %300 : vector<2x32xf32>
    %328 = arith.addf %326, %327 : vector<2x32xf32>
    %c1_i32 = arith.constant 1 : i32
    %329 = vector.broadcast %c1_i32 : i32 to vector<2x1xi32>
    %330 = arith.cmpi eq, %0, %329 : vector<2x1xi32>
    %331 = vector.shape_cast %330 : vector<2x1xi1> to vector<2x1xi1>
    %332 = vector.broadcast %331 : vector<2x1xi1> to vector<2x32xi1>
    %333 = arith.select %332, %328, %1 : vector<2x32xi1>, vector<2x32xf32>
    %cst_157 = arith.constant dense<0.000000e+00> : vector<2x32xf32>
    %334 = tpu.matmul %328, %292, %cst_157 {dimension_numbers = #tpu.dot_dimension_numbers<[1], [0], [0], [1], [0, 0, 1, 1], [], []>} : vector<2x32xf32>, vector<32x32xf32>, vector<2x32xf32> -> vector<2x32xf32>
    %cst_158 = arith.constant dense<0.000000e+00> : vector<2x32xf32>
    %335 = tpu.matmul %328, %294, %cst_158 {dimension_numbers = #tpu.dot_dimension_numbers<[1], [0], [0], [1], [0, 0, 1, 1], [], []>} : vector<2x32xf32>, vector<32x32xf32>, vector<2x32xf32> -> vector<2x32xf32>
    %cst_159 = arith.constant dense<0.000000e+00> : vector<2x32xf32>
    %336 = tpu.matmul %328, %296, %cst_159 {dimension_numbers = #tpu.dot_dimension_numbers<[1], [0], [0], [1], [0, 0, 1, 1], [], []>} : vector<2x32xf32>, vector<32x32xf32>, vector<2x32xf32> -> vector<2x32xf32>
    %337 = vector.broadcast %298 : vector<1x32xf32> to vector<2x32xf32>
    %338 = arith.addf %336, %337 : vector<2x32xf32>
    %339 = vector.extract_strided_slice %276 {offsets = [2, 0], sizes = [2, 32], strides = [1, 1]} : vector<16x32xf32> to vector<2x32xf32>
    %340 = arith.addf %339, %334 : vector<2x32xf32>
    %341 = arith.negf %340 : vector<2x32xf32>
    %342 = math.exp %341 : vector<2x32xf32>
    %cst_160 = arith.constant 1.000000e+00 : f32
    %343 = vector.broadcast %cst_160 : f32 to vector<2x32xf32>
    %344 = arith.addf %343, %342 : vector<2x32xf32>
    %345 = arith.divf %343, %344 : vector<2x32xf32>
    %346 = vector.extract_strided_slice %283 {offsets = [2, 0], sizes = [2, 32], strides = [1, 1]} : vector<16x32xf32> to vector<2x32xf32>
    %347 = arith.addf %346, %335 : vector<2x32xf32>
    %348 = arith.negf %347 : vector<2x32xf32>
    %349 = math.exp %348 : vector<2x32xf32>
    %cst_161 = arith.constant 1.000000e+00 : f32
    %350 = vector.broadcast %cst_161 : f32 to vector<2x32xf32>
    %351 = arith.addf %350, %349 : vector<2x32xf32>
    %352 = arith.divf %350, %351 : vector<2x32xf32>
    %353 = vector.extract_strided_slice %290 {offsets = [2, 0], sizes = [2, 32], strides = [1, 1]} : vector<16x32xf32> to vector<2x32xf32>
    %354 = arith.mulf %345, %338 : vector<2x32xf32>
    %355 = arith.addf %353, %354 : vector<2x32xf32>
    %356 = math.tanh %355 : vector<2x32xf32>
    %cst_162 = arith.constant 1.000000e+00 : f32
    %357 = vector.broadcast %cst_162 : f32 to vector<2x32xf32>
    %358 = arith.subf %357, %352 : vector<2x32xf32>
    %359 = arith.mulf %358, %356 : vector<2x32xf32>
    %360 = arith.mulf %352, %328 : vector<2x32xf32>
    %361 = arith.addf %359, %360 : vector<2x32xf32>
    %c2_i32 = arith.constant 2 : i32
    %362 = vector.broadcast %c2_i32 : i32 to vector<2x1xi32>
    %363 = arith.cmpi eq, %0, %362 : vector<2x1xi32>
    %364 = vector.shape_cast %363 : vector<2x1xi1> to vector<2x1xi1>
    %365 = vector.broadcast %364 : vector<2x1xi1> to vector<2x32xi1>
    %366 = arith.select %365, %361, %333 : vector<2x32xi1>, vector<2x32xf32>
    %cst_163 = arith.constant dense<0.000000e+00> : vector<2x32xf32>
    %367 = tpu.matmul %361, %292, %cst_163 {dimension_numbers = #tpu.dot_dimension_numbers<[1], [0], [0], [1], [0, 0, 1, 1], [], []>} : vector<2x32xf32>, vector<32x32xf32>, vector<2x32xf32> -> vector<2x32xf32>
    %cst_164 = arith.constant dense<0.000000e+00> : vector<2x32xf32>
    %368 = tpu.matmul %361, %294, %cst_164 {dimension_numbers = #tpu.dot_dimension_numbers<[1], [0], [0], [1], [0, 0, 1, 1], [], []>} : vector<2x32xf32>, vector<32x32xf32>, vector<2x32xf32> -> vector<2x32xf32>
    %cst_165 = arith.constant dense<0.000000e+00> : vector<2x32xf32>
    %369 = tpu.matmul %361, %296, %cst_165 {dimension_numbers = #tpu.dot_dimension_numbers<[1], [0], [0], [1], [0, 0, 1, 1], [], []>} : vector<2x32xf32>, vector<32x32xf32>, vector<2x32xf32> -> vector<2x32xf32>
    %370 = vector.broadcast %298 : vector<1x32xf32> to vector<2x32xf32>
    %371 = arith.addf %369, %370 : vector<2x32xf32>
    %372 = vector.extract_strided_slice %276 {offsets = [4, 0], sizes = [2, 32], strides = [1, 1]} : vector<16x32xf32> to vector<2x32xf32>
    %373 = arith.addf %372, %367 : vector<2x32xf32>
    %374 = arith.negf %373 : vector<2x32xf32>
    %375 = math.exp %374 : vector<2x32xf32>
    %cst_166 = arith.constant 1.000000e+00 : f32
    %376 = vector.broadcast %cst_166 : f32 to vector<2x32xf32>
    %377 = arith.addf %376, %375 : vector<2x32xf32>
    %378 = arith.divf %376, %377 : vector<2x32xf32>
    %379 = vector.extract_strided_slice %283 {offsets = [4, 0], sizes = [2, 32], strides = [1, 1]} : vector<16x32xf32> to vector<2x32xf32>
    %380 = arith.addf %379, %368 : vector<2x32xf32>
    %381 = arith.negf %380 : vector<2x32xf32>
    %382 = math.exp %381 : vector<2x32xf32>
    %cst_167 = arith.constant 1.000000e+00 : f32
    %383 = vector.broadcast %cst_167 : f32 to vector<2x32xf32>
    %384 = arith.addf %383, %382 : vector<2x32xf32>
    %385 = arith.divf %383, %384 : vector<2x32xf32>
    %386 = vector.extract_strided_slice %290 {offsets = [4, 0], sizes = [2, 32], strides = [1, 1]} : vector<16x32xf32> to vector<2x32xf32>
    %387 = arith.mulf %378, %371 : vector<2x32xf32>
    %388 = arith.addf %386, %387 : vector<2x32xf32>
    %389 = math.tanh %388 : vector<2x32xf32>
    %cst_168 = arith.constant 1.000000e+00 : f32
    %390 = vector.broadcast %cst_168 : f32 to vector<2x32xf32>
    %391 = arith.subf %390, %385 : vector<2x32xf32>
    %392 = arith.mulf %391, %389 : vector<2x32xf32>
    %393 = arith.mulf %385, %361 : vector<2x32xf32>
    %394 = arith.addf %392, %393 : vector<2x32xf32>
    %c3_i32 = arith.constant 3 : i32
    %395 = vector.broadcast %c3_i32 : i32 to vector<2x1xi32>
    %396 = arith.cmpi eq, %0, %395 : vector<2x1xi32>
    %397 = vector.shape_cast %396 : vector<2x1xi1> to vector<2x1xi1>
    %398 = vector.broadcast %397 : vector<2x1xi1> to vector<2x32xi1>
    %399 = arith.select %398, %394, %366 : vector<2x32xi1>, vector<2x32xf32>
    %cst_169 = arith.constant dense<0.000000e+00> : vector<2x32xf32>
    %400 = tpu.matmul %394, %292, %cst_169 {dimension_numbers = #tpu.dot_dimension_numbers<[1], [0], [0], [1], [0, 0, 1, 1], [], []>} : vector<2x32xf32>, vector<32x32xf32>, vector<2x32xf32> -> vector<2x32xf32>
    %cst_170 = arith.constant dense<0.000000e+00> : vector<2x32xf32>
    %401 = tpu.matmul %394, %294, %cst_170 {dimension_numbers = #tpu.dot_dimension_numbers<[1], [0], [0], [1], [0, 0, 1, 1], [], []>} : vector<2x32xf32>, vector<32x32xf32>, vector<2x32xf32> -> vector<2x32xf32>
    %cst_171 = arith.constant dense<0.000000e+00> : vector<2x32xf32>
    %402 = tpu.matmul %394, %296, %cst_171 {dimension_numbers = #tpu.dot_dimension_numbers<[1], [0], [0], [1], [0, 0, 1, 1], [], []>} : vector<2x32xf32>, vector<32x32xf32>, vector<2x32xf32> -> vector<2x32xf32>
    %403 = vector.broadcast %298 : vector<1x32xf32> to vector<2x32xf32>
    %404 = arith.addf %402, %403 : vector<2x32xf32>
    %405 = vector.extract_strided_slice %276 {offsets = [6, 0], sizes = [2, 32], strides = [1, 1]} : vector<16x32xf32> to vector<2x32xf32>
    %406 = arith.addf %405, %400 : vector<2x32xf32>
    %407 = arith.negf %406 : vector<2x32xf32>
    %408 = math.exp %407 : vector<2x32xf32>
    %cst_172 = arith.constant 1.000000e+00 : f32
    %409 = vector.broadcast %cst_172 : f32 to vector<2x32xf32>
    %410 = arith.addf %409, %408 : vector<2x32xf32>
    %411 = arith.divf %409, %410 : vector<2x32xf32>
    %412 = vector.extract_strided_slice %283 {offsets = [6, 0], sizes = [2, 32], strides = [1, 1]} : vector<16x32xf32> to vector<2x32xf32>
    %413 = arith.addf %412, %401 : vector<2x32xf32>
    %414 = arith.negf %413 : vector<2x32xf32>
    %415 = math.exp %414 : vector<2x32xf32>
    %cst_173 = arith.constant 1.000000e+00 : f32
    %416 = vector.broadcast %cst_173 : f32 to vector<2x32xf32>
    %417 = arith.addf %416, %415 : vector<2x32xf32>
    %418 = arith.divf %416, %417 : vector<2x32xf32>
    %419 = vector.extract_strided_slice %290 {offsets = [6, 0], sizes = [2, 32], strides = [1, 1]} : vector<16x32xf32> to vector<2x32xf32>
    %420 = arith.mulf %411, %404 : vector<2x32xf32>
    %421 = arith.addf %419, %420 : vector<2x32xf32>
    %422 = math.tanh %421 : vector<2x32xf32>
    %cst_174 = arith.constant 1.000000e+00 : f32
    %423 = vector.broadcast %cst_174 : f32 to vector<2x32xf32>
    %424 = arith.subf %423, %418 : vector<2x32xf32>
    %425 = arith.mulf %424, %422 : vector<2x32xf32>
    %426 = arith.mulf %418, %394 : vector<2x32xf32>
    %427 = arith.addf %425, %426 : vector<2x32xf32>
    %c4_i32 = arith.constant 4 : i32
    %428 = vector.broadcast %c4_i32 : i32 to vector<2x1xi32>
    %429 = arith.cmpi eq, %0, %428 : vector<2x1xi32>
    %430 = vector.shape_cast %429 : vector<2x1xi1> to vector<2x1xi1>
    %431 = vector.broadcast %430 : vector<2x1xi1> to vector<2x32xi1>
    %432 = arith.select %431, %427, %399 : vector<2x32xi1>, vector<2x32xf32>
    %cst_175 = arith.constant dense<0.000000e+00> : vector<2x32xf32>
    %433 = tpu.matmul %427, %292, %cst_175 {dimension_numbers = #tpu.dot_dimension_numbers<[1], [0], [0], [1], [0, 0, 1, 1], [], []>} : vector<2x32xf32>, vector<32x32xf32>, vector<2x32xf32> -> vector<2x32xf32>
    %cst_176 = arith.constant dense<0.000000e+00> : vector<2x32xf32>
    %434 = tpu.matmul %427, %294, %cst_176 {dimension_numbers = #tpu.dot_dimension_numbers<[1], [0], [0], [1], [0, 0, 1, 1], [], []>} : vector<2x32xf32>, vector<32x32xf32>, vector<2x32xf32> -> vector<2x32xf32>
    %cst_177 = arith.constant dense<0.000000e+00> : vector<2x32xf32>
    %435 = tpu.matmul %427, %296, %cst_177 {dimension_numbers = #tpu.dot_dimension_numbers<[1], [0], [0], [1], [0, 0, 1, 1], [], []>} : vector<2x32xf32>, vector<32x32xf32>, vector<2x32xf32> -> vector<2x32xf32>
    %436 = vector.broadcast %298 : vector<1x32xf32> to vector<2x32xf32>
    %437 = arith.addf %435, %436 : vector<2x32xf32>
    %438 = vector.extract_strided_slice %276 {offsets = [8, 0], sizes = [2, 32], strides = [1, 1]} : vector<16x32xf32> to vector<2x32xf32>
    %439 = arith.addf %438, %433 : vector<2x32xf32>
    %440 = arith.negf %439 : vector<2x32xf32>
    %441 = math.exp %440 : vector<2x32xf32>
    %cst_178 = arith.constant 1.000000e+00 : f32
    %442 = vector.broadcast %cst_178 : f32 to vector<2x32xf32>
    %443 = arith.addf %442, %441 : vector<2x32xf32>
    %444 = arith.divf %442, %443 : vector<2x32xf32>
    %445 = vector.extract_strided_slice %283 {offsets = [8, 0], sizes = [2, 32], strides = [1, 1]} : vector<16x32xf32> to vector<2x32xf32>
    %446 = arith.addf %445, %434 : vector<2x32xf32>
    %447 = arith.negf %446 : vector<2x32xf32>
    %448 = math.exp %447 : vector<2x32xf32>
    %cst_179 = arith.constant 1.000000e+00 : f32
    %449 = vector.broadcast %cst_179 : f32 to vector<2x32xf32>
    %450 = arith.addf %449, %448 : vector<2x32xf32>
    %451 = arith.divf %449, %450 : vector<2x32xf32>
    %452 = vector.extract_strided_slice %290 {offsets = [8, 0], sizes = [2, 32], strides = [1, 1]} : vector<16x32xf32> to vector<2x32xf32>
    %453 = arith.mulf %444, %437 : vector<2x32xf32>
    %454 = arith.addf %452, %453 : vector<2x32xf32>
    %455 = math.tanh %454 : vector<2x32xf32>
    %cst_180 = arith.constant 1.000000e+00 : f32
    %456 = vector.broadcast %cst_180 : f32 to vector<2x32xf32>
    %457 = arith.subf %456, %451 : vector<2x32xf32>
    %458 = arith.mulf %457, %455 : vector<2x32xf32>
    %459 = arith.mulf %451, %427 : vector<2x32xf32>
    %460 = arith.addf %458, %459 : vector<2x32xf32>
    %c5_i32 = arith.constant 5 : i32
    %461 = vector.broadcast %c5_i32 : i32 to vector<2x1xi32>
    %462 = arith.cmpi eq, %0, %461 : vector<2x1xi32>
    %463 = vector.shape_cast %462 : vector<2x1xi1> to vector<2x1xi1>
    %464 = vector.broadcast %463 : vector<2x1xi1> to vector<2x32xi1>
    %465 = arith.select %464, %460, %432 : vector<2x32xi1>, vector<2x32xf32>
    %cst_181 = arith.constant dense<0.000000e+00> : vector<2x32xf32>
    %466 = tpu.matmul %460, %292, %cst_181 {dimension_numbers = #tpu.dot_dimension_numbers<[1], [0], [0], [1], [0, 0, 1, 1], [], []>} : vector<2x32xf32>, vector<32x32xf32>, vector<2x32xf32> -> vector<2x32xf32>
    %cst_182 = arith.constant dense<0.000000e+00> : vector<2x32xf32>
    %467 = tpu.matmul %460, %294, %cst_182 {dimension_numbers = #tpu.dot_dimension_numbers<[1], [0], [0], [1], [0, 0, 1, 1], [], []>} : vector<2x32xf32>, vector<32x32xf32>, vector<2x32xf32> -> vector<2x32xf32>
    %cst_183 = arith.constant dense<0.000000e+00> : vector<2x32xf32>
    %468 = tpu.matmul %460, %296, %cst_183 {dimension_numbers = #tpu.dot_dimension_numbers<[1], [0], [0], [1], [0, 0, 1, 1], [], []>} : vector<2x32xf32>, vector<32x32xf32>, vector<2x32xf32> -> vector<2x32xf32>
    %469 = vector.broadcast %298 : vector<1x32xf32> to vector<2x32xf32>
    %470 = arith.addf %468, %469 : vector<2x32xf32>
    %471 = vector.extract_strided_slice %276 {offsets = [10, 0], sizes = [2, 32], strides = [1, 1]} : vector<16x32xf32> to vector<2x32xf32>
    %472 = arith.addf %471, %466 : vector<2x32xf32>
    %473 = arith.negf %472 : vector<2x32xf32>
    %474 = math.exp %473 : vector<2x32xf32>
    %cst_184 = arith.constant 1.000000e+00 : f32
    %475 = vector.broadcast %cst_184 : f32 to vector<2x32xf32>
    %476 = arith.addf %475, %474 : vector<2x32xf32>
    %477 = arith.divf %475, %476 : vector<2x32xf32>
    %478 = vector.extract_strided_slice %283 {offsets = [10, 0], sizes = [2, 32], strides = [1, 1]} : vector<16x32xf32> to vector<2x32xf32>
    %479 = arith.addf %478, %467 : vector<2x32xf32>
    %480 = arith.negf %479 : vector<2x32xf32>
    %481 = math.exp %480 : vector<2x32xf32>
    %cst_185 = arith.constant 1.000000e+00 : f32
    %482 = vector.broadcast %cst_185 : f32 to vector<2x32xf32>
    %483 = arith.addf %482, %481 : vector<2x32xf32>
    %484 = arith.divf %482, %483 : vector<2x32xf32>
    %485 = vector.extract_strided_slice %290 {offsets = [10, 0], sizes = [2, 32], strides = [1, 1]} : vector<16x32xf32> to vector<2x32xf32>
    %486 = arith.mulf %477, %470 : vector<2x32xf32>
    %487 = arith.addf %485, %486 : vector<2x32xf32>
    %488 = math.tanh %487 : vector<2x32xf32>
    %cst_186 = arith.constant 1.000000e+00 : f32
    %489 = vector.broadcast %cst_186 : f32 to vector<2x32xf32>
    %490 = arith.subf %489, %484 : vector<2x32xf32>
    %491 = arith.mulf %490, %488 : vector<2x32xf32>
    %492 = arith.mulf %484, %460 : vector<2x32xf32>
    %493 = arith.addf %491, %492 : vector<2x32xf32>
    %c6_i32 = arith.constant 6 : i32
    %494 = vector.broadcast %c6_i32 : i32 to vector<2x1xi32>
    %495 = arith.cmpi eq, %0, %494 : vector<2x1xi32>
    %496 = vector.shape_cast %495 : vector<2x1xi1> to vector<2x1xi1>
    %497 = vector.broadcast %496 : vector<2x1xi1> to vector<2x32xi1>
    %498 = arith.select %497, %493, %465 : vector<2x32xi1>, vector<2x32xf32>
    %cst_187 = arith.constant dense<0.000000e+00> : vector<2x32xf32>
    %499 = tpu.matmul %493, %292, %cst_187 {dimension_numbers = #tpu.dot_dimension_numbers<[1], [0], [0], [1], [0, 0, 1, 1], [], []>} : vector<2x32xf32>, vector<32x32xf32>, vector<2x32xf32> -> vector<2x32xf32>
    %cst_188 = arith.constant dense<0.000000e+00> : vector<2x32xf32>
    %500 = tpu.matmul %493, %294, %cst_188 {dimension_numbers = #tpu.dot_dimension_numbers<[1], [0], [0], [1], [0, 0, 1, 1], [], []>} : vector<2x32xf32>, vector<32x32xf32>, vector<2x32xf32> -> vector<2x32xf32>
    %cst_189 = arith.constant dense<0.000000e+00> : vector<2x32xf32>
    %501 = tpu.matmul %493, %296, %cst_189 {dimension_numbers = #tpu.dot_dimension_numbers<[1], [0], [0], [1], [0, 0, 1, 1], [], []>} : vector<2x32xf32>, vector<32x32xf32>, vector<2x32xf32> -> vector<2x32xf32>
    %502 = vector.broadcast %298 : vector<1x32xf32> to vector<2x32xf32>
    %503 = arith.addf %501, %502 : vector<2x32xf32>
    %504 = vector.extract_strided_slice %276 {offsets = [12, 0], sizes = [2, 32], strides = [1, 1]} : vector<16x32xf32> to vector<2x32xf32>
    %505 = arith.addf %504, %499 : vector<2x32xf32>
    %506 = arith.negf %505 : vector<2x32xf32>
    %507 = math.exp %506 : vector<2x32xf32>
    %cst_190 = arith.constant 1.000000e+00 : f32
    %508 = vector.broadcast %cst_190 : f32 to vector<2x32xf32>
    %509 = arith.addf %508, %507 : vector<2x32xf32>
    %510 = arith.divf %508, %509 : vector<2x32xf32>
    %511 = vector.extract_strided_slice %283 {offsets = [12, 0], sizes = [2, 32], strides = [1, 1]} : vector<16x32xf32> to vector<2x32xf32>
    %512 = arith.addf %511, %500 : vector<2x32xf32>
    %513 = arith.negf %512 : vector<2x32xf32>
    %514 = math.exp %513 : vector<2x32xf32>
    %cst_191 = arith.constant 1.000000e+00 : f32
    %515 = vector.broadcast %cst_191 : f32 to vector<2x32xf32>
    %516 = arith.addf %515, %514 : vector<2x32xf32>
    %517 = arith.divf %515, %516 : vector<2x32xf32>
    %518 = vector.extract_strided_slice %290 {offsets = [12, 0], sizes = [2, 32], strides = [1, 1]} : vector<16x32xf32> to vector<2x32xf32>
    %519 = arith.mulf %510, %503 : vector<2x32xf32>
    %520 = arith.addf %518, %519 : vector<2x32xf32>
    %521 = math.tanh %520 : vector<2x32xf32>
    %cst_192 = arith.constant 1.000000e+00 : f32
    %522 = vector.broadcast %cst_192 : f32 to vector<2x32xf32>
    %523 = arith.subf %522, %517 : vector<2x32xf32>
    %524 = arith.mulf %523, %521 : vector<2x32xf32>
    %525 = arith.mulf %517, %493 : vector<2x32xf32>
    %526 = arith.addf %524, %525 : vector<2x32xf32>
    %c7_i32 = arith.constant 7 : i32
    %527 = vector.broadcast %c7_i32 : i32 to vector<2x1xi32>
    %528 = arith.cmpi eq, %0, %527 : vector<2x1xi32>
    %529 = vector.shape_cast %528 : vector<2x1xi1> to vector<2x1xi1>
    %530 = vector.broadcast %529 : vector<2x1xi1> to vector<2x32xi1>
    %531 = arith.select %530, %526, %498 : vector<2x32xi1>, vector<2x32xf32>
    %cst_193 = arith.constant dense<0.000000e+00> : vector<2x32xf32>
    %532 = tpu.matmul %526, %292, %cst_193 {dimension_numbers = #tpu.dot_dimension_numbers<[1], [0], [0], [1], [0, 0, 1, 1], [], []>} : vector<2x32xf32>, vector<32x32xf32>, vector<2x32xf32> -> vector<2x32xf32>
    %cst_194 = arith.constant dense<0.000000e+00> : vector<2x32xf32>
    %533 = tpu.matmul %526, %294, %cst_194 {dimension_numbers = #tpu.dot_dimension_numbers<[1], [0], [0], [1], [0, 0, 1, 1], [], []>} : vector<2x32xf32>, vector<32x32xf32>, vector<2x32xf32> -> vector<2x32xf32>
    %cst_195 = arith.constant dense<0.000000e+00> : vector<2x32xf32>
    %534 = tpu.matmul %526, %296, %cst_195 {dimension_numbers = #tpu.dot_dimension_numbers<[1], [0], [0], [1], [0, 0, 1, 1], [], []>} : vector<2x32xf32>, vector<32x32xf32>, vector<2x32xf32> -> vector<2x32xf32>
    %535 = vector.broadcast %298 : vector<1x32xf32> to vector<2x32xf32>
    %536 = arith.addf %534, %535 : vector<2x32xf32>
    %537 = vector.extract_strided_slice %276 {offsets = [14, 0], sizes = [2, 32], strides = [1, 1]} : vector<16x32xf32> to vector<2x32xf32>
    %538 = arith.addf %537, %532 : vector<2x32xf32>
    %539 = arith.negf %538 : vector<2x32xf32>
    %540 = math.exp %539 : vector<2x32xf32>
    %cst_196 = arith.constant 1.000000e+00 : f32
    %541 = vector.broadcast %cst_196 : f32 to vector<2x32xf32>
    %542 = arith.addf %541, %540 : vector<2x32xf32>
    %543 = arith.divf %541, %542 : vector<2x32xf32>
    %544 = vector.extract_strided_slice %283 {offsets = [14, 0], sizes = [2, 32], strides = [1, 1]} : vector<16x32xf32> to vector<2x32xf32>
    %545 = arith.addf %544, %533 : vector<2x32xf32>
    %546 = arith.negf %545 : vector<2x32xf32>
    %547 = math.exp %546 : vector<2x32xf32>
    %cst_197 = arith.constant 1.000000e+00 : f32
    %548 = vector.broadcast %cst_197 : f32 to vector<2x32xf32>
    %549 = arith.addf %548, %547 : vector<2x32xf32>
    %550 = arith.divf %548, %549 : vector<2x32xf32>
    %551 = vector.extract_strided_slice %290 {offsets = [14, 0], sizes = [2, 32], strides = [1, 1]} : vector<16x32xf32> to vector<2x32xf32>
    %552 = arith.mulf %543, %536 : vector<2x32xf32>
    %553 = arith.addf %551, %552 : vector<2x32xf32>
    %554 = math.tanh %553 : vector<2x32xf32>
    %cst_198 = arith.constant 1.000000e+00 : f32
    %555 = vector.broadcast %cst_198 : f32 to vector<2x32xf32>
    %556 = arith.subf %555, %550 : vector<2x32xf32>
    %557 = arith.mulf %556, %554 : vector<2x32xf32>
    %558 = arith.mulf %550, %526 : vector<2x32xf32>
    %559 = arith.addf %557, %558 : vector<2x32xf32>
    %c8_i32 = arith.constant 8 : i32
    %560 = vector.broadcast %c8_i32 : i32 to vector<2x1xi32>
    %561 = arith.cmpi eq, %0, %560 : vector<2x1xi32>
    %562 = vector.shape_cast %561 : vector<2x1xi1> to vector<2x1xi1>
    %563 = vector.broadcast %562 : vector<2x1xi1> to vector<2x32xi1>
    %564 = arith.select %563, %559, %531 : vector<2x32xi1>, vector<2x32xf32>
    %c0_199 = arith.constant 0 : index
    %c0_200 = arith.constant 0 : index
    %565 = vector.load %arg7[%c0_199, %c0_200] : memref<32x32xf32, #tpu.memory_space<vmem>>, vector<32x32xf32>
    %cst_201 = arith.constant dense<0.000000e+00> : vector<2x32xf32>
    %566 = tpu.matmul %564, %565, %cst_201 {dimension_numbers = #tpu.dot_dimension_numbers<[1], [0], [0], [1], [0, 0, 1, 1], [], []>} : vector<2x32xf32>, vector<32x32xf32>, vector<2x32xf32> -> vector<2x32xf32>
    %c0_202 = arith.constant 0 : index
    %c0_203 = arith.constant 0 : index
    %567 = vector.load %arg8[%c0_202, %c0_203] : memref<1x32xf32, #tpu.memory_space<vmem>>, vector<1x32xf32>
    %568 = vector.broadcast %567 : vector<1x32xf32> to vector<2x32xf32>
    %569 = arith.addf %566, %568 : vector<2x32xf32>
    %570 = math.tanh %569 : vector<2x32xf32>
    %c0_204 = arith.constant 0 : index
    %c0_205 = arith.constant 0 : index
    %571 = vector.load %arg9[%c0_204, %c0_205] : memref<32x12xf32, #tpu.memory_space<vmem>>, vector<32x12xf32>
    %cst_206 = arith.constant dense<0.000000e+00> : vector<2x12xf32>
    %572 = tpu.matmul %570, %571, %cst_206 {dimension_numbers = #tpu.dot_dimension_numbers<[1], [0], [0], [1], [0, 0, 1, 1], [], []>} : vector<2x32xf32>, vector<32x12xf32>, vector<2x12xf32> -> vector<2x12xf32>
    %c0_207 = arith.constant 0 : index
    %c0_208 = arith.constant 0 : index
    %573 = vector.load %arg10[%c0_207, %c0_208] : memref<1x12xf32, #tpu.memory_space<vmem>>, vector<1x12xf32>
    %574 = vector.broadcast %573 : vector<1x12xf32> to vector<2x12xf32>
    %575 = arith.addf %572, %574 : vector<2x12xf32>
    %c0_209 = arith.constant 0 : index
    %c0_210 = arith.constant 0 : index
    %576 = vector.load %arg11[%c0_209, %c0_210] : memref<2x12xf32, #tpu.memory_space<vmem>>, vector<2x12xf32>
    tpu.vector_store %arg11[%c0_209, %c0_210], %575 {strides = array<i32>} : memref<2x12xf32, #tpu.memory_space<vmem>>, vector<2x12xf32>,
    return
  }
}

</mosaic_0001>

<llo_original>
// kernel: tpu_custom_call.1
$region0: #{tpu_custom_call.1}
  #allocation0 [shape = 'u32[]', space=smem, size = 0x4, offset = 0x4, fixed_abs, tag = 'smem constant byte address 0x4 - core index']
  #allocation1 [shape = 'u32[72,128]{1,0:T(1,128)}', space=vmem, size = 0x9000, scoped, tag = 'internal scratch']
  #allocation2 [shape = 'f32[16,32]{1,0:T(8,128)}', space=vmem, size = 0x2000, scoped, tag = 'scratch operand']
  %s0 = inlined_call_operand.vmem [shape: f32[16,16], index: 0, kind: input, shape index: {}]
  %s1 = inlined_call_operand.hbm [shape: f32[2,2,32], index: 1, kind: input, shape index: {}]
  %s2 = inlined_call_operand.vmem [shape: s32[2,1], index: 2, kind: input, shape index: {}]
  %s3 = inlined_call_operand.hbm [shape: f32[2,3,32,32], index: 3, kind: input, shape index: {}]
  %s4 = inlined_call_operand.hbm [shape: f32[2,3,32,32], index: 4, kind: input, shape index: {}]
  %s5 = inlined_call_operand.hbm [shape: f32[2,3,1,32], index: 5, kind: input, shape index: {}]
  %s6 = inlined_call_operand.vmem [shape: f32[2,1,32], index: 6, kind: input, shape index: {}]
  %s7 = inlined_call_operand.vmem [shape: f32[32,32], index: 7, kind: input, shape index: {}]
  %s8 = inlined_call_operand.vmem [shape: f32[1,32], index: 8, kind: input, shape index: {}]
  %s9 = inlined_call_operand.vmem [shape: f32[32,12], index: 9, kind: input, shape index: {}]
  %s10 = inlined_call_operand.vmem [shape: f32[1,12], index: 10, kind: input, shape index: {}]
  %s11 = inlined_call_operand.hbm [shape: f32[2,12], index: 11, kind: output, shape index: {}]
  %s12 = sld [smem:[#allocation0]]
  $region70: #{tpu_custom_call.1} parent=0
    _
  %s14 = ssub.s32 1, %s12
  %s15 = scalar_select 0, %s14, %s12
  $region1: #{tpu_custom_call.1} parent=0
    #allocation3 [shape = 'u8[2048]{0}', space=vmem, size = 0x800, scoped, tag = 'input window, operand 1, single buffered']
    #allocation4 [shape = 's32[1]{0}', space=sflag, size = 0x4, scoped, tag = 'scoped memory for tpu_custom_call.1']
    #allocation5 [shape = 's32[1]{0}', space=sflag, size = 0x4, scoped, tag = 'scoped memory for tpu_custom_call.1']
    #allocation6 [shape = 'u8[98304]{0}', space=vmem, size = 0x18000, scoped, tag = 'input window, operand 3, single buffered']
    #allocation7 [shape = 's32[1]{0}', space=sflag, size = 0x4, scoped, tag = 'scoped memory for tpu_custom_call.1']
    #allocation8 [shape = 'u8[98304]{0}', space=vmem, size = 0x18000, scoped, tag = 'input window, operand 4, single buffered']
    #allocation9 [shape = 'u8[3072]{0}', space=vmem, size = 0xc00, scoped, tag = 'input window, operand 5, single buffered']
    #allocation10 [shape = 's32[1]{0}', space=sflag, size = 0x4, scoped, tag = 'scoped memory for tpu_custom_call.1']
    #allocation11 [shape = 'u8[1024]{0}', space=vmem, size = 0x400, scoped, tag = 'output window, operand 0, single buffered']
    %16 = vsyncpa [#allocation4], 0
    %17 = vsyncpa [#allocation7], 0
    %18 = vsyncpa [#allocation10], 0
    %19 = vsyncpa [#allocation5], 0
    // Predicated region
    $region2: #{tpu_custom_call.1} parent=1 // pred_check
      _
    $region3: #{tpu_custom_call.1} parent=1 // pred_check_branch
      %21 = sbr.rel (0) target = $region5
    $region4: #{tpu_custom_call.1} parent=1 // pred_region
      _
    $region5: #{tpu_custom_call.1} parent=1 // pred_fallthru
      _
    // Predicated region
    $region6: #{tpu_custom_call.1} parent=1 // pred_check
      _
    $region7: #{tpu_custom_call.1} parent=1 // pred_check_branch
      %23 = sbr.rel (0) target = $region9
    $region8: #{tpu_custom_call.1} parent=1 // pred_region
      %25 = vsyncadd [#allocation4], 0
      %s26 = sshll.u32 %s1, 4
      %s27 = int_to_ptr.hbm [resolvable:$true] %s26
      %s28 = sshll.u32 [#allocation3], 4
      %s29 = int_to_ptr.vmem [resolvable:$true] %s28
      %34 = dma.hbm_to_vmem [thread:$0]  %s27, 64, %s29, [#allocation4], 32, 32, 2
    $region9: #{tpu_custom_call.1} parent=1 // pred_fallthru
      _
    // Predicated region
    $region10: #{tpu_custom_call.1} parent=1 // pred_check
      _
    $region11: #{tpu_custom_call.1} parent=1 // pred_check_branch
      %36 = sbr.rel (0) target = $region13
    $region12: #{tpu_custom_call.1} parent=1 // pred_region
      _
    $region13: #{tpu_custom_call.1} parent=1 // pred_fallthru
      _
    // Predicated region
    $region14: #{tpu_custom_call.1} parent=1 // pred_check
      _
    $region15: #{tpu_custom_call.1} parent=1 // pred_check_branch
      %38 = sbr.rel (0) target = $region17
    $region16: #{tpu_custom_call.1} parent=1 // pred_region
      %40 = vsyncadd [#allocation7], 0
      %s41 = sshll.u32 %s3, 4
      %s42 = int_to_ptr.hbm [resolvable:$true] %s41
      %s43 = sshll.u32 [#allocation6], 4
      %s44 = int_to_ptr.vmem [resolvable:$true] %s43
      %49 = dma.hbm_to_vmem [thread:$0]  %s42, 3072, %s44, [#allocation7], 128, 128, 8
    $region17: #{tpu_custom_call.1} parent=1 // pred_fallthru
      _
    // Predicated region
    $region18: #{tpu_custom_call.1} parent=1 // pred_check
      _
    $region19: #{tpu_custom_call.1} parent=1 // pred_check_branch
      %51 = sbr.rel (0) target = $region21
    $region20: #{tpu_custom_call.1} parent=1 // pred_region
      %53 = vsyncadd [#allocation7], 0
      %s54 = sshll.u32 %s4, 4
      %s55 = int_to_ptr.hbm [resolvable:$true] %s54
      %s56 = sshll.u32 [#allocation8], 4
      %s57 = int_to_ptr.vmem [resolvable:$true] %s56
      %62 = dma.hbm_to_vmem [thread:$0]  %s55, 3072, %s57, [#allocation7], 128, 128, 8
    $region21: #{tpu_custom_call.1} parent=1 // pred_fallthru
      _
    // Predicated region
    $region22: #{tpu_custom_call.1} parent=1 // pred_check
      _
    $region23: #{tpu_custom_call.1} parent=1 // pred_check_branch
      %64 = sbr.rel (0) target = $region25
    $region24: #{tpu_custom_call.1} parent=1 // pred_region
      %66 = vsyncadd [#allocation10], 0
      %s67 = sshll.u32 %s5, 4
      %s68 = int_to_ptr.hbm [resolvable:$true] %s67
      %s69 = sshll.u32 [#allocation9], 4
      %s70 = int_to_ptr.vmem [resolvable:$true] %s69
      %75 = dma.hbm_to_vmem [thread:$0]  %s68, 96, %s70, [#allocation10], 16, 16, 1
    $region25: #{tpu_custom_call.1} parent=1 // pred_fallthru
      _
    // Predicated region
    $region26: #{tpu_custom_call.1} parent=1 // pred_check
      _
    $region27: #{tpu_custom_call.1} parent=1 // pred_check_branch
      %77 = sbr.rel (0) target = $region29
    $region28: #{tpu_custom_call.1} parent=1 // pred_region
      _
    $region29: #{tpu_custom_call.1} parent=1 // pred_fallthru
      _
    // Predicated region
    $region30: #{tpu_custom_call.1} parent=1 // pred_check
      _
    $region31: #{tpu_custom_call.1} parent=1 // pred_check_branch
      %79 = sbr.rel (0) target = $region33
    $region32: #{tpu_custom_call.1} parent=1 // pred_region
      _
    $region33: #{tpu_custom_call.1} parent=1 // pred_fallthru
      _
    // Predicated region
    $region34: #{tpu_custom_call.1} parent=1 // pred_check
      _
    $region35: #{tpu_custom_call.1} parent=1 // pred_check_branch
      %81 = sbr.rel (0) target = $region37
    $region36: #{tpu_custom_call.1} parent=1 // pred_region
      _
    $region37: #{tpu_custom_call.1} parent=1 // pred_fallthru
      _
    // Predicated region
    $region38: #{tpu_custom_call.1} parent=1 // pred_check
      _
    $region39: #{tpu_custom_call.1} parent=1 // pred_check_branch
      %83 = sbr.rel (0) target = $region41
    $region40: #{tpu_custom_call.1} parent=1 // pred_region
      _
    $region41: #{tpu_custom_call.1} parent=1 // pred_fallthru
      _
    // Predicated region
    $region42: #{tpu_custom_call.1} parent=1 // pred_check
      _
    $region43: #{tpu_custom_call.1} parent=1 // pred_check_branch
      %85 = sbr.rel (0) target = $region45
    $region44: #{tpu_custom_call.1} parent=1 // pred_region
      _
    $region45: #{tpu_custom_call.1} parent=1 // pred_fallthru
      _
    // Predicated region
    $region46: #{tpu_custom_call.1} parent=1 // pred_check
      _
    $region47: #{tpu_custom_call.1} parent=1 // pred_check_branch
      %87 = sbr.rel (0) target = $region49
    $region48: #{tpu_custom_call.1} parent=1 // pred_region
      %89 = dma.done [#allocation4], 64
    $region49: #{tpu_custom_call.1} parent=1 // pred_fallthru
      _
    // Predicated region
    $region50: #{tpu_custom_call.1} parent=1 // pred_check
      _
    $region51: #{tpu_custom_call.1} parent=1 // pred_check_branch
      %91 = sbr.rel (0) target = $region53
    $region52: #{tpu_custom_call.1} parent=1 // pred_region
      %93 = dma.done [#allocation7], 3072
    $region53: #{tpu_custom_call.1} parent=1 // pred_fallthru
      _
    // Predicated region
    $region54: #{tpu_custom_call.1} parent=1 // pred_check
      _
    $region55: #{tpu_custom_call.1} parent=1 // pred_check_branch
      %95 = sbr.rel (0) target = $region57
    $region56: #{tpu_custom_call.1} parent=1 // pred_region
      %97 = dma.done [#allocation7], 3072
    $region57: #{tpu_custom_call.1} parent=1 // pred_fallthru
      _
    // Predicated region
    $region58: #{tpu_custom_call.1} parent=1 // pred_check
      _
    $region59: #{tpu_custom_call.1} parent=1 // pred_check_branch
      %99 = sbr.rel (0) target = $region61
    $region60: #{tpu_custom_call.1} parent=1 // pred_region
      %101 = dma.done [#allocation10], 96
    $region61: #{tpu_custom_call.1} parent=1 // pred_fallthru
      _
    %v102 = vld [vmem:[%s2] sm:$0x3]
    %v103 = vld [vmem:[%s0] sm:$0xff]
    %v104 = vld [vmem:[%s0 + $0x8] sm:$0xff]
    %v105 = vld [vmem:[#allocation6] sm:$0xff]
    %v106 = vld [vmem:[#allocation6 + $0x8] sm:$0xff]
    %v107 = vld [vmem:[#allocation9] sm:$0x1]
    %v109 = vperm.slane %v107, 0
    %vm111 = vcmask 130048
    %v113 = vsel %vm111, %v103, 0
    %v116 = vsel %vm111, %v104, 0
    %118 = vmatpush.msra.mxu0 0.0
    %119 = vmatpush.msra.mxu0 0.0
    %120 = vmatpush.msra.mxu0 0.0
    %121 = vmatpush.msra.mxu0 0.0
    %122 = vmatpush.msra.mxu0 0.0
    %123 = vmatpush.msra.mxu0 0.0
    %124 = vmatpush.msra.mxu0 0.0
    %125 = vmatpush.msra.mxu0 0.0
    %126 = vmatpush.msra.mxu0 0.0
    %127 = vmatpush.msra.mxu0 0.0
    %128 = vmatpush.msra.mxu0 0.0
    %129 = vmatpush.msra.mxu0 0.0
    %130 = vmatpush.msra.mxu0 0.0
    %131 = vmatpush.msra.mxu0 0.0
    %132 = vmatpush.msra.mxu0 %v106
    %133 = vmatpush.msra.mxu0 %v105
    %134 = vmatmul.f32.gmra.mxu0 %v113
    %v135 = vpop.f32.mrf.mxu0
    %v136 = vadd.f32 %v109, %v135
    %137 = vmatmul.f32.gmra.mxu0 %v116
    %v138 = vpop.f32.mrf.mxu0
    %v139 = vadd.f32 %v109, %v138
    %140 = vdwg.mxu0
    %s141 = scalar_lea.vmem [#allocation6], 32
    %v142 = vld [vmem:[%s141] sm:$0xff]
    %v143 = vld [vmem:[%s141 + $0x8] sm:$0xff]
    %s144 = scalar_lea.vmem [#allocation9], 1
    %v145 = vld [vmem:[%s144] sm:$0x1]
    %v147 = vperm.slane %v145, 0
    %149 = vmatpush.msra.mxu0 0.0
    %150 = vmatpush.msra.mxu0 0.0
    %151 = vmatpush.msra.mxu0 0.0
    %152 = vmatpush.msra.mxu0 0.0
    %153 = vmatpush.msra.mxu0 0.0
    %154 = vmatpush.msra.mxu0 0.0
    %155 = vmatpush.msra.mxu0 0.0
    %156 = vmatpush.msra.mxu0 0.0
    %157 = vmatpush.msra.mxu0 0.0
    %158 = vmatpush.msra.mxu0 0.0
    %159 = vmatpush.msra.mxu0 0.0
    %160 = vmatpush.msra.mxu0 0.0
    %161 = vmatpush.msra.mxu0 0.0
    %162 = vmatpush.msra.mxu0 0.0
    %163 = vmatpush.msra.mxu0 %v143
    %164 = vmatpush.msra.mxu0 %v142
    %165 = vmatmul.f32.gmra.mxu0 %v113
    %v166 = vpop.f32.mrf.mxu0
    %v167 = vadd.f32 %v147, %v166
    %168 = vmatmul.f32.gmra.mxu0 %v116
    %v169 = vpop.f32.mrf.mxu0
    %v170 = vadd.f32 %v147, %v169
    %171 = vdwg.mxu0
    %s172 = scalar_lea.vmem [#allocation6], 64
    %v173 = vld [vmem:[%s172] sm:$0xff]
    %v174 = vld [vmem:[%s172 + $0x8] sm:$0xff]
    %s175 = scalar_lea.vmem [#allocation9], 2
    %v176 = vld [vmem:[%s175] sm:$0x1]
    %v178 = vperm.slane %v176, 0
    %180 = vmatpush.msra.mxu0 0.0
    %181 = vmatpush.msra.mxu0 0.0
    %182 = vmatpush.msra.mxu0 0.0
    %183 = vmatpush.msra.mxu0 0.0
    %184 = vmatpush.msra.mxu0 0.0
    %185 = vmatpush.msra.mxu0 0.0
    %186 = vmatpush.msra.mxu0 0.0
    %187 = vmatpush.msra.mxu0 0.0
    %188 = vmatpush.msra.mxu0 0.0
    %189 = vmatpush.msra.mxu0 0.0
    %190 = vmatpush.msra.mxu0 0.0
    %191 = vmatpush.msra.mxu0 0.0
    %192 = vmatpush.msra.mxu0 0.0
    %193 = vmatpush.msra.mxu0 0.0
    %194 = vmatpush.msra.mxu0 %v174
    %195 = vmatpush.msra.mxu0 %v173
    %196 = vmatmul.f32.gmra.mxu0 %v113
    %v197 = vpop.f32.mrf.mxu0
    %v198 = vadd.f32 %v178, %v197
    %199 = vmatmul.f32.gmra.mxu0 %v116
    %v200 = vpop.f32.mrf.mxu0
    %v201 = vadd.f32 %v178, %v200
    %202 = vdwg.mxu0
    %v203 = vld [vmem:[#allocation8] sm:$0xff]
    %v204 = vld [vmem:[#allocation8 + $0x8] sm:$0xff]
    %v205 = vld [vmem:[#allocation8 + $0x10] sm:$0xff]
    %v206 = vld [vmem:[#allocation8 + $0x18] sm:$0xff]
    %s207 = scalar_lea.vmem [#allocation8], 32
    %v208 = vld [vmem:[%s207] sm:$0xff]
    %v209 = vld [vmem:[%s207 + $0x8] sm:$0xff]
    %v210 = vld [vmem:[%s207 + $0x10] sm:$0xff]
    %v211 = vld [vmem:[%s207 + $0x18] sm:$0xff]
    %s212 = scalar_lea.vmem [#allocation8], 64
    %v213 = vld [vmem:[%s212] sm:$0xff]
    %v214 = vld [vmem:[%s212 + $0x8] sm:$0xff]
    %v215 = vld [vmem:[%s212 + $0x10] sm:$0xff]
    %v216 = vld [vmem:[%s212 + $0x18] sm:$0xff]
    %v217 = vld [vmem:[%s6] sm:$0x1]
    %v218 = vld [vmem:[#allocation3] sm:$0x3]
    %vm219 = vcmask 261120
    %v221 = vsel %vm219, %v218, 0
    %223 = vmatpush.msra.mxu0 0.0
    %224 = vmatpush.msra.mxu0 0.0
    %225 = vmatpush.msra.mxu0 0.0
    %226 = vmatpush.msra.mxu0 0.0
    %227 = vmatpush.msra.mxu0 0.0
    %228 = vmatpush.msra.mxu0 0.0
    %229 = vmatpush.msra.mxu0 0.0
    %230 = vmatpush.msra.mxu0 0.0
    %231 = vmatpush.msra.mxu0 0.0
    %232 = vmatpush.msra.mxu0 0.0
    %233 = vmatpush.msra.mxu0 0.0
    %234 = vmatpush.msra.mxu0 0.0
    %235 = vmatpush.msra.mxu0 %v206
    %236 = vmatpush.msra.mxu0 %v205
    %237 = vmatpush.msra.mxu0 %v204
    %238 = vmatpush.msra.mxu0 %v203
    %239 = vmatmul.f32.gmra.mxu0 %v221
    %v240 = vpop.f32.mrf.mxu0
    %v241 = vadd.f32 0.0, %v240
    %242 = vdwg.mxu0
    %243 = vmatpush.msra.mxu0 0.0
    %244 = vmatpush.msra.mxu0 0.0
    %245 = vmatpush.msra.mxu0 0.0
    %246 = vmatpush.msra.mxu0 0.0
    %247 = vmatpush.msra.mxu0 0.0
    %248 = vmatpush.msra.mxu0 0.0
    %249 = vmatpush.msra.mxu0 0.0
    %250 = vmatpush.msra.mxu0 0.0
    %251 = vmatpush.msra.mxu0 0.0
    %252 = vmatpush.msra.mxu0 0.0
    %253 = vmatpush.msra.mxu0 0.0
    %254 = vmatpush.msra.mxu0 0.0
    %255 = vmatpush.msra.mxu0 %v211
    %256 = vmatpush.msra.mxu0 %v210
    %257 = vmatpush.msra.mxu0 %v209
    %258 = vmatpush.msra.mxu0 %v208
    %259 = vmatmul.f32.gmra.mxu0 %v221
    %v260 = vpop.f32.mrf.mxu0
    %v261 = vadd.f32 0.0, %v260
    %262 = vdwg.mxu0
    %v264 = vperm.slane %v217, 0
    %266 = vmatpush.msra.mxu0 0.0
    %267 = vmatpush.msra.mxu0 0.0
    %268 = vmatpush.msra.mxu0 0.0
    %269 = vmatpush.msra.mxu0 0.0
    %270 = vmatpush.msra.mxu0 0.0
    %271 = vmatpush.msra.mxu0 0.0
    %272 = vmatpush.msra.mxu0 0.0
    %273 = vmatpush.msra.mxu0 0.0
    %274 = vmatpush.msra.mxu0 0.0
    %275 = vmatpush.msra.mxu0 0.0
    %276 = vmatpush.msra.mxu0 0.0
    %277 = vmatpush.msra.mxu0 0.0
    %278 = vmatpush.msra.mxu0 %v216
    %279 = vmatpush.msra.mxu0 %v215
    %280 = vmatpush.msra.mxu0 %v214
    %281 = vmatpush.msra.mxu0 %v213
    %282 = vmatmul.f32.gmra.mxu0 %v221
    %v283 = vpop.f32.mrf.mxu0
    %v284 = vadd.f32 %v264, %v283
    %285 = vdwg.mxu0
    %v286 = vadd.f32 %v136, %v241
    %v287 = vxor.u32 %v286, 2147483648
    %v288 = vmul.f32 %v287, 1.442695
    %v289 = vpow.pop %v288
    %v290 = vadd.f32 %v289, 1.0
    %v291 = vrcp.pop %v290
    %v292 = vmul.f32 %v290, %v291
    %v293 = vsub.f32 1.0, %v292
    %v294 = vmul.f32 %v291, %v293
    %v295 = vadd.f32 %v291, %v294
    %vm296 = vweird.f32 %v290
    %vm297 = vweird.f32 %v291
    %vm298 = vmor %vm296, %vm297
    %v299 = vsel %vm298, %v291, %v295
    %v300 = vand.u32 2147483647, %v290
    %vm301 = vcmp.eq.f32.partialorder %v300, 8.507059e+37
    %v302 = vand.u32 %v290, 2147483648
    %v303 = vor.u32 1.1754944e-38, %v302
    %v304 = vsel %vm301, %v303, %v299
    %v305 = vmul.f32 1.0, %v304
    %v306 = vadd.f32 %v167, %v261
    %v307 = vxor.u32 %v306, 2147483648
    %v308 = vmul.f32 %v307, 1.442695
    %v309 = vpow.pop %v308
    %v310 = vadd.f32 %v309, 1.0
    %v311 = vrcp.pop %v310
    %v312 = vmul.f32 %v310, %v311
    %v313 = vsub.f32 1.0, %v312
    %v314 = vmul.f32 %v311, %v313
    %v315 = vadd.f32 %v311, %v314
    %vm316 = vweird.f32 %v310
    %vm317 = vweird.f32 %v311
    %vm318 = vmor %vm316, %vm317
    %v319 = vsel %vm318, %v311, %v315
    %v320 = vand.u32 2147483647, %v310
    %vm321 = vcmp.eq.f32.partialorder %v320, 8.507059e+37
    %v322 = vand.u32 %v310, 2147483648
    %v323 = vor.u32 1.1754944e-38, %v322
    %v324 = vsel %vm321, %v323, %v319
    %v325 = vmul.f32 1.0, %v324
    %v326 = vmul.f32 %v305, %v284
    %v327 = vadd.f32 %v198, %v326
    %v328 = vtanh.pop %v327
    %v329 = vsub.f32 1.0, %v325
    %v330 = vmul.f32 %v329, %v328
    %v331 = vmul.f32 %v325, %v218
    %v332 = vadd.f32 %v330, %v331
    %vm333 = vcmask 254976
    %334 = vst.msk [vmem:[#allocation2] sm:$0x3] %vm333, %v332
    %v336 = vsel %vm219, %v332, 0
    %338 = vmatpush.msra.mxu0 0.0
    %339 = vmatpush.msra.mxu0 0.0
    %340 = vmatpush.msra.mxu0 0.0
    %341 = vmatpush.msra.mxu0 0.0
    %342 = vmatpush.msra.mxu0 0.0
    %343 = vmatpush.msra.mxu0 0.0
    %344 = vmatpush.msra.mxu0 0.0
    %345 = vmatpush.msra.mxu0 0.0
    %346 = vmatpush.msra.mxu0 0.0
    %347 = vmatpush.msra.mxu0 0.0
    %348 = vmatpush.msra.mxu0 0.0
    %349 = vmatpush.msra.mxu0 0.0
    %350 = vmatpush.msra.mxu0 %v206
    %351 = vmatpush.msra.mxu0 %v205
    %352 = vmatpush.msra.mxu0 %v204
    %353 = vmatpush.msra.mxu0 %v203
    %354 = vmatmul.f32.gmra.mxu0 %v336
    %v355 = vpop.f32.mrf.mxu0
    %v356 = vadd.f32 0.0, %v355
    %357 = vdwg.mxu0
    %358 = vmatpush.msra.mxu0 0.0
    %359 = vmatpush.msra.mxu0 0.0
    %360 = vmatpush.msra.mxu0 0.0
    %361 = vmatpush.msra.mxu0 0.0
    %362 = vmatpush.msra.mxu0 0.0
    %363 = vmatpush.msra.mxu0 0.0
    %364 = vmatpush.msra.mxu0 0.0
    %365 = vmatpush.msra.mxu0 0.0
    %366 = vmatpush.msra.mxu0 0.0
    %367 = vmatpush.msra.mxu0 0.0
    %368 = vmatpush.msra.mxu0 0.0
    %369 = vmatpush.msra.mxu0 0.0
    %370 = vmatpush.msra.mxu0 %v211
    %371 = vmatpush.msra.mxu0 %v210
    %372 = vmatpush.msra.mxu0 %v209
    %373 = vmatpush.msra.mxu0 %v208
    %374 = vmatmul.f32.gmra.mxu0 %v336
    %v375 = vpop.f32.mrf.mxu0
    %v376 = vadd.f32 0.0, %v375
    %377 = vdwg.mxu0
    %378 = vmatpush.msra.mxu0 0.0
    %379 = vmatpush.msra.mxu0 0.0
    %380 = vmatpush.msra.mxu0 0.0
    %381 = vmatpush.msra.mxu0 0.0
    %382 = vmatpush.msra.mxu0 0.0
    %383 = vmatpush.msra.mxu0 0.0
    %384 = vmatpush.msra.mxu0 0.0
    %385 = vmatpush.msra.mxu0 0.0
    %386 = vmatpush.msra.mxu0 0.0
    %387 = vmatpush.msra.mxu0 0.0
    %388 = vmatpush.msra.mxu0 0.0
    %389 = vmatpush.msra.mxu0 0.0
    %390 = vmatpush.msra.mxu0 %v216
    %391 = vmatpush.msra.mxu0 %v215
    %392 = vmatpush.msra.mxu0 %v214
    %393 = vmatpush.msra.mxu0 %v213
    %394 = vmatmul.f32.gmra.mxu0 %v336
    %v395 = vpop.f32.mrf.mxu0
    %v396 = vadd.f32 %v264, %v395
    %397 = vdwg.mxu0
    %v399 = vrot.slane %v356, 6
    %v401 = vadd.f32 %v136, %v399
    %v402 = vxor.u32 %v401, 2147483648
    %v403 = vmul.f32 %v402, 1.442695
    %v404 = vpow.pop %v403
    %v405 = vadd.f32 %v404, 1.0
    %v406 = vrcp.pop %v405
    %v407 = vmul.f32 %v405, %v406
    %v408 = vsub.f32 1.0, %v407
    %v409 = vmul.f32 %v406, %v408
    %v410 = vadd.f32 %v406, %v409
    %vm411 = vweird.f32 %v405
    %vm412 = vweird.f32 %v406
    %vm413 = vmor %vm411, %vm412
    %v414 = vsel %vm413, %v406, %v410
    %v415 = vand.u32 2147483647, %v405
    %vm416 = vcmp.eq.f32.partialorder %v415, 8.507059e+37
    %v417 = vand.u32 %v405, 2147483648
    %v418 = vor.u32 1.1754944e-38, %v417
    %v419 = vsel %vm416, %v418, %v414
    %v420 = vmul.f32 1.0, %v419
    %v422 = vrot.slane %v376, 6
    %v424 = vadd.f32 %v167, %v422
    %v425 = vxor.u32 %v424, 2147483648
    %v426 = vmul.f32 %v425, 1.442695
    %v427 = vpow.pop %v426
    %v428 = vadd.f32 %v427, 1.0
    %v429 = vrcp.pop %v428
    %v430 = vmul.f32 %v428, %v429
    %v431 = vsub.f32 1.0, %v430
    %v432 = vmul.f32 %v429, %v431
    %v433 = vadd.f32 %v429, %v432
    %vm434 = vweird.f32 %v428
    %vm435 = vweird.f32 %v429
    %vm436 = vmor %vm434, %vm435
    %v437 = vsel %vm436, %v429, %v433
    %v438 = vand.u32 2147483647, %v428
    %vm439 = vcmp.eq.f32.partialorder %v438, 8.507059e+37
    %v440 = vand.u32 %v428, 2147483648
    %v441 = vor.u32 1.1754944e-38, %v440
    %v442 = vsel %vm439, %v441, %v437
    %v443 = vmul.f32 1.0, %v442
    %v445 = vrot.slane %v396, 6
    %v447 = vmul.f32 %v420, %v445
    %v448 = vadd.f32 %v198, %v447
    %v449 = vtanh.pop %v448
    %v450 = vsub.f32 1.0, %v443
    %v451 = vmul.f32 %v450, %v449
    %v452 = vrot.slane %v332, 6
    %v454 = vmul.f32 %v443, %v452
    %v455 = vadd.f32 %v451, %v454
    %vm456 = vcmask 257026
    %457 = vst.msk [vmem:[#allocation2] sm:$0xc] %vm456, %v455
    %v459 = vrot.slane %v455, 2
    %v460 = vsel %vm219, %v459, 0
    %462 = vmatpush.msra.mxu0 0.0
    %463 = vmatpush.msra.mxu0 0.0
    %464 = vmatpush.msra.mxu0 0.0
    %465 = vmatpush.msra.mxu0 0.0
    %466 = vmatpush.msra.mxu0 0.0
    %467 = vmatpush.msra.mxu0 0.0
    %468 = vmatpush.msra.mxu0 0.0
    %469 = vmatpush.msra.mxu0 0.0
    %470 = vmatpush.msra.mxu0 0.0
    %471 = vmatpush.msra.mxu0 0.0
    %472 = vmatpush.msra.mxu0 0.0
    %473 = vmatpush.msra.mxu0 0.0
    %474 = vmatpush.msra.mxu0 %v206
    %475 = vmatpush.msra.mxu0 %v205
    %476 = vmatpush.msra.mxu0 %v204
    %477 = vmatpush.msra.mxu0 %v203
    %478 = vmatmul.f32.gmra.mxu0 %v460
    %v479 = vpop.f32.mrf.mxu0
    %v480 = vadd.f32 0.0, %v479
    %481 = vdwg.mxu0
    %482 = vmatpush.msra.mxu0 0.0
    %483 = vmatpush.msra.mxu0 0.0
    %484 = vmatpush.msra.mxu0 0.0
    %485 = vmatpush.msra.mxu0 0.0
    %486 = vmatpush.msra.mxu0 0.0
    %487 = vmatpush.msra.mxu0 0.0
    %488 = vmatpush.msra.mxu0 0.0
    %489 = vmatpush.msra.mxu0 0.0
    %490 = vmatpush.msra.mxu0 0.0
    %491 = vmatpush.msra.mxu0 0.0
    %492 = vmatpush.msra.mxu0 0.0
    %493 = vmatpush.msra.mxu0 0.0
    %494 = vmatpush.msra.mxu0 %v211
    %495 = vmatpush.msra.mxu0 %v210
    %496 = vmatpush.msra.mxu0 %v209
    %497 = vmatpush.msra.mxu0 %v208
    %498 = vmatmul.f32.gmra.mxu0 %v460
    %v499 = vpop.f32.mrf.mxu0
    %v500 = vadd.f32 0.0, %v499
    %501 = vdwg.mxu0
    %502 = vmatpush.msra.mxu0 0.0
    %503 = vmatpush.msra.mxu0 0.0
    %504 = vmatpush.msra.mxu0 0.0
    %505 = vmatpush.msra.mxu0 0.0
    %506 = vmatpush.msra.mxu0 0.0
    %507 = vmatpush.msra.mxu0 0.0
    %508 = vmatpush.msra.mxu0 0.0
    %509 = vmatpush.msra.mxu0 0.0
    %510 = vmatpush.msra.mxu0 0.0
    %511 = vmatpush.msra.mxu0 0.0
    %512 = vmatpush.msra.mxu0 0.0
    %513 = vmatpush.msra.mxu0 0.0
    %514 = vmatpush.msra.mxu0 %v216
    %515 = vmatpush.msra.mxu0 %v215
    %516 = vmatpush.msra.mxu0 %v214
    %517 = vmatpush.msra.mxu0 %v213
    %518 = vmatmul.f32.gmra.mxu0 %v460
    %v519 = vpop.f32.mrf.mxu0
    %v520 = vadd.f32 %v264, %v519
    %521 = vdwg.mxu0
    %v523 = vrot.slane %v480, 4
    %v525 = vadd.f32 %v136, %v523
    %v526 = vxor.u32 %v525, 2147483648
    %v527 = vmul.f32 %v526, 1.442695
    %v528 = vpow.pop %v527
    %v529 = vadd.f32 %v528, 1.0
    %v530 = vrcp.pop %v529
    %v531 = vmul.f32 %v529, %v530
    %v532 = vsub.f32 1.0, %v531
    %v533 = vmul.f32 %v530, %v532
    %v534 = vadd.f32 %v530, %v533
    %vm535 = vweird.f32 %v529
    %vm536 = vweird.f32 %v530
    %vm537 = vmor %vm535, %vm536
    %v538 = vsel %vm537, %v530, %v534
    %v539 = vand.u32 2147483647, %v529
    %vm540 = vcmp.eq.f32.partialorder %v539, 8.507059e+37
    %v541 = vand.u32 %v529, 2147483648
    %v542 = vor.u32 1.1754944e-38, %v541
    %v543 = vsel %vm540, %v542, %v538
    %v544 = vmul.f32 1.0, %v543
    %v546 = vrot.slane %v500, 4
    %v548 = vadd.f32 %v167, %v546
    %v549 = vxor.u32 %v548, 2147483648
    %v550 = vmul.f32 %v549, 1.442695
    %v551 = vpow.pop %v550
    %v552 = vadd.f32 %v551, 1.0
    %v553 = vrcp.pop %v552
    %v554 = vmul.f32 %v552, %v553
    %v555 = vsub.f32 1.0, %v554
    %v556 = vmul.f32 %v553, %v555
    %v557 = vadd.f32 %v553, %v556
    %vm558 = vweird.f32 %v552
    %vm559 = vweird.f32 %v553
    %vm560 = vmor %vm558, %vm559
    %v561 = vsel %vm560, %v553, %v557
    %v562 = vand.u32 2147483647, %v552
    %vm563 = vcmp.eq.f32.partialorder %v562, 8.507059e+37
    %v564 = vand.u32 %v552, 2147483648
    %v565 = vor.u32 1.1754944e-38, %v564
    %v566 = vsel %vm563, %v565, %v561
    %v567 = vmul.f32 1.0, %v566
    %v569 = vrot.slane %v520, 4
    %v571 = vmul.f32 %v544, %v569
    %v572 = vadd.f32 %v198, %v571
    %v573 = vtanh.pop %v572
    %v574 = vsub.f32 1.0, %v567
    %v575 = vmul.f32 %v574, %v573
    %v576 = vrot.slane %v455, 6
    %v578 = vmul.f32 %v567, %v576
    %v579 = vadd.f32 %v575, %v578
    %vm580 = vcmask 259076
    %581 = vst.msk [vmem:[#allocation2] sm:$0x30] %vm580, %v579
    %v583 = vrot.slane %v579, 4
    %v584 = vsel %vm219, %v583, 0
    %586 = vmatpush.msra.mxu0 0.0
    %587 = vmatpush.msra.mxu0 0.0
    %588 = vmatpush.msra.mxu0 0.0
    %589 = vmatpush.msra.mxu0 0.0
    %590 = vmatpush.msra.mxu0 0.0
    %591 = vmatpush.msra.mxu0 0.0
    %592 = vmatpush.msra.mxu0 0.0
    %593 = vmatpush.msra.mxu0 0.0
    %594 = vmatpush.msra.mxu0 0.0
    %595 = vmatpush.msra.mxu0 0.0
    %596 = vmatpush.msra.mxu0 0.0
    %597 = vmatpush.msra.mxu0 0.0
    %598 = vmatpush.msra.mxu0 %v206
    %599 = vmatpush.msra.mxu0 %v205
    %600 = vmatpush.msra.mxu0 %v204
    %601 = vmatpush.msra.mxu0 %v203
    %602 = vmatmul.f32.gmra.mxu0 %v584
    %v603 = vpop.f32.mrf.mxu0
    %v604 = vadd.f32 0.0, %v603
    %605 = vdwg.mxu0
    %606 = vmatpush.msra.mxu0 0.0
    %607 = vmatpush.msra.mxu0 0.0
    %608 = vmatpush.msra.mxu0 0.0
    %609 = vmatpush.msra.mxu0 0.0
    %610 = vmatpush.msra.mxu0 0.0
    %611 = vmatpush.msra.mxu0 0.0
    %612 = vmatpush.msra.mxu0 0.0
    %613 = vmatpush.msra.mxu0 0.0
    %614 = vmatpush.msra.mxu0 0.0
    %615 = vmatpush.msra.mxu0 0.0
    %616 = vmatpush.msra.mxu0 0.0
    %617 = vmatpush.msra.mxu0 0.0
    %618 = vmatpush.msra.mxu0 %v211
    %619 = vmatpush.msra.mxu0 %v210
    %620 = vmatpush.msra.mxu0 %v209
    %621 = vmatpush.msra.mxu0 %v208
    %622 = vmatmul.f32.gmra.mxu0 %v584
    %v623 = vpop.f32.mrf.mxu0
    %v624 = vadd.f32 0.0, %v623
    %625 = vdwg.mxu0
    %626 = vmatpush.msra.mxu0 0.0
    %627 = vmatpush.msra.mxu0 0.0
    %628 = vmatpush.msra.mxu0 0.0
    %629 = vmatpush.msra.mxu0 0.0
    %630 = vmatpush.msra.mxu0 0.0
    %631 = vmatpush.msra.mxu0 0.0
    %632 = vmatpush.msra.mxu0 0.0
    %633 = vmatpush.msra.mxu0 0.0
    %634 = vmatpush.msra.mxu0 0.0
    %635 = vmatpush.msra.mxu0 0.0
    %636 = vmatpush.msra.mxu0 0.0
    %637 = vmatpush.msra.mxu0 0.0
    %638 = vmatpush.msra.mxu0 %v216
    %639 = vmatpush.msra.mxu0 %v215
    %640 = vmatpush.msra.mxu0 %v214
    %641 = vmatpush.msra.mxu0 %v213
    %642 = vmatmul.f32.gmra.mxu0 %v584
    %v643 = vpop.f32.mrf.mxu0
    %v644 = vadd.f32 %v264, %v643
    %645 = vdwg.mxu0
    %v647 = vrot.slane %v604, 2
    %v649 = vadd.f32 %v136, %v647
    %v650 = vxor.u32 %v649, 2147483648
    %v651 = vmul.f32 %v650, 1.442695
    %v652 = vpow.pop %v651
    %v653 = vadd.f32 %v652, 1.0
    %v654 = vrcp.pop %v653
    %v655 = vmul.f32 %v653, %v654
    %v656 = vsub.f32 1.0, %v655
    %v657 = vmul.f32 %v654, %v656
    %v658 = vadd.f32 %v654, %v657
    %vm659 = vweird.f32 %v653
    %vm660 = vweird.f32 %v654
    %vm661 = vmor %vm659, %vm660
    %v662 = vsel %vm661, %v654, %v658
    %v663 = vand.u32 2147483647, %v653
    %vm664 = vcmp.eq.f32.partialorder %v663, 8.507059e+37
    %v665 = vand.u32 %v653, 2147483648
    %v666 = vor.u32 1.1754944e-38, %v665
    %v667 = vsel %vm664, %v666, %v662
    %v668 = vmul.f32 1.0, %v667
    %v670 = vrot.slane %v624, 2
    %v672 = vadd.f32 %v167, %v670
    %v673 = vxor.u32 %v672, 2147483648
    %v674 = vmul.f32 %v673, 1.442695
    %v675 = vpow.pop %v674
    %v676 = vadd.f32 %v675, 1.0
    %v677 = vrcp.pop %v676
    %v678 = vmul.f32 %v676, %v677
    %v679 = vsub.f32 1.0, %v678
    %v680 = vmul.f32 %v677, %v679
    %v681 = vadd.f32 %v677, %v680
    %vm682 = vweird.f32 %v676
    %vm683 = vweird.f32 %v677
    %vm684 = vmor %vm682, %vm683
    %v685 = vsel %vm684, %v677, %v681
    %v686 = vand.u32 2147483647, %v676
    %vm687 = vcmp.eq.f32.partialorder %v686, 8.507059e+37
    %v688 = vand.u32 %v676, 2147483648
    %v689 = vor.u32 1.1754944e-38, %v688
    %v690 = vsel %vm687, %v689, %v685
    %v691 = vmul.f32 1.0, %v690
    %v693 = vrot.slane %v644, 2
    %v695 = vmul.f32 %v668, %v693
    %v696 = vadd.f32 %v198, %v695
    %v697 = vtanh.pop %v696
    %v698 = vsub.f32 1.0, %v691
    %v699 = vmul.f32 %v698, %v697
    %v700 = vrot.slane %v579, 6
    %v702 = vmul.f32 %v691, %v700
    %v703 = vadd.f32 %v699, %v702
    %vm704 = vcmask 261126
    %705 = vst.msk [vmem:[#allocation2] sm:$0xc0] %vm704, %v703
    %v707 = vrot.slane %v703, 6
    %v708 = vsel %vm219, %v707, 0
    %710 = vmatpush.msra.mxu0 0.0
    %711 = vmatpush.msra.mxu0 0.0
    %712 = vmatpush.msra.mxu0 0.0
    %713 = vmatpush.msra.mxu0 0.0
    %714 = vmatpush.msra.mxu0 0.0
    %715 = vmatpush.msra.mxu0 0.0
    %716 = vmatpush.msra.mxu0 0.0
    %717 = vmatpush.msra.mxu0 0.0
    %718 = vmatpush.msra.mxu0 0.0
    %719 = vmatpush.msra.mxu0 0.0
    %720 = vmatpush.msra.mxu0 0.0
    %721 = vmatpush.msra.mxu0 0.0
    %722 = vmatpush.msra.mxu0 %v206
    %723 = vmatpush.msra.mxu0 %v205
    %724 = vmatpush.msra.mxu0 %v204
    %725 = vmatpush.msra.mxu0 %v203
    %726 = vmatmul.f32.gmra.mxu0 %v708
    %v727 = vpop.f32.mrf.mxu0
    %v728 = vadd.f32 0.0, %v727
    %729 = vdwg.mxu0
    %730 = vmatpush.msra.mxu0 0.0
    %731 = vmatpush.msra.mxu0 0.0
    %732 = vmatpush.msra.mxu0 0.0
    %733 = vmatpush.msra.mxu0 0.0
    %734 = vmatpush.msra.mxu0 0.0
    %735 = vmatpush.msra.mxu0 0.0
    %736 = vmatpush.msra.mxu0 0.0
    %737 = vmatpush.msra.mxu0 0.0
    %738 = vmatpush.msra.mxu0 0.0
    %739 = vmatpush.msra.mxu0 0.0
    %740 = vmatpush.msra.mxu0 0.0
    %741 = vmatpush.msra.mxu0 0.0
    %742 = vmatpush.msra.mxu0 %v211
    %743 = vmatpush.msra.mxu0 %v210
    %744 = vmatpush.msra.mxu0 %v209
    %745 = vmatpush.msra.mxu0 %v208
    %746 = vmatmul.f32.gmra.mxu0 %v708
    %v747 = vpop.f32.mrf.mxu0
    %v748 = vadd.f32 0.0, %v747
    %749 = vdwg.mxu0
    %750 = vmatpush.msra.mxu0 0.0
    %751 = vmatpush.msra.mxu0 0.0
    %752 = vmatpush.msra.mxu0 0.0
    %753 = vmatpush.msra.mxu0 0.0
    %754 = vmatpush.msra.mxu0 0.0
    %755 = vmatpush.msra.mxu0 0.0
    %756 = vmatpush.msra.mxu0 0.0
    %757 = vmatpush.msra.mxu0 0.0
    %758 = vmatpush.msra.mxu0 0.0
    %759 = vmatpush.msra.mxu0 0.0
    %760 = vmatpush.msra.mxu0 0.0
    %761 = vmatpush.msra.mxu0 0.0
    %762 = vmatpush.msra.mxu0 %v216
    %763 = vmatpush.msra.mxu0 %v215
    %764 = vmatpush.msra.mxu0 %v214
    %765 = vmatpush.msra.mxu0 %v213
    %766 = vmatmul.f32.gmra.mxu0 %v708
    %v767 = vpop.f32.mrf.mxu0
    %v768 = vadd.f32 %v264, %v767
    %769 = vdwg.mxu0
    %v770 = vadd.f32 %v139, %v728
    %v771 = vxor.u32 %v770, 2147483648
    %v772 = vmul.f32 %v771, 1.442695
    %v773 = vpow.pop %v772
    %v774 = vadd.f32 %v773, 1.0
    %v775 = vrcp.pop %v774
    %v776 = vmul.f32 %v774, %v775
    %v777 = vsub.f32 1.0, %v776
    %v778 = vmul.f32 %v775, %v777
    %v779 = vadd.f32 %v775, %v778
    %vm780 = vweird.f32 %v774
    %vm781 = vweird.f32 %v775
    %vm782 = vmor %vm780, %vm781
    %v783 = vsel %vm782, %v775, %v779
    %v784 = vand.u32 2147483647, %v774
    %vm785 = vcmp.eq.f32.partialorder %v784, 8.507059e+37
    %v786 = vand.u32 %v774, 2147483648
    %v787 = vor.u32 1.1754944e-38, %v786
    %v788 = vsel %vm785, %v787, %v783
    %v789 = vmul.f32 1.0, %v788
    %v790 = vadd.f32 %v170, %v748
    %v791 = vxor.u32 %v790, 2147483648
    %v792 = vmul.f32 %v791, 1.442695
    %v793 = vpow.pop %v792
    %v794 = vadd.f32 %v793, 1.0
    %v795 = vrcp.pop %v794
    %v796 = vmul.f32 %v794, %v795
    %v797 = vsub.f32 1.0, %v796
    %v798 = vmul.f32 %v795, %v797
    %v799 = vadd.f32 %v795, %v798
    %vm800 = vweird.f32 %v794
    %vm801 = vweird.f32 %v795
    %vm802 = vmor %vm800, %vm801
    %v803 = vsel %vm802, %v795, %v799
    %v804 = vand.u32 2147483647, %v794
    %vm805 = vcmp.eq.f32.partialorder %v804, 8.507059e+37
    %v806 = vand.u32 %v794, 2147483648
    %v807 = vor.u32 1.1754944e-38, %v806
    %v808 = vsel %vm805, %v807, %v803
    %v809 = vmul.f32 1.0, %v808
    %v810 = vmul.f32 %v789, %v768
    %v811 = vadd.f32 %v201, %v810
    %v812 = vtanh.pop %v811
    %v813 = vsub.f32 1.0, %v809
    %v814 = vmul.f32 %v813, %v812
    %v816 = vmul.f32 %v809, %v707
    %v817 = vadd.f32 %v814, %v816
    %818 = vst.msk [vmem:[#allocation2 + $0x8] sm:$0x3] %vm333, %v817
    %v820 = vsel %vm219, %v817, 0
    %822 = vmatpush.msra.mxu0 0.0
    %823 = vmatpush.msra.mxu0 0.0
    %824 = vmatpush.msra.mxu0 0.0
    %825 = vmatpush.msra.mxu0 0.0
    %826 = vmatpush.msra.mxu0 0.0
    %827 = vmatpush.msra.mxu0 0.0
    %828 = vmatpush.msra.mxu0 0.0
    %829 = vmatpush.msra.mxu0 0.0
    %830 = vmatpush.msra.mxu0 0.0
    %831 = vmatpush.msra.mxu0 0.0
    %832 = vmatpush.msra.mxu0 0.0
    %833 = vmatpush.msra.mxu0 0.0
    %834 = vmatpush.msra.mxu0 %v206
    %835 = vmatpush.msra.mxu0 %v205
    %836 = vmatpush.msra.mxu0 %v204
    %837 = vmatpush.msra.mxu0 %v203
    %838 = vmatmul.f32.gmra.mxu0 %v820
    %v839 = vpop.f32.mrf.mxu0
    %v840 = vadd.f32 0.0, %v839
    %841 = vdwg.mxu0
    %842 = vmatpush.msra.mxu0 0.0
    %843 = vmatpush.msra.mxu0 0.0
    %844 = vmatpush.msra.mxu0 0.0
    %845 = vmatpush.msra.mxu0 0.0
    %846 = vmatpush.msra.mxu0 0.0
    %847 = vmatpush.msra.mxu0 0.0
    %848 = vmatpush.msra.mxu0 0.0
    %849 = vmatpush.msra.mxu0 0.0
    %850 = vmatpush.msra.mxu0 0.0
    %851 = vmatpush.msra.mxu0 0.0
    %852 = vmatpush.msra.mxu0 0.0
    %853 = vmatpush.msra.mxu0 0.0
    %854 = vmatpush.msra.mxu0 %v211
    %855 = vmatpush.msra.mxu0 %v210
    %856 = vmatpush.msra.mxu0 %v209
    %857 = vmatpush.msra.mxu0 %v208
    %858 = vmatmul.f32.gmra.mxu0 %v820
    %v859 = vpop.f32.mrf.mxu0
    %v860 = vadd.f32 0.0, %v859
    %861 = vdwg.mxu0
    %862 = vmatpush.msra.mxu0 0.0
    %863 = vmatpush.msra.mxu0 0.0
    %864 = vmatpush.msra.mxu0 0.0
    %865 = vmatpush.msra.mxu0 0.0
    %866 = vmatpush.msra.mxu0 0.0
    %867 = vmatpush.msra.mxu0 0.0
    %868 = vmatpush.msra.mxu0 0.0
    %869 = vmatpush.msra.mxu0 0.0
    %870 = vmatpush.msra.mxu0 0.0
    %871 = vmatpush.msra.mxu0 0.0
    %872 = vmatpush.msra.mxu0 0.0
    %873 = vmatpush.msra.mxu0 0.0
    %874 = vmatpush.msra.mxu0 %v216
    %875 = vmatpush.msra.mxu0 %v215
    %876 = vmatpush.msra.mxu0 %v214
    %877 = vmatpush.msra.mxu0 %v213
    %878 = vmatmul.f32.gmra.mxu0 %v820
    %v879 = vpop.f32.mrf.mxu0
    %v880 = vadd.f32 %v264, %v879
    %881 = vdwg.mxu0
    %v883 = vrot.slane %v840, 6
    %v885 = vadd.f32 %v139, %v883
    %v886 = vxor.u32 %v885, 2147483648
    %v887 = vmul.f32 %v886, 1.442695
    %v888 = vpow.pop %v887
    %v889 = vadd.f32 %v888, 1.0
    %v890 = vrcp.pop %v889
    %v891 = vmul.f32 %v889, %v890
    %v892 = vsub.f32 1.0, %v891
    %v893 = vmul.f32 %v890, %v892
    %v894 = vadd.f32 %v890, %v893
    %vm895 = vweird.f32 %v889
    %vm896 = vweird.f32 %v890
    %vm897 = vmor %vm895, %vm896
    %v898 = vsel %vm897, %v890, %v894
    %v899 = vand.u32 2147483647, %v889
    %vm900 = vcmp.eq.f32.partialorder %v899, 8.507059e+37
    %v901 = vand.u32 %v889, 2147483648
    %v902 = vor.u32 1.1754944e-38, %v901
    %v903 = vsel %vm900, %v902, %v898
    %v904 = vmul.f32 1.0, %v903
    %v906 = vrot.slane %v860, 6
    %v908 = vadd.f32 %v170, %v906
    %v909 = vxor.u32 %v908, 2147483648
    %v910 = vmul.f32 %v909, 1.442695
    %v911 = vpow.pop %v910
    %v912 = vadd.f32 %v911, 1.0
    %v913 = vrcp.pop %v912
    %v914 = vmul.f32 %v912, %v913
    %v915 = vsub.f32 1.0, %v914
    %v916 = vmul.f32 %v913, %v915
    %v917 = vadd.f32 %v913, %v916
    %vm918 = vweird.f32 %v912
    %vm919 = vweird.f32 %v913
    %vm920 = vmor %vm918, %vm919
    %v921 = vsel %vm920, %v913, %v917
    %v922 = vand.u32 2147483647, %v912
    %vm923 = vcmp.eq.f32.partialorder %v922, 8.507059e+37
    %v924 = vand.u32 %v912, 2147483648
    %v925 = vor.u32 1.1754944e-38, %v924
    %v926 = vsel %vm923, %v925, %v921
    %v927 = vmul.f32 1.0, %v926
    %v929 = vrot.slane %v880, 6
    %v931 = vmul.f32 %v904, %v929
    %v932 = vadd.f32 %v201, %v931
    %v933 = vtanh.pop %v932
    %v934 = vsub.f32 1.0, %v927
    %v935 = vmul.f32 %v934, %v933
    %v936 = vrot.slane %v817, 6
    %v938 = vmul.f32 %v927, %v936
    %v939 = vadd.f32 %v935, %v938
    %940 = vst.msk [vmem:[#allocation2 + $0x8] sm:$0xc] %vm456, %v939
    %v942 = vrot.slane %v939, 2
    %v943 = vsel %vm219, %v942, 0
    %945 = vmatpush.msra.mxu0 0.0
    %946 = vmatpush.msra.mxu0 0.0
    %947 = vmatpush.msra.mxu0 0.0
    %948 = vmatpush.msra.mxu0 0.0
    %949 = vmatpush.msra.mxu0 0.0
    %950 = vmatpush.msra.mxu0 0.0
    %951 = vmatpush.msra.mxu0 0.0
    %952 = vmatpush.msra.mxu0 0.0
    %953 = vmatpush.msra.mxu0 0.0
    %954 = vmatpush.msra.mxu0 0.0
    %955 = vmatpush.msra.mxu0 0.0
    %956 = vmatpush.msra.mxu0 0.0
    %957 = vmatpush.msra.mxu0 %v206
    %958 = vmatpush.msra.mxu0 %v205
    %959 = vmatpush.msra.mxu0 %v204
    %960 = vmatpush.msra.mxu0 %v203
    %961 = vmatmul.f32.gmra.mxu0 %v943
    %v962 = vpop.f32.mrf.mxu0
    %v963 = vadd.f32 0.0, %v962
    %964 = vdwg.mxu0
    %965 = vmatpush.msra.mxu0 0.0
    %966 = vmatpush.msra.mxu0 0.0
    %967 = vmatpush.msra.mxu0 0.0
    %968 = vmatpush.msra.mxu0 0.0
    %969 = vmatpush.msra.mxu0 0.0
    %970 = vmatpush.msra.mxu0 0.0
    %971 = vmatpush.msra.mxu0 0.0
    %972 = vmatpush.msra.mxu0 0.0
    %973 = vmatpush.msra.mxu0 0.0
    %974 = vmatpush.msra.mxu0 0.0
    %975 = vmatpush.msra.mxu0 0.0
    %976 = vmatpush.msra.mxu0 0.0
    %977 = vmatpush.msra.mxu0 %v211
    %978 = vmatpush.msra.mxu0 %v210
    %979 = vmatpush.msra.mxu0 %v209
    %980 = vmatpush.msra.mxu0 %v208
    %981 = vmatmul.f32.gmra.mxu0 %v943
    %v982 = vpop.f32.mrf.mxu0
    %v983 = vadd.f32 0.0, %v982
    %984 = vdwg.mxu0
    %985 = vmatpush.msra.mxu0 0.0
    %986 = vmatpush.msra.mxu0 0.0
    %987 = vmatpush.msra.mxu0 0.0
    %988 = vmatpush.msra.mxu0 0.0
    %989 = vmatpush.msra.mxu0 0.0
    %990 = vmatpush.msra.mxu0 0.0
    %991 = vmatpush.msra.mxu0 0.0
    %992 = vmatpush.msra.mxu0 0.0
    %993 = vmatpush.msra.mxu0 0.0
    %994 = vmatpush.msra.mxu0 0.0
    %995 = vmatpush.msra.mxu0 0.0
    %996 = vmatpush.msra.mxu0 0.0
    %997 = vmatpush.msra.mxu0 %v216
    %998 = vmatpush.msra.mxu0 %v215
    %999 = vmatpush.msra.mxu0 %v214
    %1000 = vmatpush.msra.mxu0 %v213
    %1001 = vmatmul.f32.gmra.mxu0 %v943
    %v1002 = vpop.f32.mrf.mxu0
    %v1003 = vadd.f32 %v264, %v1002
    %1004 = vdwg.mxu0
    %v1006 = vrot.slane %v963, 4
    %v1008 = vadd.f32 %v139, %v1006
    %v1009 = vxor.u32 %v1008, 2147483648
    %v1010 = vmul.f32 %v1009, 1.442695
    %v1011 = vpow.pop %v1010
    %v1012 = vadd.f32 %v1011, 1.0
    %v1013 = vrcp.pop %v1012
    %v1014 = vmul.f32 %v1012, %v1013
    %v1015 = vsub.f32 1.0, %v1014
    %v1016 = vmul.f32 %v1013, %v1015
    %v1017 = vadd.f32 %v1013, %v1016
    %vm1018 = vweird.f32 %v1012
    %vm1019 = vweird.f32 %v1013
    %vm1020 = vmor %vm1018, %vm1019
    %v1021 = vsel %vm1020, %v1013, %v1017
    %v1022 = vand.u32 2147483647, %v1012
    %vm1023 = vcmp.eq.f32.partialorder %v1022, 8.507059e+37
    %v1024 = vand.u32 %v1012, 2147483648
    %v1025 = vor.u32 1.1754944e-38, %v1024
    %v1026 = vsel %vm1023, %v1025, %v1021
    %v1027 = vmul.f32 1.0, %v1026
    %v1029 = vrot.slane %v983, 4
    %v1031 = vadd.f32 %v170, %v1029
    %v1032 = vxor.u32 %v1031, 2147483648
    %v1033 = vmul.f32 %v1032, 1.442695
    %v1034 = vpow.pop %v1033
    %v1035 = vadd.f32 %v1034, 1.0
    %v1036 = vrcp.pop %v1035
    %v1037 = vmul.f32 %v1035, %v1036
    %v1038 = vsub.f32 1.0, %v1037
    %v1039 = vmul.f32 %v1036, %v1038
    %v1040 = vadd.f32 %v1036, %v1039
    %vm1041 = vweird.f32 %v1035
    %vm1042 = vweird.f32 %v1036
    %vm1043 = vmor %vm1041, %vm1042
    %v1044 = vsel %vm1043, %v1036, %v1040
    %v1045 = vand.u32 2147483647, %v1035
    %vm1046 = vcmp.eq.f32.partialorder %v1045, 8.507059e+37
    %v1047 = vand.u32 %v1035, 2147483648
    %v1048 = vor.u32 1.1754944e-38, %v1047
    %v1049 = vsel %vm1046, %v1048, %v1044
    %v1050 = vmul.f32 1.0, %v1049
    %v1052 = vrot.slane %v1003, 4
    %v1054 = vmul.f32 %v1027, %v1052
    %v1055 = vadd.f32 %v201, %v1054
    %v1056 = vtanh.pop %v1055
    %v1057 = vsub.f32 1.0, %v1050
    %v1058 = vmul.f32 %v1057, %v1056
    %v1059 = vrot.slane %v939, 6
    %v1061 = vmul.f32 %v1050, %v1059
    %v1062 = vadd.f32 %v1058, %v1061
    %1063 = vst.msk [vmem:[#allocation2 + $0x8] sm:$0x30] %vm580, %v1062
    %v1065 = vrot.slane %v1062, 4
    %v1066 = vsel %vm219, %v1065, 0
    %1068 = vmatpush.msra.mxu0 0.0
    %1069 = vmatpush.msra.mxu0 0.0
    %1070 = vmatpush.msra.mxu0 0.0
    %1071 = vmatpush.msra.mxu0 0.0
    %1072 = vmatpush.msra.mxu0 0.0
    %1073 = vmatpush.msra.mxu0 0.0
    %1074 = vmatpush.msra.mxu0 0.0
    %1075 = vmatpush.msra.mxu0 0.0
    %1076 = vmatpush.msra.mxu0 0.0
    %1077 = vmatpush.msra.mxu0 0.0
    %1078 = vmatpush.msra.mxu0 0.0
    %1079 = vmatpush.msra.mxu0 0.0
    %1080 = vmatpush.msra.mxu0 %v206
    %1081 = vmatpush.msra.mxu0 %v205
    %1082 = vmatpush.msra.mxu0 %v204
    %1083 = vmatpush.msra.mxu0 %v203
    %1084 = vmatmul.f32.gmra.mxu0 %v1066
    %v1085 = vpop.f32.mrf.mxu0
    %v1086 = vadd.f32 0.0, %v1085
    %1087 = vdwg.mxu0
    %1088 = vmatpush.msra.mxu0 0.0
    %1089 = vmatpush.msra.mxu0 0.0
    %1090 = vmatpush.msra.mxu0 0.0
    %1091 = vmatpush.msra.mxu0 0.0
    %1092 = vmatpush.msra.mxu0 0.0
    %1093 = vmatpush.msra.mxu0 0.0
    %1094 = vmatpush.msra.mxu0 0.0
    %1095 = vmatpush.msra.mxu0 0.0
    %1096 = vmatpush.msra.mxu0 0.0
    %1097 = vmatpush.msra.mxu0 0.0
    %1098 = vmatpush.msra.mxu0 0.0
    %1099 = vmatpush.msra.mxu0 0.0
    %1100 = vmatpush.msra.mxu0 %v211
    %1101 = vmatpush.msra.mxu0 %v210
    %1102 = vmatpush.msra.mxu0 %v209
    %1103 = vmatpush.msra.mxu0 %v208
    %1104 = vmatmul.f32.gmra.mxu0 %v1066
    %v1105 = vpop.f32.mrf.mxu0
    %v1106 = vadd.f32 0.0, %v1105
    %1107 = vdwg.mxu0
    %1108 = vmatpush.msra.mxu0 0.0
    %1109 = vmatpush.msra.mxu0 0.0
    %1110 = vmatpush.msra.mxu0 0.0
    %1111 = vmatpush.msra.mxu0 0.0
    %1112 = vmatpush.msra.mxu0 0.0
    %1113 = vmatpush.msra.mxu0 0.0
    %1114 = vmatpush.msra.mxu0 0.0
    %1115 = vmatpush.msra.mxu0 0.0
    %1116 = vmatpush.msra.mxu0 0.0
    %1117 = vmatpush.msra.mxu0 0.0
    %1118 = vmatpush.msra.mxu0 0.0
    %1119 = vmatpush.msra.mxu0 0.0
    %1120 = vmatpush.msra.mxu0 %v216
    %1121 = vmatpush.msra.mxu0 %v215
    %1122 = vmatpush.msra.mxu0 %v214
    %1123 = vmatpush.msra.mxu0 %v213
    %1124 = vmatmul.f32.gmra.mxu0 %v1066
    %v1125 = vpop.f32.mrf.mxu0
    %v1126 = vadd.f32 %v264, %v1125
    %1127 = vdwg.mxu0
    %v1129 = vrot.slane %v1086, 2
    %v1131 = vadd.f32 %v139, %v1129
    %v1132 = vxor.u32 %v1131, 2147483648
    %v1133 = vmul.f32 %v1132, 1.442695
    %v1134 = vpow.pop %v1133
    %v1135 = vadd.f32 %v1134, 1.0
    %v1136 = vrcp.pop %v1135
    %v1137 = vmul.f32 %v1135, %v1136
    %v1138 = vsub.f32 1.0, %v1137
    %v1139 = vmul.f32 %v1136, %v1138
    %v1140 = vadd.f32 %v1136, %v1139
    %vm1141 = vweird.f32 %v1135
    %vm1142 = vweird.f32 %v1136
    %vm1143 = vmor %vm1141, %vm1142
    %v1144 = vsel %vm1143, %v1136, %v1140
    %v1145 = vand.u32 2147483647, %v1135
    %vm1146 = vcmp.eq.f32.partialorder %v1145, 8.507059e+37
    %v1147 = vand.u32 %v1135, 2147483648
    %v1148 = vor.u32 1.1754944e-38, %v1147
    %v1149 = vsel %vm1146, %v1148, %v1144
    %v1150 = vmul.f32 1.0, %v1149
    %v1152 = vrot.slane %v1106, 2
    %v1154 = vadd.f32 %v170, %v1152
    %v1155 = vxor.u32 %v1154, 2147483648
    %v1156 = vmul.f32 %v1155, 1.442695
    %v1157 = vpow.pop %v1156
    %v1158 = vadd.f32 %v1157, 1.0
    %v1159 = vrcp.pop %v1158
    %v1160 = vmul.f32 %v1158, %v1159
    %v1161 = vsub.f32 1.0, %v1160
    %v1162 = vmul.f32 %v1159, %v1161
    %v1163 = vadd.f32 %v1159, %v1162
    %vm1164 = vweird.f32 %v1158
    %vm1165 = vweird.f32 %v1159
    %vm1166 = vmor %vm1164, %vm1165
    %v1167 = vsel %vm1166, %v1159, %v1163
    %v1168 = vand.u32 2147483647, %v1158
    %vm1169 = vcmp.eq.f32.partialorder %v1168, 8.507059e+37
    %v1170 = vand.u32 %v1158, 2147483648
    %v1171 = vor.u32 1.1754944e-38, %v1170
    %v1172 = vsel %vm1169, %v1171, %v1167
    %v1173 = vmul.f32 1.0, %v1172
    %v1175 = vrot.slane %v1126, 2
    %v1177 = vmul.f32 %v1150, %v1175
    %v1178 = vadd.f32 %v201, %v1177
    %v1179 = vtanh.pop %v1178
    %v1180 = vsub.f32 1.0, %v1173
    %v1181 = vmul.f32 %v1180, %v1179
    %v1182 = vrot.slane %v1062, 6
    %v1184 = vmul.f32 %v1173, %v1182
    %v1185 = vadd.f32 %v1181, %v1184
    %1186 = vst.msk [vmem:[#allocation2 + $0x8] sm:$0xc0] %vm704, %v1185
    %v1187 = vld [vmem:[#allocation2] sm:$0xff]
    %v1188 = vld [vmem:[#allocation2 + $0x8] sm:$0xff]
    %s1189 = scalar_lea.vmem [#allocation6], 96
    %v1190 = vld [vmem:[%s1189] sm:$0xff]
    %v1191 = vld [vmem:[%s1189 + $0x8] sm:$0xff]
    %v1192 = vld [vmem:[%s1189 + $0x10] sm:$0xff]
    %v1193 = vld [vmem:[%s1189 + $0x18] sm:$0xff]
    %s1194 = scalar_lea.vmem [#allocation9], 3
    %v1195 = vld [vmem:[%s1194] sm:$0x1]
    %v1197 = vperm.slane %v1195, 0
    %v1200 = vsel %vm219, %v1187, 0
    %v1203 = vsel %vm219, %v1188, 0
    %1205 = vmatpush.msra.mxu0 0.0
    %1206 = vmatpush.msra.mxu0 0.0
    %1207 = vmatpush.msra.mxu0 0.0
    %1208 = vmatpush.msra.mxu0 0.0
    %1209 = vmatpush.msra.mxu0 0.0
    %1210 = vmatpush.msra.mxu0 0.0
    %1211 = vmatpush.msra.mxu0 0.0
    %1212 = vmatpush.msra.mxu0 0.0
    %1213 = vmatpush.msra.mxu0 0.0
    %1214 = vmatpush.msra.mxu0 0.0
    %1215 = vmatpush.msra.mxu0 0.0
    %1216 = vmatpush.msra.mxu0 0.0
    %1217 = vmatpush.msra.mxu0 %v1193
    %1218 = vmatpush.msra.mxu0 %v1192
    %1219 = vmatpush.msra.mxu0 %v1191
    %1220 = vmatpush.msra.mxu0 %v1190
    %1221 = vmatmul.f32.gmra.mxu0 %v1200
    %v1222 = vpop.f32.mrf.mxu0
    %v1223 = vadd.f32 %v1197, %v1222
    %1224 = vmatmul.f32.gmra.mxu0 %v1203
    %v1225 = vpop.f32.mrf.mxu0
    %v1226 = vadd.f32 %v1197, %v1225
    %1227 = vdwg.mxu0
    %s1228 = scalar_lea.vmem [#allocation6], 128
    %v1229 = vld [vmem:[%s1228] sm:$0xff]
    %v1230 = vld [vmem:[%s1228 + $0x8] sm:$0xff]
    %v1231 = vld [vmem:[%s1228 + $0x10] sm:$0xff]
    %v1232 = vld [vmem:[%s1228 + $0x18] sm:$0xff]
    %s1233 = scalar_lea.vmem [#allocation9], 4
    %v1234 = vld [vmem:[%s1233] sm:$0x1]
    %v1236 = vperm.slane %v1234, 0
    %1238 = vmatpush.msra.mxu0 0.0
    %1239 = vmatpush.msra.mxu0 0.0
    %1240 = vmatpush.msra.mxu0 0.0
    %1241 = vmatpush.msra.mxu0 0.0
    %1242 = vmatpush.msra.mxu0 0.0
    %1243 = vmatpush.msra.mxu0 0.0
    %1244 = vmatpush.msra.mxu0 0.0
    %1245 = vmatpush.msra.mxu0 0.0
    %1246 = vmatpush.msra.mxu0 0.0
    %1247 = vmatpush.msra.mxu0 0.0
    %1248 = vmatpush.msra.mxu0 0.0
    %1249 = vmatpush.msra.mxu0 0.0
    %1250 = vmatpush.msra.mxu0 %v1232
    %1251 = vmatpush.msra.mxu0 %v1231
    %1252 = vmatpush.msra.mxu0 %v1230
    %1253 = vmatpush.msra.mxu0 %v1229
    %1254 = vmatmul.f32.gmra.mxu0 %v1200
    %v1255 = vpop.f32.mrf.mxu0
    %v1256 = vadd.f32 %v1236, %v1255
    %1257 = vmatmul.f32.gmra.mxu0 %v1203
    %v1258 = vpop.f32.mrf.mxu0
    %v1259 = vadd.f32 %v1236, %v1258
    %1260 = vdwg.mxu0
    %s1261 = scalar_lea.vmem [#allocation6], 160
    %v1262 = vld [vmem:[%s1261] sm:$0xff]
    %v1263 = vld [vmem:[%s1261 + $0x8] sm:$0xff]
    %v1264 = vld [vmem:[%s1261 + $0x10] sm:$0xff]
    %v1265 = vld [vmem:[%s1261 + $0x18] sm:$0xff]
    %s1266 = scalar_lea.vmem [#allocation9], 5
    %v1267 = vld [vmem:[%s1266] sm:$0x1]
    %v1269 = vperm.slane %v1267, 0
    %1271 = vmatpush.msra.mxu0 0.0
    %1272 = vmatpush.msra.mxu0 0.0
    %1273 = vmatpush.msra.mxu0 0.0
    %1274 = vmatpush.msra.mxu0 0.0
    %1275 = vmatpush.msra.mxu0 0.0
    %1276 = vmatpush.msra.mxu0 0.0
    %1277 = vmatpush.msra.mxu0 0.0
    %1278 = vmatpush.msra.mxu0 0.0
    %1279 = vmatpush.msra.mxu0 0.0
    %1280 = vmatpush.msra.mxu0 0.0
    %1281 = vmatpush.msra.mxu0 0.0
    %1282 = vmatpush.msra.mxu0 0.0
    %1283 = vmatpush.msra.mxu0 %v1265
    %1284 = vmatpush.msra.mxu0 %v1264
    %1285 = vmatpush.msra.mxu0 %v1263
    %1286 = vmatpush.msra.mxu0 %v1262
    %1287 = vmatmul.f32.gmra.mxu0 %v1200
    %v1288 = vpop.f32.mrf.mxu0
    %v1289 = vadd.f32 %v1269, %v1288
    %1290 = vmatmul.f32.gmra.mxu0 %v1203
    %v1291 = vpop.f32.mrf.mxu0
    %v1292 = vadd.f32 %v1269, %v1291
    %1293 = vdwg.mxu0
    %s1294 = scalar_lea.vmem [#allocation8], 96
    %v1295 = vld [vmem:[%s1294] sm:$0xff]
    %v1296 = vld [vmem:[%s1294 + $0x8] sm:$0xff]
    %v1297 = vld [vmem:[%s1294 + $0x10] sm:$0xff]
    %v1298 = vld [vmem:[%s1294 + $0x18] sm:$0xff]
    %s1299 = scalar_lea.vmem [#allocation8], 128
    %v1300 = vld [vmem:[%s1299] sm:$0xff]
    %v1301 = vld [vmem:[%s1299 + $0x8] sm:$0xff]
    %v1302 = vld [vmem:[%s1299 + $0x10] sm:$0xff]
    %v1303 = vld [vmem:[%s1299 + $0x18] sm:$0xff]
    %s1304 = scalar_lea.vmem [#allocation8], 160
    %v1305 = vld [vmem:[%s1304] sm:$0xff]
    %v1306 = vld [vmem:[%s1304 + $0x8] sm:$0xff]
    %v1307 = vld [vmem:[%s1304 + $0x10] sm:$0xff]
    %v1308 = vld [vmem:[%s1304 + $0x18] sm:$0xff]
    %s1309 = scalar_lea.vmem %s6, 1
    %v1310 = vld [vmem:[%s1309] sm:$0x1]
    %s1311 = scalar_lea.vmem [#allocation3], 2
    %v1312 = vld [vmem:[%s1311] sm:$0x3]
    %v1314 = vsel %vm219, %v1312, 0
    %1316 = vmatpush.msra.mxu0 0.0
    %1317 = vmatpush.msra.mxu0 0.0
    %1318 = vmatpush.msra.mxu0 0.0
    %1319 = vmatpush.msra.mxu0 0.0
    %1320 = vmatpush.msra.mxu0 0.0
    %1321 = vmatpush.msra.mxu0 0.0
    %1322 = vmatpush.msra.mxu0 0.0
    %1323 = vmatpush.msra.mxu0 0.0
    %1324 = vmatpush.msra.mxu0 0.0
    %1325 = vmatpush.msra.mxu0 0.0
    %1326 = vmatpush.msra.mxu0 0.0
    %1327 = vmatpush.msra.mxu0 0.0
    %1328 = vmatpush.msra.mxu0 %v1298
    %1329 = vmatpush.msra.mxu0 %v1297
    %1330 = vmatpush.msra.mxu0 %v1296
    %1331 = vmatpush.msra.mxu0 %v1295
    %1332 = vmatmul.f32.gmra.mxu0 %v1314
    %v1333 = vpop.f32.mrf.mxu0
    %v1334 = vadd.f32 0.0, %v1333
    %1335 = vdwg.mxu0
    %1336 = vmatpush.msra.mxu0 0.0
    %1337 = vmatpush.msra.mxu0 0.0
    %1338 = vmatpush.msra.mxu0 0.0
    %1339 = vmatpush.msra.mxu0 0.0
    %1340 = vmatpush.msra.mxu0 0.0
    %1341 = vmatpush.msra.mxu0 0.0
    %1342 = vmatpush.msra.mxu0 0.0
    %1343 = vmatpush.msra.mxu0 0.0
    %1344 = vmatpush.msra.mxu0 0.0
    %1345 = vmatpush.msra.mxu0 0.0
    %1346 = vmatpush.msra.mxu0 0.0
    %1347 = vmatpush.msra.mxu0 0.0
    %1348 = vmatpush.msra.mxu0 %v1303
    %1349 = vmatpush.msra.mxu0 %v1302
    %1350 = vmatpush.msra.mxu0 %v1301
    %1351 = vmatpush.msra.mxu0 %v1300
    %1352 = vmatmul.f32.gmra.mxu0 %v1314
    %v1353 = vpop.f32.mrf.mxu0
    %v1354 = vadd.f32 0.0, %v1353
    %1355 = vdwg.mxu0
    %v1357 = vperm.slane %v1310, 0
    %1359 = vmatpush.msra.mxu0 0.0
    %1360 = vmatpush.msra.mxu0 0.0
    %1361 = vmatpush.msra.mxu0 0.0
    %1362 = vmatpush.msra.mxu0 0.0
    %1363 = vmatpush.msra.mxu0 0.0
    %1364 = vmatpush.msra.mxu0 0.0
    %1365 = vmatpush.msra.mxu0 0.0
    %1366 = vmatpush.msra.mxu0 0.0
    %1367 = vmatpush.msra.mxu0 0.0
    %1368 = vmatpush.msra.mxu0 0.0
    %1369 = vmatpush.msra.mxu0 0.0
    %1370 = vmatpush.msra.mxu0 0.0
    %1371 = vmatpush.msra.mxu0 %v1308
    %1372 = vmatpush.msra.mxu0 %v1307
    %1373 = vmatpush.msra.mxu0 %v1306
    %1374 = vmatpush.msra.mxu0 %v1305
    %1375 = vmatmul.f32.gmra.mxu0 %v1314
    %v1376 = vpop.f32.mrf.mxu0
    %v1377 = vadd.f32 %v1357, %v1376
    %1378 = vdwg.mxu0
    %v1379 = vadd.f32 %v1223, %v1334
    %v1380 = vxor.u32 %v1379, 2147483648
    %v1381 = vmul.f32 %v1380, 1.442695
    %v1382 = vpow.pop %v1381
    %v1383 = vadd.f32 %v1382, 1.0
    %v1384 = vrcp.pop %v1383
    %v1385 = vmul.f32 %v1383, %v1384
    %v1386 = vsub.f32 1.0, %v1385
    %v1387 = vmul.f32 %v1384, %v1386
    %v1388 = vadd.f32 %v1384, %v1387
    %vm1389 = vweird.f32 %v1383
    %vm1390 = vweird.f32 %v1384
    %vm1391 = vmor %vm1389, %vm1390
    %v1392 = vsel %vm1391, %v1384, %v1388
    %v1393 = vand.u32 2147483647, %v1383
    %vm1394 = vcmp.eq.f32.partialorder %v1393, 8.507059e+37
    %v1395 = vand.u32 %v1383, 2147483648
    %v1396 = vor.u32 1.1754944e-38, %v1395
    %v1397 = vsel %vm1394, %v1396, %v1392
    %v1398 = vmul.f32 1.0, %v1397
    %v1399 = vadd.f32 %v1256, %v1354
    %v1400 = vxor.u32 %v1399, 2147483648
    %v1401 = vmul.f32 %v1400, 1.442695
    %v1402 = vpow.pop %v1401
    %v1403 = vadd.f32 %v1402, 1.0
    %v1404 = vrcp.pop %v1403
    %v1405 = vmul.f32 %v1403, %v1404
    %v1406 = vsub.f32 1.0, %v1405
    %v1407 = vmul.f32 %v1404, %v1406
    %v1408 = vadd.f32 %v1404, %v1407
    %vm1409 = vweird.f32 %v1403
    %vm1410 = vweird.f32 %v1404
    %vm1411 = vmor %vm1409, %vm1410
    %v1412 = vsel %vm1411, %v1404, %v1408
    %v1413 = vand.u32 2147483647, %v1403
    %vm1414 = vcmp.eq.f32.partialorder %v1413, 8.507059e+37
    %v1415 = vand.u32 %v1403, 2147483648
    %v1416 = vor.u32 1.1754944e-38, %v1415
    %v1417 = vsel %vm1414, %v1416, %v1412
    %v1418 = vmul.f32 1.0, %v1417
    %v1419 = vmul.f32 %v1398, %v1377
    %v1420 = vadd.f32 %v1289, %v1419
    %v1421 = vtanh.pop %v1420
    %v1422 = vsub.f32 1.0, %v1418
    %v1423 = vmul.f32 %v1422, %v1421
    %v1424 = vmul.f32 %v1418, %v1312
    %v1425 = vadd.f32 %v1423, %v1424
    %vm1426 = vcmp.eq.s32.totalorder %v102, 1
    %v1427 = vsel %vm1426, 1, 0
    %1428 = vset.pattern.permute.xlu0 0
    %1429 = vperm.xlu0 %1428, %v1427
    %v1430 = vpop.permute.xlu0 %1429
    %vm1431 = vcmp.eq.s32.totalorder %v1430, 1
    %v1432 = vsel %vm1431, %v1425, 0.0
    %v1434 = vsel %vm219, %v1425, 0
    %1436 = vmatpush.msra.mxu0 0.0
    %1437 = vmatpush.msra.mxu0 0.0
    %1438 = vmatpush.msra.mxu0 0.0
    %1439 = vmatpush.msra.mxu0 0.0
    %1440 = vmatpush.msra.mxu0 0.0
    %1441 = vmatpush.msra.mxu0 0.0
    %1442 = vmatpush.msra.mxu0 0.0
    %1443 = vmatpush.msra.mxu0 0.0
    %1444 = vmatpush.msra.mxu0 0.0
    %1445 = vmatpush.msra.mxu0 0.0
    %1446 = vmatpush.msra.mxu0 0.0
    %1447 = vmatpush.msra.mxu0 0.0
    %1448 = vmatpush.msra.mxu0 %v1298
    %1449 = vmatpush.msra.mxu0 %v1297
    %1450 = vmatpush.msra.mxu0 %v1296
    %1451 = vmatpush.msra.mxu0 %v1295
    %1452 = vmatmul.f32.gmra.mxu0 %v1434
    %v1453 = vpop.f32.mrf.mxu0
    %v1454 = vadd.f32 0.0, %v1453
    %1455 = vdwg.mxu0
    %1456 = vmatpush.msra.mxu0 0.0
    %1457 = vmatpush.msra.mxu0 0.0
    %1458 = vmatpush.msra.mxu0 0.0
    %1459 = vmatpush.msra.mxu0 0.0
    %1460 = vmatpush.msra.mxu0 0.0
    %1461 = vmatpush.msra.mxu0 0.0
    %1462 = vmatpush.msra.mxu0 0.0
    %1463 = vmatpush.msra.mxu0 0.0
    %1464 = vmatpush.msra.mxu0 0.0
    %1465 = vmatpush.msra.mxu0 0.0
    %1466 = vmatpush.msra.mxu0 0.0
    %1467 = vmatpush.msra.mxu0 0.0
    %1468 = vmatpush.msra.mxu0 %v1303
    %1469 = vmatpush.msra.mxu0 %v1302
    %1470 = vmatpush.msra.mxu0 %v1301
    %1471 = vmatpush.msra.mxu0 %v1300
    %1472 = vmatmul.f32.gmra.mxu0 %v1434
    %v1473 = vpop.f32.mrf.mxu0
    %v1474 = vadd.f32 0.0, %v1473
    %1475 = vdwg.mxu0
    %1476 = vmatpush.msra.mxu0 0.0
    %1477 = vmatpush.msra.mxu0 0.0
    %1478 = vmatpush.msra.mxu0 0.0
    %1479 = vmatpush.msra.mxu0 0.0
    %1480 = vmatpush.msra.mxu0 0.0
    %1481 = vmatpush.msra.mxu0 0.0
    %1482 = vmatpush.msra.mxu0 0.0
    %1483 = vmatpush.msra.mxu0 0.0
    %1484 = vmatpush.msra.mxu0 0.0
    %1485 = vmatpush.msra.mxu0 0.0
    %1486 = vmatpush.msra.mxu0 0.0
    %1487 = vmatpush.msra.mxu0 0.0
    %1488 = vmatpush.msra.mxu0 %v1308
    %1489 = vmatpush.msra.mxu0 %v1307
    %1490 = vmatpush.msra.mxu0 %v1306
    %1491 = vmatpush.msra.mxu0 %v1305
    %1492 = vmatmul.f32.gmra.mxu0 %v1434
    %v1493 = vpop.f32.mrf.mxu0
    %v1494 = vadd.f32 %v1357, %v1493
    %1495 = vdwg.mxu0
    %v1497 = vrot.slane %v1454, 6
    %v1499 = vadd.f32 %v1223, %v1497
    %v1500 = vxor.u32 %v1499, 2147483648
    %v1501 = vmul.f32 %v1500, 1.442695
    %v1502 = vpow.pop %v1501
    %v1503 = vadd.f32 %v1502, 1.0
    %v1504 = vrcp.pop %v1503
    %v1505 = vmul.f32 %v1503, %v1504
    %v1506 = vsub.f32 1.0, %v1505
    %v1507 = vmul.f32 %v1504, %v1506
    %v1508 = vadd.f32 %v1504, %v1507
    %vm1509 = vweird.f32 %v1503
    %vm1510 = vweird.f32 %v1504
    %vm1511 = vmor %vm1509, %vm1510
    %v1512 = vsel %vm1511, %v1504, %v1508
    %v1513 = vand.u32 2147483647, %v1503
    %vm1514 = vcmp.eq.f32.partialorder %v1513, 8.507059e+37
    %v1515 = vand.u32 %v1503, 2147483648
    %v1516 = vor.u32 1.1754944e-38, %v1515
    %v1517 = vsel %vm1514, %v1516, %v1512
    %v1518 = vmul.f32 1.0, %v1517
    %v1520 = vrot.slane %v1474, 6
    %v1522 = vadd.f32 %v1256, %v1520
    %v1523 = vxor.u32 %v1522, 2147483648
    %v1524 = vmul.f32 %v1523, 1.442695
    %v1525 = vpow.pop %v1524
    %v1526 = vadd.f32 %v1525, 1.0
    %v1527 = vrcp.pop %v1526
    %v1528 = vmul.f32 %v1526, %v1527
    %v1529 = vsub.f32 1.0, %v1528
    %v1530 = vmul.f32 %v1527, %v1529
    %v1531 = vadd.f32 %v1527, %v1530
    %vm1532 = vweird.f32 %v1526
    %vm1533 = vweird.f32 %v1527
    %vm1534 = vmor %vm1532, %vm1533
    %v1535 = vsel %vm1534, %v1527, %v1531
    %v1536 = vand.u32 2147483647, %v1526
    %vm1537 = vcmp.eq.f32.partialorder %v1536, 8.507059e+37
    %v1538 = vand.u32 %v1526, 2147483648
    %v1539 = vor.u32 1.1754944e-38, %v1538
    %v1540 = vsel %vm1537, %v1539, %v1535
    %v1541 = vmul.f32 1.0, %v1540
    %v1543 = vrot.slane %v1494, 6
    %v1545 = vmul.f32 %v1518, %v1543
    %v1546 = vadd.f32 %v1289, %v1545
    %v1547 = vtanh.pop %v1546
    %v1548 = vsub.f32 1.0, %v1541
    %v1549 = vmul.f32 %v1548, %v1547
    %v1550 = vrot.slane %v1425, 6
    %v1552 = vmul.f32 %v1541, %v1550
    %v1553 = vadd.f32 %v1549, %v1552
    %vm1554 = vcmp.eq.s32.totalorder %v102, 2
    %v1555 = vsel %vm1554, 1, 0
    %1556 = vset.pattern.permute.xlu0 0
    %1557 = vperm.xlu0 %1556, %v1555
    %v1558 = vpop.permute.xlu0 %1557
    %vm1559 = vcmp.eq.s32.totalorder %v1558, 1
    %v1561 = vrot.slane %v1553, 2
    %v1563 = vsel %vm1559, %v1561, %v1432
    %v1564 = vsel %vm219, %v1561, 0
    %1566 = vmatpush.msra.mxu0 0.0
    %1567 = vmatpush.msra.mxu0 0.0
    %1568 = vmatpush.msra.mxu0 0.0
    %1569 = vmatpush.msra.mxu0 0.0
    %1570 = vmatpush.msra.mxu0 0.0
    %1571 = vmatpush.msra.mxu0 0.0
    %1572 = vmatpush.msra.mxu0 0.0
    %1573 = vmatpush.msra.mxu0 0.0
    %1574 = vmatpush.msra.mxu0 0.0
    %1575 = vmatpush.msra.mxu0 0.0
    %1576 = vmatpush.msra.mxu0 0.0
    %1577 = vmatpush.msra.mxu0 0.0
    %1578 = vmatpush.msra.mxu0 %v1298
    %1579 = vmatpush.msra.mxu0 %v1297
    %1580 = vmatpush.msra.mxu0 %v1296
    %1581 = vmatpush.msra.mxu0 %v1295
    %1582 = vmatmul.f32.gmra.mxu0 %v1564
    %v1583 = vpop.f32.mrf.mxu0
    %v1584 = vadd.f32 0.0, %v1583
    %1585 = vdwg.mxu0
    %1586 = vmatpush.msra.mxu0 0.0
    %1587 = vmatpush.msra.mxu0 0.0
    %1588 = vmatpush.msra.mxu0 0.0
    %1589 = vmatpush.msra.mxu0 0.0
    %1590 = vmatpush.msra.mxu0 0.0
    %1591 = vmatpush.msra.mxu0 0.0
    %1592 = vmatpush.msra.mxu0 0.0
    %1593 = vmatpush.msra.mxu0 0.0
    %1594 = vmatpush.msra.mxu0 0.0
    %1595 = vmatpush.msra.mxu0 0.0
    %1596 = vmatpush.msra.mxu0 0.0
    %1597 = vmatpush.msra.mxu0 0.0
    %1598 = vmatpush.msra.mxu0 %v1303
    %1599 = vmatpush.msra.mxu0 %v1302
    %1600 = vmatpush.msra.mxu0 %v1301
    %1601 = vmatpush.msra.mxu0 %v1300
    %1602 = vmatmul.f32.gmra.mxu0 %v1564
    %v1603 = vpop.f32.mrf.mxu0
    %v1604 = vadd.f32 0.0, %v1603
    %1605 = vdwg.mxu0
    %1606 = vmatpush.msra.mxu0 0.0
    %1607 = vmatpush.msra.mxu0 0.0
    %1608 = vmatpush.msra.mxu0 0.0
    %1609 = vmatpush.msra.mxu0 0.0
    %1610 = vmatpush.msra.mxu0 0.0
    %1611 = vmatpush.msra.mxu0 0.0
    %1612 = vmatpush.msra.mxu0 0.0
    %1613 = vmatpush.msra.mxu0 0.0
    %1614 = vmatpush.msra.mxu0 0.0
    %1615 = vmatpush.msra.mxu0 0.0
    %1616 = vmatpush.msra.mxu0 0.0
    %1617 = vmatpush.msra.mxu0 0.0
    %1618 = vmatpush.msra.mxu0 %v1308
    %1619 = vmatpush.msra.mxu0 %v1307
    %1620 = vmatpush.msra.mxu0 %v1306
    %1621 = vmatpush.msra.mxu0 %v1305
    %1622 = vmatmul.f32.gmra.mxu0 %v1564
    %v1623 = vpop.f32.mrf.mxu0
    %v1624 = vadd.f32 %v1357, %v1623
    %1625 = vdwg.mxu0
    %v1627 = vrot.slane %v1584, 4
    %v1629 = vadd.f32 %v1223, %v1627
    %v1630 = vxor.u32 %v1629, 2147483648
    %v1631 = vmul.f32 %v1630, 1.442695
    %v1632 = vpow.pop %v1631
    %v1633 = vadd.f32 %v1632, 1.0
    %v1634 = vrcp.pop %v1633
    %v1635 = vmul.f32 %v1633, %v1634
    %v1636 = vsub.f32 1.0, %v1635
    %v1637 = vmul.f32 %v1634, %v1636
    %v1638 = vadd.f32 %v1634, %v1637
    %vm1639 = vweird.f32 %v1633
    %vm1640 = vweird.f32 %v1634
    %vm1641 = vmor %vm1639, %vm1640
    %v1642 = vsel %vm1641, %v1634, %v1638
    %v1643 = vand.u32 2147483647, %v1633
    %vm1644 = vcmp.eq.f32.partialorder %v1643, 8.507059e+37
    %v1645 = vand.u32 %v1633, 2147483648
    %v1646 = vor.u32 1.1754944e-38, %v1645
    %v1647 = vsel %vm1644, %v1646, %v1642
    %v1648 = vmul.f32 1.0, %v1647
    %v1650 = vrot.slane %v1604, 4
    %v1652 = vadd.f32 %v1256, %v1650
    %v1653 = vxor.u32 %v1652, 2147483648
    %v1654 = vmul.f32 %v1653, 1.442695
    %v1655 = vpow.pop %v1654
    %v1656 = vadd.f32 %v1655, 1.0
    %v1657 = vrcp.pop %v1656
    %v1658 = vmul.f32 %v1656, %v1657
    %v1659 = vsub.f32 1.0, %v1658
    %v1660 = vmul.f32 %v1657, %v1659
    %v1661 = vadd.f32 %v1657, %v1660
    %vm1662 = vweird.f32 %v1656
    %vm1663 = vweird.f32 %v1657
    %vm1664 = vmor %vm1662, %vm1663
    %v1665 = vsel %vm1664, %v1657, %v1661
    %v1666 = vand.u32 2147483647, %v1656
    %vm1667 = vcmp.eq.f32.partialorder %v1666, 8.507059e+37
    %v1668 = vand.u32 %v1656, 2147483648
    %v1669 = vor.u32 1.1754944e-38, %v1668
    %v1670 = vsel %vm1667, %v1669, %v1665
    %v1671 = vmul.f32 1.0, %v1670
    %v1673 = vrot.slane %v1624, 4
    %v1675 = vmul.f32 %v1648, %v1673
    %v1676 = vadd.f32 %v1289, %v1675
    %v1677 = vtanh.pop %v1676
    %v1678 = vsub.f32 1.0, %v1671
    %v1679 = vmul.f32 %v1678, %v1677
    %v1680 = vrot.slane %v1553, 6
    %v1682 = vmul.f32 %v1671, %v1680
    %v1683 = vadd.f32 %v1679, %v1682
    %vm1684 = vcmp.eq.s32.totalorder %v102, 3
    %v1685 = vsel %vm1684, 1, 0
    %1686 = vset.pattern.permute.xlu0 0
    %1687 = vperm.xlu0 %1686, %v1685
    %v1688 = vpop.permute.xlu0 %1687
    %vm1689 = vcmp.eq.s32.totalorder %v1688, 1
    %v1691 = vrot.slane %v1683, 4
    %v1693 = vsel %vm1689, %v1691, %v1563
    %v1694 = vsel %vm219, %v1691, 0
    %1696 = vmatpush.msra.mxu0 0.0
    %1697 = vmatpush.msra.mxu0 0.0
    %1698 = vmatpush.msra.mxu0 0.0
    %1699 = vmatpush.msra.mxu0 0.0
    %1700 = vmatpush.msra.mxu0 0.0
    %1701 = vmatpush.msra.mxu0 0.0
    %1702 = vmatpush.msra.mxu0 0.0
    %1703 = vmatpush.msra.mxu0 0.0
    %1704 = vmatpush.msra.mxu0 0.0
    %1705 = vmatpush.msra.mxu0 0.0
    %1706 = vmatpush.msra.mxu0 0.0
    %1707 = vmatpush.msra.mxu0 0.0
    %1708 = vmatpush.msra.mxu0 %v1298
    %1709 = vmatpush.msra.mxu0 %v1297
    %1710 = vmatpush.msra.mxu0 %v1296
    %1711 = vmatpush.msra.mxu0 %v1295
    %1712 = vmatmul.f32.gmra.mxu0 %v1694
    %v1713 = vpop.f32.mrf.mxu0
    %v1714 = vadd.f32 0.0, %v1713
    %1715 = vdwg.mxu0
    %1716 = vmatpush.msra.mxu0 0.0
    %1717 = vmatpush.msra.mxu0 0.0
    %1718 = vmatpush.msra.mxu0 0.0
    %1719 = vmatpush.msra.mxu0 0.0
    %1720 = vmatpush.msra.mxu0 0.0
    %1721 = vmatpush.msra.mxu0 0.0
    %1722 = vmatpush.msra.mxu0 0.0
    %1723 = vmatpush.msra.mxu0 0.0
    %1724 = vmatpush.msra.mxu0 0.0
    %1725 = vmatpush.msra.mxu0 0.0
    %1726 = vmatpush.msra.mxu0 0.0
    %1727 = vmatpush.msra.mxu0 0.0
    %1728 = vmatpush.msra.mxu0 %v1303
    %1729 = vmatpush.msra.mxu0 %v1302
    %1730 = vmatpush.msra.mxu0 %v1301
    %1731 = vmatpush.msra.mxu0 %v1300
    %1732 = vmatmul.f32.gmra.mxu0 %v1694
    %v1733 = vpop.f32.mrf.mxu0
    %v1734 = vadd.f32 0.0, %v1733
    %1735 = vdwg.mxu0
    %1736 = vmatpush.msra.mxu0 0.0
    %1737 = vmatpush.msra.mxu0 0.0
    %1738 = vmatpush.msra.mxu0 0.0
    %1739 = vmatpush.msra.mxu0 0.0
    %1740 = vmatpush.msra.mxu0 0.0
    %1741 = vmatpush.msra.mxu0 0.0
    %1742 = vmatpush.msra.mxu0 0.0
    %1743 = vmatpush.msra.mxu0 0.0
    %1744 = vmatpush.msra.mxu0 0.0
    %1745 = vmatpush.msra.mxu0 0.0
    %1746 = vmatpush.msra.mxu0 0.0
    %1747 = vmatpush.msra.mxu0 0.0
    %1748 = vmatpush.msra.mxu0 %v1308
    %1749 = vmatpush.msra.mxu0 %v1307
    %1750 = vmatpush.msra.mxu0 %v1306
    %1751 = vmatpush.msra.mxu0 %v1305
    %1752 = vmatmul.f32.gmra.mxu0 %v1694
    %v1753 = vpop.f32.mrf.mxu0
    %v1754 = vadd.f32 %v1357, %v1753
    %1755 = vdwg.mxu0
    %v1757 = vrot.slane %v1714, 2
    %v1759 = vadd.f32 %v1223, %v1757
    %v1760 = vxor.u32 %v1759, 2147483648
    %v1761 = vmul.f32 %v1760, 1.442695
    %v1762 = vpow.pop %v1761
    %v1763 = vadd.f32 %v1762, 1.0
    %v1764 = vrcp.pop %v1763
    %v1765 = vmul.f32 %v1763, %v1764
    %v1766 = vsub.f32 1.0, %v1765
    %v1767 = vmul.f32 %v1764, %v1766
    %v1768 = vadd.f32 %v1764, %v1767
    %vm1769 = vweird.f32 %v1763
    %vm1770 = vweird.f32 %v1764
    %vm1771 = vmor %vm1769, %vm1770
    %v1772 = vsel %vm1771, %v1764, %v1768
    %v1773 = vand.u32 2147483647, %v1763
    %vm1774 = vcmp.eq.f32.partialorder %v1773, 8.507059e+37
    %v1775 = vand.u32 %v1763, 2147483648
    %v1776 = vor.u32 1.1754944e-38, %v1775
    %v1777 = vsel %vm1774, %v1776, %v1772
    %v1778 = vmul.f32 1.0, %v1777
    %v1780 = vrot.slane %v1734, 2
    %v1782 = vadd.f32 %v1256, %v1780
    %v1783 = vxor.u32 %v1782, 2147483648
    %v1784 = vmul.f32 %v1783, 1.442695
    %v1785 = vpow.pop %v1784
    %v1786 = vadd.f32 %v1785, 1.0
    %v1787 = vrcp.pop %v1786
    %v1788 = vmul.f32 %v1786, %v1787
    %v1789 = vsub.f32 1.0, %v1788
    %v1790 = vmul.f32 %v1787, %v1789
    %v1791 = vadd.f32 %v1787, %v1790
    %vm1792 = vweird.f32 %v1786
    %vm1793 = vweird.f32 %v1787
    %vm1794 = vmor %vm1792, %vm1793
    %v1795 = vsel %vm1794, %v1787, %v1791
    %v1796 = vand.u32 2147483647, %v1786
    %vm1797 = vcmp.eq.f32.partialorder %v1796, 8.507059e+37
    %v1798 = vand.u32 %v1786, 2147483648
    %v1799 = vor.u32 1.1754944e-38, %v1798
    %v1800 = vsel %vm1797, %v1799, %v1795
    %v1801 = vmul.f32 1.0, %v1800
    %v1803 = vrot.slane %v1754, 2
    %v1805 = vmul.f32 %v1778, %v1803
    %v1806 = vadd.f32 %v1289, %v1805
    %v1807 = vtanh.pop %v1806
    %v1808 = vsub.f32 1.0, %v1801
    %v1809 = vmul.f32 %v1808, %v1807
    %v1810 = vrot.slane %v1683, 6
    %v1812 = vmul.f32 %v1801, %v1810
    %v1813 = vadd.f32 %v1809, %v1812
    %vm1814 = vcmp.eq.s32.totalorder %v102, 4
    %v1815 = vsel %vm1814, 1, 0
    %1816 = vset.pattern.permute.xlu0 0
    %1817 = vperm.xlu0 %1816, %v1815
    %v1818 = vpop.permute.xlu0 %1817
    %vm1819 = vcmp.eq.s32.totalorder %v1818, 1
    %v1821 = vrot.slane %v1813, 6
    %v1823 = vsel %vm1819, %v1821, %v1693
    %v1824 = vsel %vm219, %v1821, 0
    %1826 = vmatpush.msra.mxu0 0.0
    %1827 = vmatpush.msra.mxu0 0.0
    %1828 = vmatpush.msra.mxu0 0.0
    %1829 = vmatpush.msra.mxu0 0.0
    %1830 = vmatpush.msra.mxu0 0.0
    %1831 = vmatpush.msra.mxu0 0.0
    %1832 = vmatpush.msra.mxu0 0.0
    %1833 = vmatpush.msra.mxu0 0.0
    %1834 = vmatpush.msra.mxu0 0.0
    %1835 = vmatpush.msra.mxu0 0.0
    %1836 = vmatpush.msra.mxu0 0.0
    %1837 = vmatpush.msra.mxu0 0.0
    %1838 = vmatpush.msra.mxu0 %v1298
    %1839 = vmatpush.msra.mxu0 %v1297
    %1840 = vmatpush.msra.mxu0 %v1296
    %1841 = vmatpush.msra.mxu0 %v1295
    %1842 = vmatmul.f32.gmra.mxu0 %v1824
    %v1843 = vpop.f32.mrf.mxu0
    %v1844 = vadd.f32 0.0, %v1843
    %1845 = vdwg.mxu0
    %1846 = vmatpush.msra.mxu0 0.0
    %1847 = vmatpush.msra.mxu0 0.0
    %1848 = vmatpush.msra.mxu0 0.0
    %1849 = vmatpush.msra.mxu0 0.0
    %1850 = vmatpush.msra.mxu0 0.0
    %1851 = vmatpush.msra.mxu0 0.0
    %1852 = vmatpush.msra.mxu0 0.0
    %1853 = vmatpush.msra.mxu0 0.0
    %1854 = vmatpush.msra.mxu0 0.0
    %1855 = vmatpush.msra.mxu0 0.0
    %1856 = vmatpush.msra.mxu0 0.0
    %1857 = vmatpush.msra.mxu0 0.0
    %1858 = vmatpush.msra.mxu0 %v1303
    %1859 = vmatpush.msra.mxu0 %v1302
    %1860 = vmatpush.msra.mxu0 %v1301
    %1861 = vmatpush.msra.mxu0 %v1300
    %1862 = vmatmul.f32.gmra.mxu0 %v1824
    %v1863 = vpop.f32.mrf.mxu0
    %v1864 = vadd.f32 0.0, %v1863
    %1865 = vdwg.mxu0
    %1866 = vmatpush.msra.mxu0 0.0
    %1867 = vmatpush.msra.mxu0 0.0
    %1868 = vmatpush.msra.mxu0 0.0
    %1869 = vmatpush.msra.mxu0 0.0
    %1870 = vmatpush.msra.mxu0 0.0
    %1871 = vmatpush.msra.mxu0 0.0
    %1872 = vmatpush.msra.mxu0 0.0
    %1873 = vmatpush.msra.mxu0 0.0
    %1874 = vmatpush.msra.mxu0 0.0
    %1875 = vmatpush.msra.mxu0 0.0
    %1876 = vmatpush.msra.mxu0 0.0
    %1877 = vmatpush.msra.mxu0 0.0
    %1878 = vmatpush.msra.mxu0 %v1308
    %1879 = vmatpush.msra.mxu0 %v1307
    %1880 = vmatpush.msra.mxu0 %v1306
    %1881 = vmatpush.msra.mxu0 %v1305
    %1882 = vmatmul.f32.gmra.mxu0 %v1824
    %v1883 = vpop.f32.mrf.mxu0
    %v1884 = vadd.f32 %v1357, %v1883
    %1885 = vdwg.mxu0
    %v1886 = vadd.f32 %v1226, %v1844
    %v1887 = vxor.u32 %v1886, 2147483648
    %v1888 = vmul.f32 %v1887, 1.442695
    %v1889 = vpow.pop %v1888
    %v1890 = vadd.f32 %v1889, 1.0
    %v1891 = vrcp.pop %v1890
    %v1892 = vmul.f32 %v1890, %v1891
    %v1893 = vsub.f32 1.0, %v1892
    %v1894 = vmul.f32 %v1891, %v1893
    %v1895 = vadd.f32 %v1891, %v1894
    %vm1896 = vweird.f32 %v1890
    %vm1897 = vweird.f32 %v1891
    %vm1898 = vmor %vm1896, %vm1897
    %v1899 = vsel %vm1898, %v1891, %v1895
    %v1900 = vand.u32 2147483647, %v1890
    %vm1901 = vcmp.eq.f32.partialorder %v1900, 8.507059e+37
    %v1902 = vand.u32 %v1890, 2147483648
    %v1903 = vor.u32 1.1754944e-38, %v1902
    %v1904 = vsel %vm1901, %v1903, %v1899
    %v1905 = vmul.f32 1.0, %v1904
    %v1906 = vadd.f32 %v1259, %v1864
    %v1907 = vxor.u32 %v1906, 2147483648
    %v1908 = vmul.f32 %v1907, 1.442695
    %v1909 = vpow.pop %v1908
    %v1910 = vadd.f32 %v1909, 1.0
    %v1911 = vrcp.pop %v1910
    %v1912 = vmul.f32 %v1910, %v1911
    %v1913 = vsub.f32 1.0, %v1912
    %v1914 = vmul.f32 %v1911, %v1913
    %v1915 = vadd.f32 %v1911, %v1914
    %vm1916 = vweird.f32 %v1910
    %vm1917 = vweird.f32 %v1911
    %vm1918 = vmor %vm1916, %vm1917
    %v1919 = vsel %vm1918, %v1911, %v1915
    %v1920 = vand.u32 2147483647, %v1910
    %vm1921 = vcmp.eq.f32.partialorder %v1920, 8.507059e+37
    %v1922 = vand.u32 %v1910, 2147483648
    %v1923 = vor.u32 1.1754944e-38, %v1922
    %v1924 = vsel %vm1921, %v1923, %v1919
    %v1925 = vmul.f32 1.0, %v1924
    %v1926 = vmul.f32 %v1905, %v1884
    %v1927 = vadd.f32 %v1292, %v1926
    %v1928 = vtanh.pop %v1927
    %v1929 = vsub.f32 1.0, %v1925
    %v1930 = vmul.f32 %v1929, %v1928
    %v1931 = vmul.f32 %v1925, %v1821
    %v1932 = vadd.f32 %v1930, %v1931
    %vm1933 = vcmp.eq.s32.totalorder %v102, 5
    %v1934 = vsel %vm1933, 1, 0
    %1935 = vset.pattern.permute.xlu0 0
    %1936 = vperm.xlu0 %1935, %v1934
    %v1937 = vpop.permute.xlu0 %1936
    %vm1938 = vcmp.eq.s32.totalorder %v1937, 1
    %v1939 = vsel %vm1938, %v1932, %v1823
    %v1941 = vsel %vm219, %v1932, 0
    %1943 = vmatpush.msra.mxu0 0.0
    %1944 = vmatpush.msra.mxu0 0.0
    %1945 = vmatpush.msra.mxu0 0.0
    %1946 = vmatpush.msra.mxu0 0.0
    %1947 = vmatpush.msra.mxu0 0.0
    %1948 = vmatpush.msra.mxu0 0.0
    %1949 = vmatpush.msra.mxu0 0.0
    %1950 = vmatpush.msra.mxu0 0.0
    %1951 = vmatpush.msra.mxu0 0.0
    %1952 = vmatpush.msra.mxu0 0.0
    %1953 = vmatpush.msra.mxu0 0.0
    %1954 = vmatpush.msra.mxu0 0.0
    %1955 = vmatpush.msra.mxu0 %v1298
    %1956 = vmatpush.msra.mxu0 %v1297
    %1957 = vmatpush.msra.mxu0 %v1296
    %1958 = vmatpush.msra.mxu0 %v1295
    %1959 = vmatmul.f32.gmra.mxu0 %v1941
    %v1960 = vpop.f32.mrf.mxu0
    %v1961 = vadd.f32 0.0, %v1960
    %1962 = vdwg.mxu0
    %1963 = vmatpush.msra.mxu0 0.0
    %1964 = vmatpush.msra.mxu0 0.0
    %1965 = vmatpush.msra.mxu0 0.0
    %1966 = vmatpush.msra.mxu0 0.0
    %1967 = vmatpush.msra.mxu0 0.0
    %1968 = vmatpush.msra.mxu0 0.0
    %1969 = vmatpush.msra.mxu0 0.0
    %1970 = vmatpush.msra.mxu0 0.0
    %1971 = vmatpush.msra.mxu0 0.0
    %1972 = vmatpush.msra.mxu0 0.0
    %1973 = vmatpush.msra.mxu0 0.0
    %1974 = vmatpush.msra.mxu0 0.0
    %1975 = vmatpush.msra.mxu0 %v1303
    %1976 = vmatpush.msra.mxu0 %v1302
    %1977 = vmatpush.msra.mxu0 %v1301
    %1978 = vmatpush.msra.mxu0 %v1300
    %1979 = vmatmul.f32.gmra.mxu0 %v1941
    %v1980 = vpop.f32.mrf.mxu0
    %v1981 = vadd.f32 0.0, %v1980
    %1982 = vdwg.mxu0
    %1983 = vmatpush.msra.mxu0 0.0
    %1984 = vmatpush.msra.mxu0 0.0
    %1985 = vmatpush.msra.mxu0 0.0
    %1986 = vmatpush.msra.mxu0 0.0
    %1987 = vmatpush.msra.mxu0 0.0
    %1988 = vmatpush.msra.mxu0 0.0
    %1989 = vmatpush.msra.mxu0 0.0
    %1990 = vmatpush.msra.mxu0 0.0
    %1991 = vmatpush.msra.mxu0 0.0
    %1992 = vmatpush.msra.mxu0 0.0
    %1993 = vmatpush.msra.mxu0 0.0
    %1994 = vmatpush.msra.mxu0 0.0
    %1995 = vmatpush.msra.mxu0 %v1308
    %1996 = vmatpush.msra.mxu0 %v1307
    %1997 = vmatpush.msra.mxu0 %v1306
    %1998 = vmatpush.msra.mxu0 %v1305
    %1999 = vmatmul.f32.gmra.mxu0 %v1941
    %v2000 = vpop.f32.mrf.mxu0
    %v2001 = vadd.f32 %v1357, %v2000
    %2002 = vdwg.mxu0
    %v2004 = vrot.slane %v1961, 6
    %v2006 = vadd.f32 %v1226, %v2004
    %v2007 = vxor.u32 %v2006, 2147483648
    %v2008 = vmul.f32 %v2007, 1.442695
    %v2009 = vpow.pop %v2008
    %v2010 = vadd.f32 %v2009, 1.0
    %v2011 = vrcp.pop %v2010
    %v2012 = vmul.f32 %v2010, %v2011
    %v2013 = vsub.f32 1.0, %v2012
    %v2014 = vmul.f32 %v2011, %v2013
    %v2015 = vadd.f32 %v2011, %v2014
    %vm2016 = vweird.f32 %v2010
    %vm2017 = vweird.f32 %v2011
    %vm2018 = vmor %vm2016, %vm2017
    %v2019 = vsel %vm2018, %v2011, %v2015
    %v2020 = vand.u32 2147483647, %v2010
    %vm2021 = vcmp.eq.f32.partialorder %v2020, 8.507059e+37
    %v2022 = vand.u32 %v2010, 2147483648
    %v2023 = vor.u32 1.1754944e-38, %v2022
    %v2024 = vsel %vm2021, %v2023, %v2019
    %v2025 = vmul.f32 1.0, %v2024
    %v2027 = vrot.slane %v1981, 6
    %v2029 = vadd.f32 %v1259, %v2027
    %v2030 = vxor.u32 %v2029, 2147483648
    %v2031 = vmul.f32 %v2030, 1.442695
    %v2032 = vpow.pop %v2031
    %v2033 = vadd.f32 %v2032, 1.0
    %v2034 = vrcp.pop %v2033
    %v2035 = vmul.f32 %v2033, %v2034
    %v2036 = vsub.f32 1.0, %v2035
    %v2037 = vmul.f32 %v2034, %v2036
    %v2038 = vadd.f32 %v2034, %v2037
    %vm2039 = vweird.f32 %v2033
    %vm2040 = vweird.f32 %v2034
    %vm2041 = vmor %vm2039, %vm2040
    %v2042 = vsel %vm2041, %v2034, %v2038
    %v2043 = vand.u32 2147483647, %v2033
    %vm2044 = vcmp.eq.f32.partialorder %v2043, 8.507059e+37
    %v2045 = vand.u32 %v2033, 2147483648
    %v2046 = vor.u32 1.1754944e-38, %v2045
    %v2047 = vsel %vm2044, %v2046, %v2042
    %v2048 = vmul.f32 1.0, %v2047
    %v2050 = vrot.slane %v2001, 6
    %v2052 = vmul.f32 %v2025, %v2050
    %v2053 = vadd.f32 %v1292, %v2052
    %v2054 = vtanh.pop %v2053
    %v2055 = vsub.f32 1.0, %v2048
    %v2056 = vmul.f32 %v2055, %v2054
    %v2057 = vrot.slane %v1932, 6
    %v2059 = vmul.f32 %v2048, %v2057
    %v2060 = vadd.f32 %v2056, %v2059
    %vm2061 = vcmp.eq.s32.totalorder %v102, 6
    %v2062 = vsel %vm2061, 1, 0
    %2063 = vset.pattern.permute.xlu0 0
    %2064 = vperm.xlu0 %2063, %v2062
    %v2065 = vpop.permute.xlu0 %2064
    %vm2066 = vcmp.eq.s32.totalorder %v2065, 1
    %v2068 = vrot.slane %v2060, 2
    %v2070 = vsel %vm2066, %v2068, %v1939
    %v2071 = vsel %vm219, %v2068, 0
    %2073 = vmatpush.msra.mxu0 0.0
    %2074 = vmatpush.msra.mxu0 0.0
    %2075 = vmatpush.msra.mxu0 0.0
    %2076 = vmatpush.msra.mxu0 0.0
    %2077 = vmatpush.msra.mxu0 0.0
    %2078 = vmatpush.msra.mxu0 0.0
    %2079 = vmatpush.msra.mxu0 0.0
    %2080 = vmatpush.msra.mxu0 0.0
    %2081 = vmatpush.msra.mxu0 0.0
    %2082 = vmatpush.msra.mxu0 0.0
    %2083 = vmatpush.msra.mxu0 0.0
    %2084 = vmatpush.msra.mxu0 0.0
    %2085 = vmatpush.msra.mxu0 %v1298
    %2086 = vmatpush.msra.mxu0 %v1297
    %2087 = vmatpush.msra.mxu0 %v1296
    %2088 = vmatpush.msra.mxu0 %v1295
    %2089 = vmatmul.f32.gmra.mxu0 %v2071
    %v2090 = vpop.f32.mrf.mxu0
    %v2091 = vadd.f32 0.0, %v2090
    %2092 = vdwg.mxu0
    %2093 = vmatpush.msra.mxu0 0.0
    %2094 = vmatpush.msra.mxu0 0.0
    %2095 = vmatpush.msra.mxu0 0.0
    %2096 = vmatpush.msra.mxu0 0.0
    %2097 = vmatpush.msra.mxu0 0.0
    %2098 = vmatpush.msra.mxu0 0.0
    %2099 = vmatpush.msra.mxu0 0.0
    %2100 = vmatpush.msra.mxu0 0.0
    %2101 = vmatpush.msra.mxu0 0.0
    %2102 = vmatpush.msra.mxu0 0.0
    %2103 = vmatpush.msra.mxu0 0.0
    %2104 = vmatpush.msra.mxu0 0.0
    %2105 = vmatpush.msra.mxu0 %v1303
    %2106 = vmatpush.msra.mxu0 %v1302
    %2107 = vmatpush.msra.mxu0 %v1301
    %2108 = vmatpush.msra.mxu0 %v1300
    %2109 = vmatmul.f32.gmra.mxu0 %v2071
    %v2110 = vpop.f32.mrf.mxu0
    %v2111 = vadd.f32 0.0, %v2110
    %2112 = vdwg.mxu0
    %2113 = vmatpush.msra.mxu0 0.0
    %2114 = vmatpush.msra.mxu0 0.0
    %2115 = vmatpush.msra.mxu0 0.0
    %2116 = vmatpush.msra.mxu0 0.0
    %2117 = vmatpush.msra.mxu0 0.0
    %2118 = vmatpush.msra.mxu0 0.0
    %2119 = vmatpush.msra.mxu0 0.0
    %2120 = vmatpush.msra.mxu0 0.0
    %2121 = vmatpush.msra.mxu0 0.0
    %2122 = vmatpush.msra.mxu0 0.0
    %2123 = vmatpush.msra.mxu0 0.0
    %2124 = vmatpush.msra.mxu0 0.0
    %2125 = vmatpush.msra.mxu0 %v1308
    %2126 = vmatpush.msra.mxu0 %v1307
    %2127 = vmatpush.msra.mxu0 %v1306
    %2128 = vmatpush.msra.mxu0 %v1305
    %2129 = vmatmul.f32.gmra.mxu0 %v2071
    %v2130 = vpop.f32.mrf.mxu0
    %v2131 = vadd.f32 %v1357, %v2130
    %2132 = vdwg.mxu0
    %v2134 = vrot.slane %v2091, 4
    %v2136 = vadd.f32 %v1226, %v2134
    %v2137 = vxor.u32 %v2136, 2147483648
    %v2138 = vmul.f32 %v2137, 1.442695
    %v2139 = vpow.pop %v2138
    %v2140 = vadd.f32 %v2139, 1.0
    %v2141 = vrcp.pop %v2140
    %v2142 = vmul.f32 %v2140, %v2141
    %v2143 = vsub.f32 1.0, %v2142
    %v2144 = vmul.f32 %v2141, %v2143
    %v2145 = vadd.f32 %v2141, %v2144
    %vm2146 = vweird.f32 %v2140
    %vm2147 = vweird.f32 %v2141
    %vm2148 = vmor %vm2146, %vm2147
    %v2149 = vsel %vm2148, %v2141, %v2145
    %v2150 = vand.u32 2147483647, %v2140
    %vm2151 = vcmp.eq.f32.partialorder %v2150, 8.507059e+37
    %v2152 = vand.u32 %v2140, 2147483648
    %v2153 = vor.u32 1.1754944e-38, %v2152
    %v2154 = vsel %vm2151, %v2153, %v2149
    %v2155 = vmul.f32 1.0, %v2154
    %v2157 = vrot.slane %v2111, 4
    %v2159 = vadd.f32 %v1259, %v2157
    %v2160 = vxor.u32 %v2159, 2147483648
    %v2161 = vmul.f32 %v2160, 1.442695
    %v2162 = vpow.pop %v2161
    %v2163 = vadd.f32 %v2162, 1.0
    %v2164 = vrcp.pop %v2163
    %v2165 = vmul.f32 %v2163, %v2164
    %v2166 = vsub.f32 1.0, %v2165
    %v2167 = vmul.f32 %v2164, %v2166
    %v2168 = vadd.f32 %v2164, %v2167
    %vm2169 = vweird.f32 %v2163
    %vm2170 = vweird.f32 %v2164
    %vm2171 = vmor %vm2169, %vm2170
    %v2172 = vsel %vm2171, %v2164, %v2168
    %v2173 = vand.u32 2147483647, %v2163
    %vm2174 = vcmp.eq.f32.partialorder %v2173, 8.507059e+37
    %v2175 = vand.u32 %v2163, 2147483648
    %v2176 = vor.u32 1.1754944e-38, %v2175
    %v2177 = vsel %vm2174, %v2176, %v2172
    %v2178 = vmul.f32 1.0, %v2177
    %v2180 = vrot.slane %v2131, 4
    %v2182 = vmul.f32 %v2155, %v2180
    %v2183 = vadd.f32 %v1292, %v2182
    %v2184 = vtanh.pop %v2183
    %v2185 = vsub.f32 1.0, %v2178
    %v2186 = vmul.f32 %v2185, %v2184
    %v2187 = vrot.slane %v2060, 6
    %v2189 = vmul.f32 %v2178, %v2187
    %v2190 = vadd.f32 %v2186, %v2189
    %vm2191 = vcmp.eq.s32.totalorder %v102, 7
    %v2192 = vsel %vm2191, 1, 0
    %2193 = vset.pattern.permute.xlu0 0
    %2194 = vperm.xlu0 %2193, %v2192
    %v2195 = vpop.permute.xlu0 %2194
    %vm2196 = vcmp.eq.s32.totalorder %v2195, 1
    %v2198 = vrot.slane %v2190, 4
    %v2200 = vsel %vm2196, %v2198, %v2070
    %v2201 = vsel %vm219, %v2198, 0
    %2203 = vmatpush.msra.mxu0 0.0
    %2204 = vmatpush.msra.mxu0 0.0
    %2205 = vmatpush.msra.mxu0 0.0
    %2206 = vmatpush.msra.mxu0 0.0
    %2207 = vmatpush.msra.mxu0 0.0
    %2208 = vmatpush.msra.mxu0 0.0
    %2209 = vmatpush.msra.mxu0 0.0
    %2210 = vmatpush.msra.mxu0 0.0
    %2211 = vmatpush.msra.mxu0 0.0
    %2212 = vmatpush.msra.mxu0 0.0
    %2213 = vmatpush.msra.mxu0 0.0
    %2214 = vmatpush.msra.mxu0 0.0
    %2215 = vmatpush.msra.mxu0 %v1298
    %2216 = vmatpush.msra.mxu0 %v1297
    %2217 = vmatpush.msra.mxu0 %v1296
    %2218 = vmatpush.msra.mxu0 %v1295
    %2219 = vmatmul.f32.gmra.mxu0 %v2201
    %v2220 = vpop.f32.mrf.mxu0
    %v2221 = vadd.f32 0.0, %v2220
    %2222 = vdwg.mxu0
    %2223 = vmatpush.msra.mxu0 0.0
    %2224 = vmatpush.msra.mxu0 0.0
    %2225 = vmatpush.msra.mxu0 0.0
    %2226 = vmatpush.msra.mxu0 0.0
    %2227 = vmatpush.msra.mxu0 0.0
    %2228 = vmatpush.msra.mxu0 0.0
    %2229 = vmatpush.msra.mxu0 0.0
    %2230 = vmatpush.msra.mxu0 0.0
    %2231 = vmatpush.msra.mxu0 0.0
    %2232 = vmatpush.msra.mxu0 0.0
    %2233 = vmatpush.msra.mxu0 0.0
    %2234 = vmatpush.msra.mxu0 0.0
    %2235 = vmatpush.msra.mxu0 %v1303
    %2236 = vmatpush.msra.mxu0 %v1302
    %2237 = vmatpush.msra.mxu0 %v1301
    %2238 = vmatpush.msra.mxu0 %v1300
    %2239 = vmatmul.f32.gmra.mxu0 %v2201
    %v2240 = vpop.f32.mrf.mxu0
    %v2241 = vadd.f32 0.0, %v2240
    %2242 = vdwg.mxu0
    %2243 = vmatpush.msra.mxu0 0.0
    %2244 = vmatpush.msra.mxu0 0.0
    %2245 = vmatpush.msra.mxu0 0.0
    %2246 = vmatpush.msra.mxu0 0.0
    %2247 = vmatpush.msra.mxu0 0.0
    %2248 = vmatpush.msra.mxu0 0.0
    %2249 = vmatpush.msra.mxu0 0.0
    %2250 = vmatpush.msra.mxu0 0.0
    %2251 = vmatpush.msra.mxu0 0.0
    %2252 = vmatpush.msra.mxu0 0.0
    %2253 = vmatpush.msra.mxu0 0.0
    %2254 = vmatpush.msra.mxu0 0.0
    %2255 = vmatpush.msra.mxu0 %v1308
    %2256 = vmatpush.msra.mxu0 %v1307
    %2257 = vmatpush.msra.mxu0 %v1306
    %2258 = vmatpush.msra.mxu0 %v1305
    %2259 = vmatmul.f32.gmra.mxu0 %v2201
    %v2260 = vpop.f32.mrf.mxu0
    %v2261 = vadd.f32 %v1357, %v2260
    %2262 = vdwg.mxu0
    %v2264 = vrot.slane %v2221, 2
    %v2266 = vadd.f32 %v1226, %v2264
    %v2267 = vxor.u32 %v2266, 2147483648
    %v2268 = vmul.f32 %v2267, 1.442695
    %v2269 = vpow.pop %v2268
    %v2270 = vadd.f32 %v2269, 1.0
    %v2271 = vrcp.pop %v2270
    %v2272 = vmul.f32 %v2270, %v2271
    %v2273 = vsub.f32 1.0, %v2272
    %v2274 = vmul.f32 %v2271, %v2273
    %v2275 = vadd.f32 %v2271, %v2274
    %vm2276 = vweird.f32 %v2270
    %vm2277 = vweird.f32 %v2271
    %vm2278 = vmor %vm2276, %vm2277
    %v2279 = vsel %vm2278, %v2271, %v2275
    %v2280 = vand.u32 2147483647, %v2270
    %vm2281 = vcmp.eq.f32.partialorder %v2280, 8.507059e+37
    %v2282 = vand.u32 %v2270, 2147483648
    %v2283 = vor.u32 1.1754944e-38, %v2282
    %v2284 = vsel %vm2281, %v2283, %v2279
    %v2285 = vmul.f32 1.0, %v2284
    %v2287 = vrot.slane %v2241, 2
    %v2289 = vadd.f32 %v1259, %v2287
    %v2290 = vxor.u32 %v2289, 2147483648
    %v2291 = vmul.f32 %v2290, 1.442695
    %v2292 = vpow.pop %v2291
    %v2293 = vadd.f32 %v2292, 1.0
    %v2294 = vrcp.pop %v2293
    %v2295 = vmul.f32 %v2293, %v2294
    %v2296 = vsub.f32 1.0, %v2295
    %v2297 = vmul.f32 %v2294, %v2296
    %v2298 = vadd.f32 %v2294, %v2297
    %vm2299 = vweird.f32 %v2293
    %vm2300 = vweird.f32 %v2294
    %vm2301 = vmor %vm2299, %vm2300
    %v2302 = vsel %vm2301, %v2294, %v2298
    %v2303 = vand.u32 2147483647, %v2293
    %vm2304 = vcmp.eq.f32.partialorder %v2303, 8.507059e+37
    %v2305 = vand.u32 %v2293, 2147483648
    %v2306 = vor.u32 1.1754944e-38, %v2305
    %v2307 = vsel %vm2304, %v2306, %v2302
    %v2308 = vmul.f32 1.0, %v2307
    %v2310 = vrot.slane %v2261, 2
    %v2312 = vmul.f32 %v2285, %v2310
    %v2313 = vadd.f32 %v1292, %v2312
    %v2314 = vtanh.pop %v2313
    %v2315 = vsub.f32 1.0, %v2308
    %v2316 = vmul.f32 %v2315, %v2314
    %v2317 = vrot.slane %v2190, 6
    %v2319 = vmul.f32 %v2308, %v2317
    %v2320 = vadd.f32 %v2316, %v2319
    %vm2321 = vcmp.eq.s32.totalorder %v102, 8
    %v2322 = vsel %vm2321, 1, 0
    %2323 = vset.pattern.permute.xlu0 0
    %2324 = vperm.xlu0 %2323, %v2322
    %v2325 = vpop.permute.xlu0 %2324
    %vm2326 = vcmp.eq.s32.totalorder %v2325, 1
    %v2328 = vrot.slane %v2320, 6
    %v2330 = vsel %vm2326, %v2328, %v2200
    %v2331 = vld [vmem:[%s7] sm:$0xff]
    %v2332 = vld [vmem:[%s7 + $0x8] sm:$0xff]
    %v2333 = vld [vmem:[%s7 + $0x10] sm:$0xff]
    %v2334 = vld [vmem:[%s7 + $0x18] sm:$0xff]
    %v2335 = vld [vmem:[%s8] sm:$0x1]
    %v2337 = vperm.slane %v2335, 0
    %v2340 = vsel %vm219, %v2330, 0
    %2342 = vmatpush.msra.mxu0 0.0
    %2343 = vmatpush.msra.mxu0 0.0
    %2344 = vmatpush.msra.mxu0 0.0
    %2345 = vmatpush.msra.mxu0 0.0
    %2346 = vmatpush.msra.mxu0 0.0
    %2347 = vmatpush.msra.mxu0 0.0
    %2348 = vmatpush.msra.mxu0 0.0
    %2349 = vmatpush.msra.mxu0 0.0
    %2350 = vmatpush.msra.mxu0 0.0
    %2351 = vmatpush.msra.mxu0 0.0
    %2352 = vmatpush.msra.mxu0 0.0
    %2353 = vmatpush.msra.mxu0 0.0
    %2354 = vmatpush.msra.mxu0 %v2334
    %2355 = vmatpush.msra.mxu0 %v2333
    %2356 = vmatpush.msra.mxu0 %v2332
    %2357 = vmatpush.msra.mxu0 %v2331
    %2358 = vmatmul.f32.gmra.mxu0 %v2340
    %v2359 = vpop.f32.mrf.mxu0
    %v2360 = vadd.f32 %v2337, %v2359
    %2361 = vdwg.mxu0
    %v2362 = vtanh.pop %v2360
    %v2363 = vld [vmem:[%s9] sm:$0xff]
    %v2364 = vld [vmem:[%s9 + $0x8] sm:$0xff]
    %v2365 = vld [vmem:[%s9 + $0x10] sm:$0xff]
    %v2366 = vld [vmem:[%s9 + $0x18] sm:$0xff]
    %v2367 = vld [vmem:[%s10] sm:$0x1]
    %v2369 = vperm.slane %v2367, 0
    %v2372 = vsel %vm219, %v2362, 0
    %2374 = vmatpush.msra.mxu0 0.0
    %2375 = vmatpush.msra.mxu0 0.0
    %2376 = vmatpush.msra.mxu0 0.0
    %2377 = vmatpush.msra.mxu0 0.0
    %2378 = vmatpush.msra.mxu0 0.0
    %2379 = vmatpush.msra.mxu0 0.0
    %2380 = vmatpush.msra.mxu0 0.0
    %2381 = vmatpush.msra.mxu0 0.0
    %2382 = vmatpush.msra.mxu0 0.0
    %2383 = vmatpush.msra.mxu0 0.0
    %2384 = vmatpush.msra.mxu0 0.0
    %2385 = vmatpush.msra.mxu0 0.0
    %2386 = vmatpush.msra.mxu0 %v2366
    %2387 = vmatpush.msra.mxu0 %v2365
    %2388 = vmatpush.msra.mxu0 %v2364
    %2389 = vmatpush.msra.mxu0 %v2363
    %2390 = vmatmul.f32.gmra.mxu0 %v2372
    %v2391 = vpop.f32.mrf.mxu0
    %v2392 = vadd.f32 %v2369, %v2391
    %2393 = vdwg.mxu0
    %vm2394 = vcmask 91136
    %2395 = vst.msk [vmem:[#allocation11] sm:$0x3] %vm2394, %v2392
    // Predicated region
    $region62: #{tpu_custom_call.1} parent=1 // pred_check
      _
    $region63: #{tpu_custom_call.1} parent=1 // pred_check_branch
      %2397 = sbr.rel (0) target = $region65
    $region64: #{tpu_custom_call.1} parent=1 // pred_region
      %2399 = vsyncadd [#allocation5], 0
      %s2401 = sshll.u32 [#allocation11], 4
      %s2402 = int_to_ptr.vmem [resolvable:$true] %s2401
      %s2403 = sshll.u32 %s11, 4
      %s2404 = int_to_ptr.hbm [resolvable:$true] %s2403
      %2406 = dma.vmem_to_hbm [thread:$0]  %s2402, 32, %s2404, [#allocation5]
    $region65: #{tpu_custom_call.1} parent=1 // pred_fallthru
      _
    // Predicated region
    $region66: #{tpu_custom_call.1} parent=1 // pred_check
      _
    $region67: #{tpu_custom_call.1} parent=1 // pred_check_branch
      %2408 = sbr.rel (0) target = $region69
    $region68: #{tpu_custom_call.1} parent=1 // pred_region
      %2410 = dma.done [#allocation5], 32
    $region69: #{tpu_custom_call.1} parent=1 // pred_fallthru
      _
    %2411 = vsyncpa [#allocation4], 1
    %2412 = vsyncpa [#allocation7], 1
    %2413 = vsyncpa [#allocation10], 1
    %2414 = vsyncpa [#allocation5], 1

</llo_original>
